<compile_context>
chip_gen: v7x
topology: tpu7x:2x2x1
jax: 0.10.0
libtpu: 0.0.40
codegen_flags: <defaults>
</compile_context>

<pallas_src>
import functools
import math

import jax
import jax.numpy as jnp
from jax.experimental import pallas as pl
from jax.experimental.pallas import tpu as pltpu

EPS = 1e-6  # SamLayerNorm eps


def _layer_norm_cf(v, gamma, beta):
    # channels_first SamLayerNorm == per-row LayerNorm over the channel (lane) axis.
    u = jnp.mean(v, axis=-1, keepdims=True)
    d = v - u
    s = jnp.mean(d * d, axis=-1, keepdims=True)
    return d * jax.lax.rsqrt(s + EPS) * gamma + beta


def _pick_row_block(M, W, cap=1024):
    """Largest row-chunk RB <= cap with RB | M, RB % W == 0, RB % 128 == 0.

    RB % W == 0  -> the w==0 / w==W-1 rows land on chunk boundaries, so the
                    circular wrap of the per-chunk roll is always masked.
    RB % 128 == 0 -> the transposed (C, RB) output store stays lane-aligned.
    Falls back to RB = M (single chunk over the whole image), which is always
    correct (M = H*W is a multiple of W and the lane offset is 0).
    """
    step = (W * 128) // math.gcd(W, 128)  # lcm(W, 128)
    rb = (cap // step) * step
    while rb >= step:
        if M % rb == 0:
            return rb
        rb -= step
    return M


def _neck_kernel(x_ref, w1_ref, g1_ref, b1_ref, w2_ref, g2_ref, b2_ref,
                 o_ref, hp_ref, *, H, W, P, RB):
    """One batch element per grid step.

    x_ref  : (1, H*W, Cin)   bf16 input rows (channels last)
    w1_ref : (Cin, C)        bf16 1x1 conv weight
    w2_ref : (9, C, C)       bf16 3x3 conv weights, tap k = kh*3 + kw, (Ci, Co)
    g*_ref : (1, C)          f32 LayerNorm gamma/beta
    o_ref  : (1, C, H*W)     f32 output, NCHW rows (lane-dense store)
    hp_ref : (H*W + 2P, C)   bf16 VMEM scratch: zero halos + staged LN1 activation
    """
    M = H * W
    C = w2_ref.shape[-1]
    n_chunks = M // RB

    # Zero halo rows every grid step.  It is tiny (2*P rows of stores) and a
    # pl.when(program_id == 0) guard would be skipped by the second TensorCore
    # when the batch axis is megacore-partitioned (scratch is per-core while
    # program_id is global), so the unconditional form is the safe one.
    halo = jnp.zeros((P, C), hp_ref.dtype)
    hp_ref[0:P, :] = halo
    hp_ref[P + M:P + M + P, :] = halo

    # ---- stage 1: conv1 (1x1, bf16 MXU) + LN1 (f32), streamed over row chunks ----
    w1 = w1_ref[...]
    g1 = g1_ref[...]
    b1 = b1_ref[...]
    for ci in range(n_chunks):            # short static unroll (n_chunks is tiny)
        off = ci * RB
        xb = x_ref[0, off:off + RB, :]                               # (RB, Cin) bf16
        h = jnp.dot(xb, w1, preferred_element_type=jnp.float32)      # (RB, C) f32
        h = _layer_norm_cf(h, g1, b1)
        hp_ref[P + off:P + off + RB, :] = h.astype(hp_ref.dtype)     # bf16 staging

    # Column-validity masks for the horizontal 3x3 taps, built in-kernel (VPU
    # filler under the MXU).  Chunk-local flat index mod W is the image column
    # because RB % W == 0 (or RB == M).
    col = jax.lax.broadcasted_iota(jnp.int32, (RB, 1), 0) % W
    m_not_first = jnp.where(col != 0, 1.0, 0.0)       # dw = -1 invalid at w == 0
    m_not_last = jnp.where(col != W - 1, 1.0, 0.0)    # dw = +1 invalid at w == W-1

    # ---- stage 2: conv2 (3x3, pad=1) as 9 aligned matmuls + 2 rolls, LN2, NCHW ----
    w2 = [w2_ref[k] for k in range(9)]                # 9 x (C, C) bf16, loaded once
    g2 = g2_ref[...]
    b2 = b2_ref[...]
    for ci in range(n_chunks):
        off = ci * RB

        def tap_group(dh, kbase, _off=off):
            start = P + _off + dh * W                 # sublane/tile-aligned window
            win = hp_ref[start:start + RB, :]         # (RB, C) bf16
            l = jnp.dot(win, w2[kbase + 0], preferred_element_type=jnp.float32)
            c = jnp.dot(win, w2[kbase + 1], preferred_element_type=jnp.float32)
            r = jnp.dot(win, w2[kbase + 2], preferred_element_type=jnp.float32)
            return l, c, r

        lm, cm, rm = tap_group(-1, 0)
        lc, cc, rc = tap_group(0, 3)
        lp, cp, rp = tap_group(1, 6)

        acc = cm + cc + cp                            # dw = 0 contribution
        left = lm + lc + lp                           # dw = -1 contribution, pre-shift
        right = rm + rc + rp                          # dw = +1 contribution, pre-shift
        # One roll per dw group (XLU) + one masked multiply: the circular-wrap
        # rows land on masked (w == 0 / w == W-1) destinations, so the wrap is
        # harmless.  This replaces 6 misaligned window slices + 6 masked muls.
        acc = acc + m_not_first * pltpu.roll(left, shift=1, axis=0)
        acc = acc + m_not_last * pltpu.roll(right, shift=RB - 1, axis=0)

        y = _layer_norm_cf(acc, g2, b2)               # (RB, C) f32
        # Emit NCHW directly: (RB, C) -> (C, RB), lane-dense store.
        o_ref[0, :, off:off + RB] = jnp.transpose(y, (1, 0)).astype(o_ref.dtype)


def sam_vision_neck(hidden_states, params):
    """hidden_states: (B, H, W, hidden_size), channels-last (SamVisionNeck input).

    Returns (B, output_channels, H, W) — NCHW, matching the PyTorch module output.
    """
    w1, g1, be1, w2, g2, be2 = params
    B, H, W, Cin = hidden_states.shape
    Cout = w1.shape[0]
    M = H * W
    # Halo rows: >= W, rounded to 32 rows so the bf16 (16, 128) window slices
    # (start = P + off +/- W) stay tile-aligned when W % 16 == 0.
    P = ((W + 31) // 32) * 32
    RB = _pick_row_block(M, W)

    # bf16 matmul operands (f32 accumulation happens inside the kernel).
    x = hidden_states.reshape(B, M, Cin).astype(jnp.bfloat16)
    # conv1 weight (Cout, Cin, 1, 1) -> (Cin, Cout)
    w1m = jnp.transpose(w1.reshape(Cout, Cin), (1, 0)).astype(jnp.bfloat16)
    # conv2 weight (Cout, Cin2, 3, 3) -> (9, Cin2, Cout), tap k = kh*3 + kw
    w2m = jnp.transpose(w2, (2, 3, 1, 0)).reshape(9, Cout, Cout).astype(jnp.bfloat16)

    kernel = functools.partial(_neck_kernel, H=H, W=W, P=P, RB=RB)

    # VMEM budget: double-buffered pipeline blocks + persistent scratch + live
    # f32 temporaries of one row chunk, with a little headroom.
    block_bytes = 2 * (M * Cin * 2          # x (bf16)
                       + M * Cout * 4       # out (f32, NCHW rows)
                       + Cin * Cout * 2     # w1 (bf16)
                       + 9 * Cout * Cout * 2  # w2 (bf16)
                       + 4 * Cout * 4)      # gammas / betas (f32)
    scratch_bytes = (M + 2 * P) * Cout * 2
    live_bytes = 14 * RB * Cout * 4
    vmem_limit = int(min(112 << 20,
                         max(24 << 20,
                             block_bytes + scratch_bytes + live_bytes + (4 << 20))))

    out = pl.pallas_call(
        kernel,
        out_shape=jax.ShapeDtypeStruct((B, Cout, M), jnp.float32),
        grid_spec=pltpu.PrefetchScalarGridSpec(
            num_scalar_prefetch=0,
            grid=(B,),
            in_specs=[
                pl.BlockSpec((1, M, Cin), lambda b: (b, 0, 0)),      # x rows of batch b
                pl.BlockSpec((Cin, Cout), lambda b: (0, 0)),         # conv1 weight
                pl.BlockSpec((1, Cout), lambda b: (0, 0)),           # LN1 gamma
                pl.BlockSpec((1, Cout), lambda b: (0, 0)),           # LN1 beta
                pl.BlockSpec((9, Cout, Cout), lambda b: (0, 0, 0)),  # conv2 taps
                pl.BlockSpec((1, Cout), lambda b: (0, 0)),           # LN2 gamma
                pl.BlockSpec((1, Cout), lambda b: (0, 0)),           # LN2 beta
            ],
            out_specs=pl.BlockSpec((1, Cout, M), lambda b: (b, 0, 0)),
            scratch_shapes=[pltpu.VMEM((M + 2 * P, Cout), jnp.bfloat16)],
        ),
        compiler_params=pltpu.CompilerParams(
            # Batch axis is independent -> pipelined everywhere, sharded across
            # TensorCores on multi-TC chips.
            dimension_semantics=("parallel",),
            vmem_limit_bytes=vmem_limit,
        ),
    )(x, w1m,
      g1.reshape(1, -1).astype(jnp.float32), be1.reshape(1, -1).astype(jnp.float32),
      w2m,
      g2.reshape(1, -1).astype(jnp.float32), be2.reshape(1, -1).astype(jnp.float32))

    # Kernel already produced NCHW rows; this reshape is free (no data movement).
    return out.reshape(B, Cout, H, W)


# ---------------------------------------------------------------------------
# Pure-JAX fp32 reference (lax.conv) mirroring the PyTorch forward, for checking.
# ---------------------------------------------------------------------------
def _ref_forward(hidden_states, params):
    w1, g1, be1, w2, g2, be2 = params
    x = jnp.transpose(hidden_states, (0, 3, 1, 2)).astype(jnp.float32)  # NCHW

    def conv(v, w, padding):
        return jax.lax.conv_general_dilated(
            v, w, (1, 1), padding,
            dimension_numbers=("NCHW", "OIHW", "NCHW"))

    def ln_cf(v, g, b):
        u = v.mean(1, keepdims=True)
        s = ((v - u) ** 2).mean(1, keepdims=True)
        vn = (v - u) / jnp.sqrt(s + EPS)
        return g[None, :, None, None] * vn + b[None, :, None, None]

    h = conv(x, w1, "VALID")               # 1x1 conv, no bias
    h = ln_cf(h, g1, be1)
    h = conv(h, w2, [(1, 1), (1, 1)])      # 3x3 conv, pad=1, no bias
    return ln_cf(h, g2, be2)


# ---------------------------------------------------------------------------
if __name__ == "__main__":
    # Small shapes consistent with the module (SAM uses hidden=768..1280,
    # output_channels=256, H=W=64); scaled down but kept (8,128)-friendly.
    B, H, W = 2, 16, 16
    HIDDEN, OUT_C = 32, 128

    key = jax.random.PRNGKey(0)
    ks = jax.random.split(key, 7)
    x = jax.random.normal(ks[0], (B, H, W, HIDDEN), jnp.float32)
    w1 = 0.1 * jax.random.normal(ks[1], (OUT_C, HIDDEN, 1, 1), jnp.float32)
    g1 = 1.0 + 0.1 * jax.random.normal(ks[2], (OUT_C,), jnp.float32)
    be1 = 0.1 * jax.random.normal(ks[3], (OUT_C,), jnp.float32)
    w2 = 0.1 * jax.random.normal(ks[4], (OUT_C, OUT_C, 3, 3), jnp.float32)
    g2 = 1.0 + 0.1 * jax.random.normal(ks[5], (OUT_C,), jnp.float32)
    be2 = 0.1 * jax.random.normal(ks[6], (OUT_C,), jnp.float32)
    params = (w1, g1, be1, w2, g2, be2)

    out = jax.block_until_ready(sam_vision_neck(x, params))
    ref = jax.block_until_ready(_ref_forward(x, params))

    assert out.shape == (B, OUT_C, H, W), out.shape
    max_err = float(jnp.max(jnp.abs(out - ref)))
    # Tolerance loosened vs the pure-f32 version: matmul operands are bf16
    # (f32 accumulation), per the performance review.
    assert jnp.allclose(out, ref, rtol=5e-2, atol=8e-2), f"max_err={max_err}"
    print("KERNEL_OK")
</pallas_src>

<mosaic_0001>
module attributes {stable_mosaic.version = 11 : i64} {
  func.func @_neck_kernel(%arg0: i32, %arg1: memref<1x256x32xbf16, #tpu.memory_space<vmem>>, %arg2: memref<32x128xbf16, #tpu.memory_space<vmem>>, %arg3: memref<1x128xf32, #tpu.memory_space<vmem>>, %arg4: memref<1x128xf32, #tpu.memory_space<vmem>>, %arg5: memref<9x128x128xbf16, #tpu.memory_space<vmem>>, %arg6: memref<1x128xf32, #tpu.memory_space<vmem>>, %arg7: memref<1x128xf32, #tpu.memory_space<vmem>>, %arg8: memref<1x128x256xf32, #tpu.memory_space<vmem>>, %arg9: memref<320x128xbf16, #tpu.memory_space<vmem>>) attributes {dimension_semantics = [#tpu.dimension_semantics<parallel>], iteration_bounds = array<i64: 2>, scalar_prefetch = 0 : i64, scratch_operands = 1 : i64, tpu.core_type = #tpu.core_type<tc>, window_params = [{transform_indices = @transform_0, window_bounds = array<i64: 1, 256, 32>}, {pipeline_mode = #tpu.pipeline_mode<synchronous>, transform_indices = @transform_1, window_bounds = array<i64: 32, 128>}, {pipeline_mode = #tpu.pipeline_mode<synchronous>, transform_indices = @transform_2, window_bounds = array<i64: 1, 128>}, {pipeline_mode = #tpu.pipeline_mode<synchronous>, transform_indices = @transform_3, window_bounds = array<i64: 1, 128>}, {pipeline_mode = #tpu.pipeline_mode<synchronous>, transform_indices = @transform_4, window_bounds = array<i64: 9, 128, 128>}, {pipeline_mode = #tpu.pipeline_mode<synchronous>, transform_indices = @transform_5, window_bounds = array<i64: 1, 128>}, {pipeline_mode = #tpu.pipeline_mode<synchronous>, transform_indices = @transform_6, window_bounds = array<i64: 1, 128>}, {transform_indices = @transform_7, window_bounds = array<i64: 1, 128, 256>}]} {
    %cst = arith.constant 0.000000e+00 : bf16
    %0 = vector.broadcast %cst : bf16 to vector<32x128xbf16>
    %c0 = arith.constant 0 : index
    %c0_0 = arith.constant 0 : index
    %1 = vector.load %arg9[%c0, %c0_0] : memref<320x128xbf16, #tpu.memory_space<vmem>>, vector<32x128xbf16>
    tpu.vector_store %arg9[%c0, %c0_0], %0 {strides = array<i32>} : memref<320x128xbf16, #tpu.memory_space<vmem>>, vector<32x128xbf16>,
    %c288 = arith.constant 288 : index
    %c0_1 = arith.constant 0 : index
    %2 = vector.load %arg9[%c288, %c0_1] : memref<320x128xbf16, #tpu.memory_space<vmem>>, vector<32x128xbf16>
    tpu.vector_store %arg9[%c288, %c0_1], %0 {strides = array<i32>} : memref<320x128xbf16, #tpu.memory_space<vmem>>, vector<32x128xbf16>,
    %c0_2 = arith.constant 0 : index
    %c0_3 = arith.constant 0 : index
    %3 = vector.load %arg2[%c0_2, %c0_3] : memref<32x128xbf16, #tpu.memory_space<vmem>>, vector<32x128xbf16>
    %c0_4 = arith.constant 0 : index
    %c0_5 = arith.constant 0 : index
    %4 = vector.load %arg3[%c0_4, %c0_5] : memref<1x128xf32, #tpu.memory_space<vmem>>, vector<1x128xf32>
    %c0_6 = arith.constant 0 : index
    %c0_7 = arith.constant 0 : index
    %5 = vector.load %arg4[%c0_6, %c0_7] : memref<1x128xf32, #tpu.memory_space<vmem>>, vector<1x128xf32>
    %c0_8 = arith.constant 0 : index
    %c0_9 = arith.constant 0 : index
    %c0_10 = arith.constant 0 : index
    %6 = vector.load %arg1[%c0_8, %c0_9, %c0_10] : memref<1x256x32xbf16, #tpu.memory_space<vmem>>, vector<1x256x32xbf16>
    %7 = vector.shape_cast %6 : vector<1x256x32xbf16> to vector<256x32xbf16>
    %cst_11 = arith.constant dense<0.000000e+00> : vector<256x128xf32>
    %8 = tpu.matmul %7, %3, %cst_11 {dimension_numbers = #tpu.dot_dimension_numbers<[1], [0], [0], [1], [0, 0, 1, 1], [], []>} : vector<256x32xbf16>, vector<32x128xbf16>, vector<256x128xf32> -> vector<256x128xf32>
    %cst_12 = arith.constant dense<0.000000e+00> : vector<256xf32>
    %9 = vector.multi_reduction <add>, %8, %cst_12 [1] : vector<256x128xf32> to vector<256xf32>
    %10 = vector.shape_cast %9 : vector<256xf32> to vector<256x1xf32>
    %cst_13 = arith.constant 1.280000e+02 : f32
    %11 = vector.broadcast %cst_13 : f32 to vector<256x1xf32>
    %12 = arith.divf %10, %11 : vector<256x1xf32>
    %13 = vector.broadcast %12 : vector<256x1xf32> to vector<256x128xf32>
    %14 = arith.subf %8, %13 : vector<256x128xf32>
    %15 = arith.mulf %14, %14 : vector<256x128xf32>
    %cst_14 = arith.constant dense<0.000000e+00> : vector<256xf32>
    %16 = vector.multi_reduction <add>, %15, %cst_14 [1] : vector<256x128xf32> to vector<256xf32>
    %17 = vector.shape_cast %16 : vector<256xf32> to vector<256x1xf32>
    %cst_15 = arith.constant 1.280000e+02 : f32
    %18 = vector.broadcast %cst_15 : f32 to vector<256x1xf32>
    %19 = arith.divf %17, %18 : vector<256x1xf32>
    %cst_16 = arith.constant 9.99999997E-7 : f32
    %20 = vector.broadcast %cst_16 : f32 to vector<256x1xf32>
    %21 = arith.addf %19, %20 : vector<256x1xf32>
    %22 = math.rsqrt %21 : vector<256x1xf32>
    %23 = vector.broadcast %22 : vector<256x1xf32> to vector<256x128xf32>
    %24 = arith.mulf %14, %23 : vector<256x128xf32>
    %25 = vector.broadcast %4 : vector<1x128xf32> to vector<256x128xf32>
    %26 = arith.mulf %24, %25 : vector<256x128xf32>
    %27 = vector.broadcast %5 : vector<1x128xf32> to vector<256x128xf32>
    %28 = arith.addf %26, %27 : vector<256x128xf32>
    %29 = arith.truncf %28 : vector<256x128xf32> to vector<256x128xbf16>
    %c32 = arith.constant 32 : index
    %c0_17 = arith.constant 0 : index
    %30 = vector.load %arg9[%c32, %c0_17] : memref<320x128xbf16, #tpu.memory_space<vmem>>, vector<256x128xbf16>
    tpu.vector_store %arg9[%c32, %c0_17], %29 {strides = array<i32>} : memref<320x128xbf16, #tpu.memory_space<vmem>>, vector<256x128xbf16>,
    %31 = tpu.iota {dimensions = array<i32: 0>} : vector<256x1xi32>
    %c16_i32 = arith.constant 16 : i32
    %c0_i32 = arith.constant 0 : i32
    %32 = arith.cmpi eq, %c16_i32, %c0_i32 : i32
    %c1_i32 = arith.constant 1 : i32
    %33 = arith.select %32, %c1_i32, %c16_i32 : i32
    %34 = vector.broadcast %33 : i32 to vector<256x1xi32>
    %35 = arith.remsi %31, %34 : vector<256x1xi32>
    %c0_i32_18 = arith.constant 0 : i32
    %36 = vector.broadcast %c0_i32_18 : i32 to vector<256x1xi32>
    %37 = arith.cmpi ne, %35, %36 : vector<256x1xi32>
    %c0_i32_19 = arith.constant 0 : i32
    %38 = vector.broadcast %c0_i32_19 : i32 to vector<256x1xi32>
    %39 = arith.cmpi slt, %35, %38 : vector<256x1xi32>
    %c0_i32_20 = arith.constant 0 : i32
    %40 = arith.cmpi slt, %33, %c0_i32_20 : i32
    %41 = vector.broadcast %40 : i1 to vector<256x1xi1>
    %42 = vector.broadcast %41 : vector<256x1xi1> to vector<256x1xi1>
    %43 = arith.xori %39, %42 : vector<256x1xi1>
    %44 = arith.andi %43, %37 : vector<256x1xi1>
    %45 = vector.broadcast %33 : i32 to vector<256x1xi32>
    %46 = arith.addi %35, %45 : vector<256x1xi32>
    %47 = arith.select %44, %46, %35 : vector<256x1xi1>, vector<256x1xi32>
    %c0_i32_21 = arith.constant 0 : i32
    %48 = vector.broadcast %c0_i32_21 : i32 to vector<256x1xi32>
    %49 = arith.cmpi ne, %47, %48 : vector<256x1xi32>
    %cst_22 = arith.constant 1.000000e+00 : f32
    %cst_23 = arith.constant 0.000000e+00 : f32
    %50 = vector.broadcast %cst_22 : f32 to vector<256x1xf32>
    %51 = vector.broadcast %cst_23 : f32 to vector<256x1xf32>
    %52 = arith.select %49, %50, %51 : vector<256x1xi1>, vector<256x1xf32>
    %c15_i32 = arith.constant 15 : i32
    %53 = vector.broadcast %c15_i32 : i32 to vector<256x1xi32>
    %54 = arith.cmpi ne, %47, %53 : vector<256x1xi32>
    %cst_24 = arith.constant 1.000000e+00 : f32
    %cst_25 = arith.constant 0.000000e+00 : f32
    %55 = vector.broadcast %cst_24 : f32 to vector<256x1xf32>
    %56 = vector.broadcast %cst_25 : f32 to vector<256x1xf32>
    %57 = arith.select %54, %55, %56 : vector<256x1xi1>, vector<256x1xf32>
    %c0_26 = arith.constant 0 : index
    %c0_27 = arith.constant 0 : index
    %c0_28 = arith.constant 0 : index
    %58 = vector.load %arg5[%c0_26, %c0_27, %c0_28] : memref<9x128x128xbf16, #tpu.memory_space<vmem>>, vector<1x128x128xbf16>
    %59 = vector.shape_cast %58 : vector<1x128x128xbf16> to vector<128x128xbf16>
    %c1 = arith.constant 1 : index
    %c0_29 = arith.constant 0 : index
    %c0_30 = arith.constant 0 : index
    %60 = vector.load %arg5[%c1, %c0_29, %c0_30] : memref<9x128x128xbf16, #tpu.memory_space<vmem>>, vector<1x128x128xbf16>
    %61 = vector.shape_cast %60 : vector<1x128x128xbf16> to vector<128x128xbf16>
    %c2 = arith.constant 2 : index
    %c0_31 = arith.constant 0 : index
    %c0_32 = arith.constant 0 : index
    %62 = vector.load %arg5[%c2, %c0_31, %c0_32] : memref<9x128x128xbf16, #tpu.memory_space<vmem>>, vector<1x128x128xbf16>
    %63 = vector.shape_cast %62 : vector<1x128x128xbf16> to vector<128x128xbf16>
    %c3 = arith.constant 3 : index
    %c0_33 = arith.constant 0 : index
    %c0_34 = arith.constant 0 : index
    %64 = vector.load %arg5[%c3, %c0_33, %c0_34] : memref<9x128x128xbf16, #tpu.memory_space<vmem>>, vector<1x128x128xbf16>
    %65 = vector.shape_cast %64 : vector<1x128x128xbf16> to vector<128x128xbf16>
    %c4 = arith.constant 4 : index
    %c0_35 = arith.constant 0 : index
    %c0_36 = arith.constant 0 : index
    %66 = vector.load %arg5[%c4, %c0_35, %c0_36] : memref<9x128x128xbf16, #tpu.memory_space<vmem>>, vector<1x128x128xbf16>
    %67 = vector.shape_cast %66 : vector<1x128x128xbf16> to vector<128x128xbf16>
    %c5 = arith.constant 5 : index
    %c0_37 = arith.constant 0 : index
    %c0_38 = arith.constant 0 : index
    %68 = vector.load %arg5[%c5, %c0_37, %c0_38] : memref<9x128x128xbf16, #tpu.memory_space<vmem>>, vector<1x128x128xbf16>
    %69 = vector.shape_cast %68 : vector<1x128x128xbf16> to vector<128x128xbf16>
    %c6 = arith.constant 6 : index
    %c0_39 = arith.constant 0 : index
    %c0_40 = arith.constant 0 : index
    %70 = vector.load %arg5[%c6, %c0_39, %c0_40] : memref<9x128x128xbf16, #tpu.memory_space<vmem>>, vector<1x128x128xbf16>
    %71 = vector.shape_cast %70 : vector<1x128x128xbf16> to vector<128x128xbf16>
    %c7 = arith.constant 7 : index
    %c0_41 = arith.constant 0 : index
    %c0_42 = arith.constant 0 : index
    %72 = vector.load %arg5[%c7, %c0_41, %c0_42] : memref<9x128x128xbf16, #tpu.memory_space<vmem>>, vector<1x128x128xbf16>
    %73 = vector.shape_cast %72 : vector<1x128x128xbf16> to vector<128x128xbf16>
    %c8 = arith.constant 8 : index
    %c0_43 = arith.constant 0 : index
    %c0_44 = arith.constant 0 : index
    %74 = vector.load %arg5[%c8, %c0_43, %c0_44] : memref<9x128x128xbf16, #tpu.memory_space<vmem>>, vector<1x128x128xbf16>
    %75 = vector.shape_cast %74 : vector<1x128x128xbf16> to vector<128x128xbf16>
    %c0_45 = arith.constant 0 : index
    %c0_46 = arith.constant 0 : index
    %76 = vector.load %arg6[%c0_45, %c0_46] : memref<1x128xf32, #tpu.memory_space<vmem>>, vector<1x128xf32>
    %c0_47 = arith.constant 0 : index
    %c0_48 = arith.constant 0 : index
    %77 = vector.load %arg7[%c0_47, %c0_48] : memref<1x128xf32, #tpu.memory_space<vmem>>, vector<1x128xf32>
    %c16 = arith.constant 16 : index
    %c0_49 = arith.constant 0 : index
    %78 = vector.load %arg9[%c16, %c0_49] : memref<320x128xbf16, #tpu.memory_space<vmem>>, vector<256x128xbf16>
    %cst_50 = arith.constant dense<0.000000e+00> : vector<256x128xf32>
    %79 = tpu.matmul %78, %59, %cst_50 {dimension_numbers = #tpu.dot_dimension_numbers<[1], [0], [0], [1], [0, 0, 1, 1], [], []>} : vector<256x128xbf16>, vector<128x128xbf16>, vector<256x128xf32> -> vector<256x128xf32>
    %cst_51 = arith.constant dense<0.000000e+00> : vector<256x128xf32>
    %80 = tpu.matmul %78, %61, %cst_51 {dimension_numbers = #tpu.dot_dimension_numbers<[1], [0], [0], [1], [0, 0, 1, 1], [], []>} : vector<256x128xbf16>, vector<128x128xbf16>, vector<256x128xf32> -> vector<256x128xf32>
    %cst_52 = arith.constant dense<0.000000e+00> : vector<256x128xf32>
    %81 = tpu.matmul %78, %63, %cst_52 {dimension_numbers = #tpu.dot_dimension_numbers<[1], [0], [0], [1], [0, 0, 1, 1], [], []>} : vector<256x128xbf16>, vector<128x128xbf16>, vector<256x128xf32> -> vector<256x128xf32>
    %c32_53 = arith.constant 32 : index
    %c0_54 = arith.constant 0 : index
    %82 = vector.load %arg9[%c32_53, %c0_54] : memref<320x128xbf16, #tpu.memory_space<vmem>>, vector<256x128xbf16>
    %cst_55 = arith.constant dense<0.000000e+00> : vector<256x128xf32>
    %83 = tpu.matmul %82, %65, %cst_55 {dimension_numbers = #tpu.dot_dimension_numbers<[1], [0], [0], [1], [0, 0, 1, 1], [], []>} : vector<256x128xbf16>, vector<128x128xbf16>, vector<256x128xf32> -> vector<256x128xf32>
    %cst_56 = arith.constant dense<0.000000e+00> : vector<256x128xf32>
    %84 = tpu.matmul %82, %67, %cst_56 {dimension_numbers = #tpu.dot_dimension_numbers<[1], [0], [0], [1], [0, 0, 1, 1], [], []>} : vector<256x128xbf16>, vector<128x128xbf16>, vector<256x128xf32> -> vector<256x128xf32>
    %cst_57 = arith.constant dense<0.000000e+00> : vector<256x128xf32>
    %85 = tpu.matmul %82, %69, %cst_57 {dimension_numbers = #tpu.dot_dimension_numbers<[1], [0], [0], [1], [0, 0, 1, 1], [], []>} : vector<256x128xbf16>, vector<128x128xbf16>, vector<256x128xf32> -> vector<256x128xf32>
    %c48 = arith.constant 48 : index
    %c0_58 = arith.constant 0 : index
    %86 = vector.load %arg9[%c48, %c0_58] : memref<320x128xbf16, #tpu.memory_space<vmem>>, vector<256x128xbf16>
    %cst_59 = arith.constant dense<0.000000e+00> : vector<256x128xf32>
    %87 = tpu.matmul %86, %71, %cst_59 {dimension_numbers = #tpu.dot_dimension_numbers<[1], [0], [0], [1], [0, 0, 1, 1], [], []>} : vector<256x128xbf16>, vector<128x128xbf16>, vector<256x128xf32> -> vector<256x128xf32>
    %cst_60 = arith.constant dense<0.000000e+00> : vector<256x128xf32>
    %88 = tpu.matmul %86, %73, %cst_60 {dimension_numbers = #tpu.dot_dimension_numbers<[1], [0], [0], [1], [0, 0, 1, 1], [], []>} : vector<256x128xbf16>, vector<128x128xbf16>, vector<256x128xf32> -> vector<256x128xf32>
    %cst_61 = arith.constant dense<0.000000e+00> : vector<256x128xf32>
    %89 = tpu.matmul %86, %75, %cst_61 {dimension_numbers = #tpu.dot_dimension_numbers<[1], [0], [0], [1], [0, 0, 1, 1], [], []>} : vector<256x128xbf16>, vector<128x128xbf16>, vector<256x128xf32> -> vector<256x128xf32>
    %90 = arith.addf %80, %84 : vector<256x128xf32>
    %91 = arith.addf %90, %88 : vector<256x128xf32>
    %92 = arith.addf %79, %83 : vector<256x128xf32>
    %93 = arith.addf %92, %87 : vector<256x128xf32>
    %94 = arith.addf %81, %85 : vector<256x128xf32>
    %95 = arith.addf %94, %89 : vector<256x128xf32>
    %c1_i32_62 = arith.constant 1 : i32
    %96 = tpu.dynamic_rotate %93 by %c1_i32_62 dim 0 : vector<256x128xf32>, i32 -> vector<256x128xf32>
    %97 = vector.broadcast %52 : vector<256x1xf32> to vector<256x128xf32>
    %98 = arith.mulf %97, %96 : vector<256x128xf32>
    %99 = arith.addf %91, %98 : vector<256x128xf32>
    %c255_i32 = arith.constant 255 : i32
    %100 = tpu.dynamic_rotate %95 by %c255_i32 dim 0 : vector<256x128xf32>, i32 -> vector<256x128xf32>
    %101 = vector.broadcast %57 : vector<256x1xf32> to vector<256x128xf32>
    %102 = arith.mulf %101, %100 : vector<256x128xf32>
    %103 = arith.addf %99, %102 : vector<256x128xf32>
    %cst_63 = arith.constant dense<0.000000e+00> : vector<256xf32>
    %104 = vector.multi_reduction <add>, %103, %cst_63 [1] : vector<256x128xf32> to vector<256xf32>
    %105 = vector.shape_cast %104 : vector<256xf32> to vector<256x1xf32>
    %cst_64 = arith.constant 1.280000e+02 : f32
    %106 = vector.broadcast %cst_64 : f32 to vector<256x1xf32>
    %107 = arith.divf %105, %106 : vector<256x1xf32>
    %108 = vector.broadcast %107 : vector<256x1xf32> to vector<256x128xf32>
    %109 = arith.subf %103, %108 : vector<256x128xf32>
    %110 = arith.mulf %109, %109 : vector<256x128xf32>
    %cst_65 = arith.constant dense<0.000000e+00> : vector<256xf32>
    %111 = vector.multi_reduction <add>, %110, %cst_65 [1] : vector<256x128xf32> to vector<256xf32>
    %112 = vector.shape_cast %111 : vector<256xf32> to vector<256x1xf32>
    %cst_66 = arith.constant 1.280000e+02 : f32
    %113 = vector.broadcast %cst_66 : f32 to vector<256x1xf32>
    %114 = arith.divf %112, %113 : vector<256x1xf32>
    %cst_67 = arith.constant 9.99999997E-7 : f32
    %115 = vector.broadcast %cst_67 : f32 to vector<256x1xf32>
    %116 = arith.addf %114, %115 : vector<256x1xf32>
    %117 = math.rsqrt %116 : vector<256x1xf32>
    %118 = vector.broadcast %117 : vector<256x1xf32> to vector<256x128xf32>
    %119 = arith.mulf %109, %118 : vector<256x128xf32>
    %120 = vector.broadcast %76 : vector<1x128xf32> to vector<256x128xf32>
    %121 = arith.mulf %119, %120 : vector<256x128xf32>
    %122 = vector.broadcast %77 : vector<1x128xf32> to vector<256x128xf32>
    %123 = arith.addf %121, %122 : vector<256x128xf32>
    %124 = tpu.transpose %123, [1, 0] : vector<256x128xf32> -> vector<128x256xf32>
    %c0_68 = arith.constant 0 : index
    %c0_69 = arith.constant 0 : index
    %c0_70 = arith.constant 0 : index
    %125 = vector.load %arg8[%c0_68, %c0_69, %c0_70] : memref<1x128x256xf32, #tpu.memory_space<vmem>>, vector<1x128x256xf32>
    %126 = vector.shape_cast %125 : vector<1x128x256xf32> to vector<128x256xf32>
    %127 = vector.shape_cast %124 : vector<128x256xf32> to vector<1x128x256xf32>
    tpu.vector_store %arg8[%c0_68, %c0_69, %c0_70], %127 {strides = array<i32>} : memref<1x128x256xf32, #tpu.memory_space<vmem>>, vector<1x128x256xf32>,
    return
  }
  func.func @transform_0(%arg0: i32) -> (i32, i32, i32) {
    %c0_i32 = arith.constant 0 : i32
    %c0_i32_0 = arith.constant 0 : i32
    %c0_i32_1 = arith.constant 0 : i32
    return %arg0, %c0_i32, %c0_i32_0 : i32, i32, i32
  }
  func.func @transform_1(%arg0: i32) -> (i32, i32) {
    %c0_i32 = arith.constant 0 : i32
    %c0_i32_0 = arith.constant 0 : i32
    %c0_i32_1 = arith.constant 0 : i32
    return %c0_i32, %c0_i32_0 : i32, i32
  }
  func.func @transform_2(%arg0: i32) -> (i32, i32) {
    %c0_i32 = arith.constant 0 : i32
    %c0_i32_0 = arith.constant 0 : i32
    %c0_i32_1 = arith.constant 0 : i32
    return %c0_i32, %c0_i32_0 : i32, i32
  }
  func.func @transform_3(%arg0: i32) -> (i32, i32) {
    %c0_i32 = arith.constant 0 : i32
    %c0_i32_0 = arith.constant 0 : i32
    %c0_i32_1 = arith.constant 0 : i32
    return %c0_i32, %c0_i32_0 : i32, i32
  }
  func.func @transform_4(%arg0: i32) -> (i32, i32, i32) {
    %c0_i32 = arith.constant 0 : i32
    %c0_i32_0 = arith.constant 0 : i32
    %c0_i32_1 = arith.constant 0 : i32
    %c0_i32_2 = arith.constant 0 : i32
    return %c0_i32, %c0_i32_0, %c0_i32_1 : i32, i32, i32
  }
  func.func @transform_5(%arg0: i32) -> (i32, i32) {
    %c0_i32 = arith.constant 0 : i32
    %c0_i32_0 = arith.constant 0 : i32
    %c0_i32_1 = arith.constant 0 : i32
    return %c0_i32, %c0_i32_0 : i32, i32
  }
  func.func @transform_6(%arg0: i32) -> (i32, i32) {
    %c0_i32 = arith.constant 0 : i32
    %c0_i32_0 = arith.constant 0 : i32
    %c0_i32_1 = arith.constant 0 : i32
    return %c0_i32, %c0_i32_0 : i32, i32
  }
  func.func @transform_7(%arg0: i32) -> (i32, i32, i32) {
    %c0_i32 = arith.constant 0 : i32
    %c0_i32_0 = arith.constant 0 : i32
    %c0_i32_1 = arith.constant 0 : i32
    return %arg0, %c0_i32, %c0_i32_0 : i32, i32, i32
  }
}

</mosaic_0001>

<llo_original>
// kernel: tpu_custom_call.1
$region0: #{tpu_custom_call.1}
  #allocation0 [shape = 'u32[]', space=smem, size = 0x4, offset = 0x4, fixed_abs, tag = 'smem constant byte address 0x4 - core index']
  #allocation1 [shape = 'u32[144,128]{1,0:T(1,128)}', space=vmem, size = 0x12000, scoped, tag = 'internal scratch']
  #allocation2 [shape = 'bf16[320,128]{1,0:T(16,128)(2,1)}', space=vmem, size = 0x14000, scoped, tag = 'scratch operand']
  %s0 = inlined_call_operand.vmem [shape: bf16[2,256,32], index: 0, kind: input, shape index: {}]
  %s1 = inlined_call_operand.vmem [shape: bf16[32,128], index: 1, kind: input, shape index: {}]
  %s2 = inlined_call_operand.vmem [shape: f32[1,128], index: 2, kind: input, shape index: {}]
  %s3 = inlined_call_operand.vmem [shape: f32[1,128], index: 3, kind: input, shape index: {}]
  %s4 = inlined_call_operand.hbm [shape: bf16[9,128,128], index: 4, kind: input, shape index: {}]
  %s5 = inlined_call_operand.vmem [shape: f32[1,128], index: 5, kind: input, shape index: {}]
  %s6 = inlined_call_operand.vmem [shape: f32[1,128], index: 6, kind: input, shape index: {}]
  %s7 = inlined_call_operand.hbm [shape: f32[2,128,256], index: 7, kind: output, shape index: {}]
  %s8 = sld [smem:[#allocation0]]
  $region65: #{tpu_custom_call.1} parent=0
    _
  %s10 = ssub.s32 1, %s8
  %s11 = scalar_select 0, %s10, %s8
  $region1: #{tpu_custom_call.1} parent=0
    #allocation3 [shape = 'u8[294912]{0}', space=vmem, size = 0x48000, scoped, tag = 'input window, operand 4, single buffered']
    #allocation4 [shape = 's32[2]{0}', space=sflag, size = 0x8, scoped, tag = 'scoped memory for tpu_custom_call.1']
    #allocation5 [shape = 's32[2]{0}', space=sflag, size = 0x8, scoped, tag = 'scoped memory for tpu_custom_call.1']
    #allocation6 [shape = 'u8[262144]{0}', space=vmem, size = 0x40000, scoped, tag = 'output window, operand 0']
    %12 = vsyncpa [#allocation4], 0
    %13 = vsyncpa [#allocation5], 0
    %s14 = scalar_lea.sflag [#allocation5], 1
    %15 = vsyncpa %s14, 0
    loop: start=0, step=1, limit=4
    $region2: #{tpu_custom_call.1} parent=1 // loop_pre_header
      _
    $region3: #{tpu_custom_call.1} parent=1 // loop_header
      %s17 = sphi 0, %s21
      %p18 = scmp.ge.s32.totalorder %s17, 4
      %s27 = sphi 0, %s29
      %s30 = sphi 0, %s27
      %s31 = sphi 0, %s30
      %s47 = sphi 0, %s31
      %s51 = sphi 0, %s51
      %s53 = sphi 0, %s51
      %s54 = sphi 0, %s53
      %s68 = sphi 0, %s54
      %s72 = sphi 0, %s72
      %s74 = sphi 0, %s72
      %s75 = sphi 0, %s74
      %s89 = sphi 0, %s75
      %s93 = sphi 0, %s93
      %s95 = sphi 0, %s93
      %s96 = sphi 0, %s95
      %s110 = sphi 0, %s96
      %s114 = sphi 0, %s114
      %s116 = sphi 0, %s114
      %s117 = sphi 0, %s116
      %s131 = sphi 0, %s117
      %s135 = sphi 0, %s135
      %s137 = sphi 0, %s135
      %s138 = sphi 0, %s137
      %s152 = sphi 0, %s138
      %s156 = sphi 0, %s156
      %s158 = sphi 0, %s156
      %s159 = sphi 0, %s158
      %s173 = sphi 0, %s159
      %s179 = sphi 0, %s181
      %s182 = sphi 0, %s179
      %s183 = sphi 0, %s182
      %s199 = sphi 0, %s183
    $region4: #{tpu_custom_call.1} parent=1 // loop_header_branch
      %20 = sbr.rel (%p18) target = $region8
    $region5: #{tpu_custom_call.1} parent=1 // loop_body
      %s22 = ssub.s32 %s17, 1
      %s23 = ssub.s32 %s17, 2
      %s24 = sadd.s32 %s17, 1
      %s25 = ssub.s32 %s17, %s24
      %p26 = scmp.eq.s32.totalorder %s25, 0
      %s28 = sadd.s32 %s27, 1
      %s29 = scalar_select %p26, %s27, %s28
      %p32 = pneg %p26
      %p33 = scmp.eq.s32.totalorder %s17, 1
      %p34 = por %p32, %p33
      %p35 = scmp.ne.s32.totalorder %s27, %s30
      %p36 = scmp.eq.s32.totalorder %s17, 0
      %p37 = por %p35, %p36
      %p38 = scmp.ne.s32.totalorder %s27, %s30
      %p39 = scmp.eq.s32.totalorder %s22, 1
      %p40 = por %p38, %p39
      %p41 = scmp.ne.s32.totalorder %s30, %s31
      %p42 = scmp.eq.s32.totalorder %s22, 0
      %p43 = por %p41, %p42
      %p44 = scmp.ne.s32.totalorder %s30, %s31
      %p45 = scmp.eq.s32.totalorder %s23, 1
      %p46 = por %p44, %p45
      %p48 = scmp.ne.s32.totalorder %s31, %s47
      %p49 = scmp.eq.s32.totalorder %s23, 0
      %p50 = por %p48, %p49
      %s52 = sadd.s32 %s51, 1
      %p55 = scmp.eq.s32.totalorder %s17, 1
      %p56 = scmp.ne.s32.totalorder %s51, %s53
      %p57 = scmp.eq.s32.totalorder %s17, 0
      %p58 = por %p56, %p57
      %p59 = scmp.ne.s32.totalorder %s51, %s53
      %p60 = scmp.eq.s32.totalorder %s22, 1
      %p61 = por %p59, %p60
      %p62 = scmp.ne.s32.totalorder %s53, %s54
      %p63 = scmp.eq.s32.totalorder %s22, 0
      %p64 = por %p62, %p63
      %p65 = scmp.ne.s32.totalorder %s53, %s54
      %p66 = scmp.eq.s32.totalorder %s23, 1
      %p67 = por %p65, %p66
      %p69 = scmp.ne.s32.totalorder %s54, %s68
      %p70 = scmp.eq.s32.totalorder %s23, 0
      %p71 = por %p69, %p70
      %s73 = sadd.s32 %s72, 1
      %p76 = scmp.eq.s32.totalorder %s17, 1
      %p77 = scmp.ne.s32.totalorder %s72, %s74
      %p78 = scmp.eq.s32.totalorder %s17, 0
      %p79 = por %p77, %p78
      %p80 = scmp.ne.s32.totalorder %s72, %s74
      %p81 = scmp.eq.s32.totalorder %s22, 1
      %p82 = por %p80, %p81
      %p83 = scmp.ne.s32.totalorder %s74, %s75
      %p84 = scmp.eq.s32.totalorder %s22, 0
      %p85 = por %p83, %p84
      %p86 = scmp.ne.s32.totalorder %s74, %s75
      %p87 = scmp.eq.s32.totalorder %s23, 1
      %p88 = por %p86, %p87
      %p90 = scmp.ne.s32.totalorder %s75, %s89
      %p91 = scmp.eq.s32.totalorder %s23, 0
      %p92 = por %p90, %p91
      %s94 = sadd.s32 %s93, 1
      %p97 = scmp.eq.s32.totalorder %s17, 1
      %p98 = scmp.ne.s32.totalorder %s93, %s95
      %p99 = scmp.eq.s32.totalorder %s17, 0
      %p100 = por %p98, %p99
      %p101 = scmp.ne.s32.totalorder %s93, %s95
      %p102 = scmp.eq.s32.totalorder %s22, 1
      %p103 = por %p101, %p102
      %p104 = scmp.ne.s32.totalorder %s95, %s96
      %p105 = scmp.eq.s32.totalorder %s22, 0
      %p106 = por %p104, %p105
      %p107 = scmp.ne.s32.totalorder %s95, %s96
      %p108 = scmp.eq.s32.totalorder %s23, 1
      %p109 = por %p107, %p108
      %p111 = scmp.ne.s32.totalorder %s96, %s110
      %p112 = scmp.eq.s32.totalorder %s23, 0
      %p113 = por %p111, %p112
      %s115 = sadd.s32 %s114, 1
      %p118 = scmp.eq.s32.totalorder %s17, 1
      %p119 = scmp.ne.s32.totalorder %s114, %s116
      %p120 = scmp.eq.s32.totalorder %s17, 0
      %p121 = por %p119, %p120
      %p122 = scmp.ne.s32.totalorder %s114, %s116
      %p123 = scmp.eq.s32.totalorder %s22, 1
      %p124 = por %p122, %p123
      %p125 = scmp.ne.s32.totalorder %s116, %s117
      %p126 = scmp.eq.s32.totalorder %s22, 0
      %p127 = por %p125, %p126
      %p128 = scmp.ne.s32.totalorder %s116, %s117
      %p129 = scmp.eq.s32.totalorder %s23, 1
      %p130 = por %p128, %p129
      %p132 = scmp.ne.s32.totalorder %s117, %s131
      %p133 = scmp.eq.s32.totalorder %s23, 0
      %p134 = por %p132, %p133
      %s136 = sadd.s32 %s135, 1
      %p139 = scmp.eq.s32.totalorder %s17, 1
      %p140 = scmp.ne.s32.totalorder %s135, %s137
      %p141 = scmp.eq.s32.totalorder %s17, 0
      %p142 = por %p140, %p141
      %p143 = scmp.ne.s32.totalorder %s135, %s137
      %p144 = scmp.eq.s32.totalorder %s22, 1
      %p145 = por %p143, %p144
      %p146 = scmp.ne.s32.totalorder %s137, %s138
      %p147 = scmp.eq.s32.totalorder %s22, 0
      %p148 = por %p146, %p147
      %p149 = scmp.ne.s32.totalorder %s137, %s138
      %p150 = scmp.eq.s32.totalorder %s23, 1
      %p151 = por %p149, %p150
      %p153 = scmp.ne.s32.totalorder %s138, %s152
      %p154 = scmp.eq.s32.totalorder %s23, 0
      %p155 = por %p153, %p154
      %s157 = sadd.s32 %s156, 1
      %p160 = scmp.eq.s32.totalorder %s17, 1
      %p161 = scmp.ne.s32.totalorder %s156, %s158
      %p162 = scmp.eq.s32.totalorder %s17, 0
      %p163 = por %p161, %p162
      %p164 = scmp.ne.s32.totalorder %s156, %s158
      %p165 = scmp.eq.s32.totalorder %s22, 1
      %p166 = por %p164, %p165
      %p167 = scmp.ne.s32.totalorder %s158, %s159
      %p168 = scmp.eq.s32.totalorder %s22, 0
      %p169 = por %p167, %p168
      %p170 = scmp.ne.s32.totalorder %s158, %s159
      %p171 = scmp.eq.s32.totalorder %s23, 1
      %p172 = por %p170, %p171
      %p174 = scmp.ne.s32.totalorder %s159, %s173
      %p175 = scmp.eq.s32.totalorder %s23, 0
      %p176 = por %p174, %p175
      %s177 = ssub.s32 %s17, %s24
      %p178 = scmp.eq.s32.totalorder %s177, 0
      %s180 = sadd.s32 %s179, 1
      %s181 = scalar_select %p178, %s179, %s180
      %p184 = pneg %p178
      %p185 = scmp.eq.s32.totalorder %s17, 1
      %p186 = por %p184, %p185
      %p187 = scmp.ne.s32.totalorder %s179, %s182
      %p188 = scmp.eq.s32.totalorder %s17, 0
      %p189 = por %p187, %p188
      %p190 = scmp.ne.s32.totalorder %s179, %s182
      %p191 = scmp.eq.s32.totalorder %s22, 1
      %p192 = por %p190, %p191
      %p193 = scmp.ne.s32.totalorder %s182, %s183
      %p194 = scmp.eq.s32.totalorder %s22, 0
      %p195 = por %p193, %p194
      %p196 = scmp.ne.s32.totalorder %s182, %s183
      %p197 = scmp.eq.s32.totalorder %s23, 1
      %p198 = por %p196, %p197
      %p200 = scmp.ne.s32.totalorder %s183, %s199
      %p201 = scmp.eq.s32.totalorder %s23, 0
      %p202 = por %p200, %p201
      %p203 = scmp.le.s32.totalorder 1, %s17
      %p204 = scmp.lt.s32.totalorder %s17, 3
      %p205 = pnand %p203, %p204
      %p206 = pneg %p205
      // Predicated region
      $region9: #{tpu_custom_call.1} parent=5 // pred_check
        _
      $region10: #{tpu_custom_call.1} parent=5 // pred_check_branch
        %208 = sbr.rel (%p205) target = $region12
      $region11: #{tpu_custom_call.1} parent=5 // pred_region
        %s209 = ssub.s32 %s17, 1
        // Predicated region
        $region13: #{tpu_custom_call.1} parent=11 // pred_check
          %p210 = pneg %p64
        $region14: #{tpu_custom_call.1} parent=11 // pred_check_branch
          %212 = sbr.rel (%p210) target = $region16
        $region15: #{tpu_custom_call.1} parent=11 // pred_region
          _
        $region16: #{tpu_custom_call.1} parent=11 // pred_fallthru
          _
        // Predicated region
        $region17: #{tpu_custom_call.1} parent=11 // pred_check
          %p213 = pneg %p85
        $region18: #{tpu_custom_call.1} parent=11 // pred_check_branch
          %215 = sbr.rel (%p213) target = $region20
        $region19: #{tpu_custom_call.1} parent=11 // pred_region
          _
        $region20: #{tpu_custom_call.1} parent=11 // pred_fallthru
          _
        // Predicated region
        $region21: #{tpu_custom_call.1} parent=11 // pred_check
          %p216 = pneg %p106
        $region22: #{tpu_custom_call.1} parent=11 // pred_check_branch
          %218 = sbr.rel (%p216) target = $region24
        $region23: #{tpu_custom_call.1} parent=11 // pred_region
          _
        $region24: #{tpu_custom_call.1} parent=11 // pred_fallthru
          _
        // Predicated region
        $region25: #{tpu_custom_call.1} parent=11 // pred_check
          %p219 = pneg %p127
        $region26: #{tpu_custom_call.1} parent=11 // pred_check_branch
          %221 = sbr.rel (%p219) target = $region28
        $region27: #{tpu_custom_call.1} parent=11 // pred_region
          %s223 = ssub.s32 9216, 9216
          %224 = vsyncadd [#allocation4], %s223
          %s225 = sshll.u32 [#allocation3], 4
          %s226 = int_to_ptr.vmem [resolvable:$true] %s225
          %231 = dma.hbm_to_vmem [thread:$0]  %s4, 9216, %s226, [#allocation4], 64, 64, 4
        $region28: #{tpu_custom_call.1} parent=11 // pred_fallthru
          _
        // Predicated region
        $region29: #{tpu_custom_call.1} parent=11 // pred_check
          %p232 = pneg %p148
        $region30: #{tpu_custom_call.1} parent=11 // pred_check_branch
          %234 = sbr.rel (%p232) target = $region32
        $region31: #{tpu_custom_call.1} parent=11 // pred_region
          _
        $region32: #{tpu_custom_call.1} parent=11 // pred_fallthru
          _
        // Predicated region
        $region33: #{tpu_custom_call.1} parent=11 // pred_check
          %p235 = pneg %p169
        $region34: #{tpu_custom_call.1} parent=11 // pred_check_branch
          %237 = sbr.rel (%p235) target = $region36
        $region35: #{tpu_custom_call.1} parent=11 // pred_region
          _
        $region36: #{tpu_custom_call.1} parent=11 // pred_fallthru
          _
      $region12: #{tpu_custom_call.1} parent=5 // pred_fallthru
        _
      %p238 = scmp.lt.s32.totalorder %s17, 2
      // Predicated region
      $region37: #{tpu_custom_call.1} parent=5 // pred_check
        %p239 = pneg %p238
      $region38: #{tpu_custom_call.1} parent=5 // pred_check_branch
        %241 = sbr.rel (%p239) target = $region40
      $region39: #{tpu_custom_call.1} parent=5 // pred_region
        // Predicated region
        $region41: #{tpu_custom_call.1} parent=39 // pred_check
          %p242 = pneg %p37
        $region42: #{tpu_custom_call.1} parent=39 // pred_check_branch
          %244 = sbr.rel (%p242) target = $region44
        $region43: #{tpu_custom_call.1} parent=39 // pred_region
          %p245 = scmp.lt.s32.totalorder %s17, 1
          %s246 = scalar_select %p245, %s17, 1
          %s247 = smul.addr %s246, 32
          %s248 = smul.addr %s247, 4
          %s249 = scalar_lea.vmem %s0, %s248
        $region44: #{tpu_custom_call.1} parent=39 // pred_fallthru
          _
      $region40: #{tpu_custom_call.1} parent=5 // pred_fallthru
        _
      %p250 = scmp.le.s32.totalorder 1, %s17
      %p251 = scmp.lt.s32.totalorder %s17, 3
      %p252 = pnand %p250, %p251
      %p253 = pneg %p252
      // Predicated region
      $region45: #{tpu_custom_call.1} parent=5 // pred_check
        _
      $region46: #{tpu_custom_call.1} parent=5 // pred_check_branch
        %255 = sbr.rel (%p252) target = $region48
      $region47: #{tpu_custom_call.1} parent=5 // pred_region
        %s256 = ssub.s32 %s17, 1
        // Predicated region
        $region49: #{tpu_custom_call.1} parent=47 // pred_check
          %p257 = pneg %p127
        $region50: #{tpu_custom_call.1} parent=47 // pred_check_branch
          %259 = sbr.rel (%p257) target = $region52
        $region51: #{tpu_custom_call.1} parent=47 // pred_region
          %260 = dma.done [#allocation4], 9216
        $region52: #{tpu_custom_call.1} parent=47 // pred_fallthru
          _
        %p261 = scmp.lt.s32.totalorder %s22, 1
        %s262 = scalar_select %p261, %s22, 1
        %s263 = smul.addr %s262, 32
        %s264 = smul.addr %s263, 4
        %s265 = scalar_lea.vmem %s0, %s264
        %p266 = pneg %p43
        %p267 = pneg %p40
        %p268 = pneg %p64
        %p269 = pneg %p61
        %p270 = pneg %p85
        %p271 = pneg %p82
        %p272 = pneg %p106
        %p273 = pneg %p103
        %p274 = pneg %p127
        %p275 = pneg %p124
        %p276 = pneg %p148
        %p277 = pneg %p145
        %p278 = pneg %p169
        %p279 = pneg %p166
        %p280 = pneg %p195
        %p281 = pneg %p192
        %s282 = sand.u32 %s182, 1
        %s283 = scalar_lea.sflag [#allocation5], %s282
        %s284 = sand.u32 %s182, 1
        %s285 = smul.addr %s284, 256
        %s286 = scalar_lea.vmem [#allocation6], %s285
        %p287 = scmp.lt.s32.totalorder %s22, 1
        %s288 = scalar_select %p287, %s22, 1
        %s289 = smul.addr %s288, 32
        %s290 = smul.addr %s289, 4
        %s291 = scalar_lea.vmem %s0, %s290
        %293 = vst [vmem:[#allocation2] sm:$0xff] 0
        %294 = vst [vmem:[#allocation2 + $0x8] sm:$0xff] 0
        %295 = vst [vmem:[#allocation2 + $0x90] sm:$0xff] 0
        %296 = vst [vmem:[#allocation2 + $0x98] sm:$0xff] 0
        %v297 = vld [vmem:[%s1] sm:$0xf]
        %v298 = vld [vmem:[%s1 + $0x4] sm:$0xf]
        %v299 = vld [vmem:[%s1 + $0x8] sm:$0xf]
        %v300 = vld [vmem:[%s1 + $0xc] sm:$0xf]
        %v301 = vld [vmem:[%s2] sm:$0x1]
        %v302 = vld [vmem:[%s3] sm:$0x1]
        %v303 = vld [vmem:[%s291] sm:$0xf]
        %v304 = vld [vmem:[%s291 + $0x4] sm:$0xf]
        %v305 = vld [vmem:[%s291 + $0x8] sm:$0xf]
        %v306 = vld [vmem:[%s291 + $0xc] sm:$0xf]
        %v307 = vld [vmem:[%s291 + $0x10] sm:$0xf]
        %v308 = vld [vmem:[%s291 + $0x14] sm:$0xf]
        %v309 = vld [vmem:[%s291 + $0x18] sm:$0xf]
        %v310 = vld [vmem:[%s291 + $0x1c] sm:$0xf]
        %v311 = vld [vmem:[%s291 + $0x20] sm:$0xf]
        %v312 = vld [vmem:[%s291 + $0x24] sm:$0xf]
        %v313 = vld [vmem:[%s291 + $0x28] sm:$0xf]
        %v314 = vld [vmem:[%s291 + $0x2c] sm:$0xf]
        %v315 = vld [vmem:[%s291 + $0x30] sm:$0xf]
        %v316 = vld [vmem:[%s291 + $0x34] sm:$0xf]
        %v317 = vld [vmem:[%s291 + $0x38] sm:$0xf]
        %v318 = vld [vmem:[%s291 + $0x3c] sm:$0xf]
        %v319 = vld [vmem:[%s291 + $0x40] sm:$0xf]
        %v320 = vld [vmem:[%s291 + $0x44] sm:$0xf]
        %v321 = vld [vmem:[%s291 + $0x48] sm:$0xf]
        %v322 = vld [vmem:[%s291 + $0x4c] sm:$0xf]
        %v323 = vld [vmem:[%s291 + $0x50] sm:$0xf]
        %v324 = vld [vmem:[%s291 + $0x54] sm:$0xf]
        %v325 = vld [vmem:[%s291 + $0x58] sm:$0xf]
        %v326 = vld [vmem:[%s291 + $0x5c] sm:$0xf]
        %v327 = vld [vmem:[%s291 + $0x60] sm:$0xf]
        %v328 = vld [vmem:[%s291 + $0x64] sm:$0xf]
        %v329 = vld [vmem:[%s291 + $0x68] sm:$0xf]
        %v330 = vld [vmem:[%s291 + $0x6c] sm:$0xf]
        %v331 = vld [vmem:[%s291 + $0x70] sm:$0xf]
        %v332 = vld [vmem:[%s291 + $0x74] sm:$0xf]
        %v333 = vld [vmem:[%s291 + $0x78] sm:$0xf]
        %v334 = vld [vmem:[%s291 + $0x7c] sm:$0xf]
        %v367 = vunpack.c.l.b16 %v303
        %v368 = vunpack.c.l.b16 %v304
        %v369 = vunpack.c.l.b16 %v305
        %v370 = vunpack.c.l.b16 %v306
        %v371 = vunpack.c.l.b16 %v307
        %v372 = vunpack.c.l.b16 %v308
        %v373 = vunpack.c.l.b16 %v309
        %v374 = vunpack.c.l.b16 %v310
        %v375 = vunpack.c.l.b16 %v311
        %v376 = vunpack.c.l.b16 %v312
        %v377 = vunpack.c.l.b16 %v313
        %v378 = vunpack.c.l.b16 %v314
        %v379 = vunpack.c.l.b16 %v315
        %v380 = vunpack.c.l.b16 %v316
        %v381 = vunpack.c.l.b16 %v317
        %v382 = vunpack.c.l.b16 %v318
        %v383 = vunpack.c.l.b16 %v319
        %v384 = vunpack.c.l.b16 %v320
        %v385 = vunpack.c.l.b16 %v321
        %v386 = vunpack.c.l.b16 %v322
        %v387 = vunpack.c.l.b16 %v323
        %v388 = vunpack.c.l.b16 %v324
        %v389 = vunpack.c.l.b16 %v325
        %v390 = vunpack.c.l.b16 %v326
        %v391 = vunpack.c.l.b16 %v327
        %v392 = vunpack.c.l.b16 %v328
        %v393 = vunpack.c.l.b16 %v329
        %v394 = vunpack.c.l.b16 %v330
        %v395 = vunpack.c.l.b16 %v331
        %v396 = vunpack.c.l.b16 %v332
        %v397 = vunpack.c.l.b16 %v333
        %v398 = vunpack.c.l.b16 %v334
        %v399 = vpack.c.b16 %v368, %v367
        %v400 = vpack.c.b16 %v370, %v369
        %v401 = vpack.c.b16 %v372, %v371
        %v402 = vpack.c.b16 %v374, %v373
        %v403 = vpack.c.b16 %v376, %v375
        %v404 = vpack.c.b16 %v378, %v377
        %v405 = vpack.c.b16 %v380, %v379
        %v406 = vpack.c.b16 %v382, %v381
        %v407 = vpack.c.b16 %v384, %v383
        %v408 = vpack.c.b16 %v386, %v385
        %v409 = vpack.c.b16 %v388, %v387
        %v410 = vpack.c.b16 %v390, %v389
        %v411 = vpack.c.b16 %v392, %v391
        %v412 = vpack.c.b16 %v394, %v393
        %v413 = vpack.c.b16 %v396, %v395
        %v414 = vpack.c.b16 %v398, %v397
        %v419 = vunpack.c.l.b16 %v297
        %v420 = vunpack.c.l.b16 %v298
        %v421 = vunpack.c.l.b16 %v299
        %v422 = vunpack.c.l.b16 %v300
        %v423 = vpack.c.b16 %v420, %v419
        %v424 = vpack.c.b16 %v422, %v421
        %vm427 = vcmask 261120
        %v429 = vsel %vm427, %v399, 0
        %v432 = vsel %vm427, %v400, 0
        %v435 = vsel %vm427, %v401, 0
        %v438 = vsel %vm427, %v402, 0
        %v441 = vsel %vm427, %v403, 0
        %v444 = vsel %vm427, %v404, 0
        %v447 = vsel %vm427, %v405, 0
        %v450 = vsel %vm427, %v406, 0
        %v453 = vsel %vm427, %v407, 0
        %v456 = vsel %vm427, %v408, 0
        %v459 = vsel %vm427, %v409, 0
        %v462 = vsel %vm427, %v410, 0
        %v465 = vsel %vm427, %v411, 0
        %v468 = vsel %vm427, %v412, 0
        %v471 = vsel %vm427, %v413, 0
        %v474 = vsel %vm427, %v414, 0
        %476 = vmatprep.subr.bf16.mxu0 0
        %477 = vmatpush1.bf16.msra.mxu0 %v423
        %478 = vmatprep.subr.bf16.mxu0 0
        %479 = vmatpush1.bf16.msra.mxu0 %v424
        %480 = vmatprep.subr.bf16.mxu0 0
        %481 = vmatpush1.bf16.msra.mxu0 0
        %482 = vmatprep.subr.bf16.mxu0 0
        %483 = vmatpush1.bf16.msra.mxu0 0
        %484 = vmatprep.subr.bf16.mxu0 0
        %485 = vmatpush1.bf16.msra.mxu0 0
        %486 = vmatprep.subr.bf16.mxu0 0
        %487 = vmatpush1.bf16.msra.mxu0 0
        %488 = vmatprep.subr.bf16.mxu0 0
        %489 = vmatpush1.bf16.msra.mxu0 0
        %490 = vmatprep.subr.bf16.mxu0 0
        %491 = vmatpush1.bf16.msra.mxu0 0
        %492 = vmatprep.subr.bf16.mxu0 0
        %493 = vmatpush1.bf16.msra.mxu0 0
        %494 = vmatprep.subr.bf16.mxu0 0
        %495 = vmatpush1.bf16.msra.mxu0 0
        %496 = vmatprep.subr.bf16.mxu0 0
        %497 = vmatpush1.bf16.msra.mxu0 0
        %498 = vmatprep.subr.bf16.mxu0 0
        %499 = vmatpush1.bf16.msra.mxu0 0
        %500 = vmatprep.subr.bf16.mxu0 0
        %501 = vmatpush1.bf16.msra.mxu0 0
        %502 = vmatprep.subr.bf16.mxu0 0
        %503 = vmatpush1.bf16.msra.mxu0 0
        %504 = vmatprep.subr.bf16.mxu0 0
        %505 = vmatpush1.bf16.msra.mxu0 0
        %506 = vmatprep.subr.bf16.mxu0 0
        %507 = vmatpush1.bf16.msra.mxu0 0
        %508 = vmatprep.mubr.bf16.mxu0 0
        %509 = vmatmul.mubr.bf16.gmra.mrb[0].mxu0 %v429
        %v510 = vpop.f32.mrb[0].mxu0
        %v511 = vadd.f32 0.0, %v510
        %v512 = vpop.f32.mrb[0].mxu0
        %v513 = vpop.f32.mrb[0].mxu0
        %v514 = vadd.f32 0.0, %v513
        %v515 = vpop.f32.mrb[0].mxu0
        %516 = vmatprep.mubr.bf16.mxu0 0
        %517 = vmatmul.mubr.bf16.gmra.mrb[0].mxu0 %v432
        %v518 = vpop.f32.mrb[0].mxu0
        %v519 = vadd.f32 0.0, %v518
        %v520 = vpop.f32.mrb[0].mxu0
        %v521 = vpop.f32.mrb[0].mxu0
        %v522 = vadd.f32 0.0, %v521
        %v523 = vpop.f32.mrb[0].mxu0
        %524 = vmatprep.mubr.bf16.mxu0 0
        %525 = vmatmul.mubr.bf16.gmra.mrb[0].mxu0 %v435
        %v526 = vpop.f32.mrb[0].mxu0
        %v527 = vadd.f32 0.0, %v526
        %v528 = vpop.f32.mrb[0].mxu0
        %v529 = vpop.f32.mrb[0].mxu0
        %v530 = vadd.f32 0.0, %v529
        %v531 = vpop.f32.mrb[0].mxu0
        %532 = vmatprep.mubr.bf16.mxu0 0
        %533 = vmatmul.mubr.bf16.gmra.mrb[0].mxu0 %v438
        %v534 = vpop.f32.mrb[0].mxu0
        %v535 = vadd.f32 0.0, %v534
        %v536 = vpop.f32.mrb[0].mxu0
        %v537 = vpop.f32.mrb[0].mxu0
        %v538 = vadd.f32 0.0, %v537
        %v539 = vpop.f32.mrb[0].mxu0
        %540 = vmatprep.mubr.bf16.mxu0 0
        %541 = vmatmul.mubr.bf16.gmra.mrb[0].mxu0 %v441
        %v542 = vpop.f32.mrb[0].mxu0
        %v543 = vadd.f32 0.0, %v542
        %v544 = vpop.f32.mrb[0].mxu0
        %v545 = vpop.f32.mrb[0].mxu0
        %v546 = vadd.f32 0.0, %v545
        %v547 = vpop.f32.mrb[0].mxu0
        %548 = vmatprep.mubr.bf16.mxu0 0
        %549 = vmatmul.mubr.bf16.gmra.mrb[0].mxu0 %v444
        %v550 = vpop.f32.mrb[0].mxu0
        %v551 = vadd.f32 0.0, %v550
        %v552 = vpop.f32.mrb[0].mxu0
        %v553 = vpop.f32.mrb[0].mxu0
        %v554 = vadd.f32 0.0, %v553
        %v555 = vpop.f32.mrb[0].mxu0
        %556 = vmatprep.mubr.bf16.mxu0 0
        %557 = vmatmul.mubr.bf16.gmra.mrb[0].mxu0 %v447
        %v558 = vpop.f32.mrb[0].mxu0
        %v559 = vadd.f32 0.0, %v558
        %v560 = vpop.f32.mrb[0].mxu0
        %v561 = vpop.f32.mrb[0].mxu0
        %v562 = vadd.f32 0.0, %v561
        %v563 = vpop.f32.mrb[0].mxu0
        %564 = vmatprep.mubr.bf16.mxu0 0
        %565 = vmatmul.mubr.bf16.gmra.mrb[0].mxu0 %v450
        %v566 = vpop.f32.mrb[0].mxu0
        %v567 = vadd.f32 0.0, %v566
        %v568 = vpop.f32.mrb[0].mxu0
        %v569 = vpop.f32.mrb[0].mxu0
        %v570 = vadd.f32 0.0, %v569
        %v571 = vpop.f32.mrb[0].mxu0
        %572 = vmatprep.mubr.bf16.mxu0 0
        %573 = vmatmul.mubr.bf16.gmra.mrb[0].mxu0 %v453
        %v574 = vpop.f32.mrb[0].mxu0
        %v575 = vadd.f32 0.0, %v574
        %v576 = vpop.f32.mrb[0].mxu0
        %v577 = vpop.f32.mrb[0].mxu0
        %v578 = vadd.f32 0.0, %v577
        %v579 = vpop.f32.mrb[0].mxu0
        %580 = vmatprep.mubr.bf16.mxu0 0
        %581 = vmatmul.mubr.bf16.gmra.mrb[0].mxu0 %v456
        %v582 = vpop.f32.mrb[0].mxu0
        %v583 = vadd.f32 0.0, %v582
        %v584 = vpop.f32.mrb[0].mxu0
        %v585 = vpop.f32.mrb[0].mxu0
        %v586 = vadd.f32 0.0, %v585
        %v587 = vpop.f32.mrb[0].mxu0
        %588 = vmatprep.mubr.bf16.mxu0 0
        %589 = vmatmul.mubr.bf16.gmra.mrb[0].mxu0 %v459
        %v590 = vpop.f32.mrb[0].mxu0
        %v591 = vadd.f32 0.0, %v590
        %v592 = vpop.f32.mrb[0].mxu0
        %v593 = vpop.f32.mrb[0].mxu0
        %v594 = vadd.f32 0.0, %v593
        %v595 = vpop.f32.mrb[0].mxu0
        %596 = vmatprep.mubr.bf16.mxu0 0
        %597 = vmatmul.mubr.bf16.gmra.mrb[0].mxu0 %v462
        %v598 = vpop.f32.mrb[0].mxu0
        %v599 = vadd.f32 0.0, %v598
        %v600 = vpop.f32.mrb[0].mxu0
        %v601 = vpop.f32.mrb[0].mxu0
        %v602 = vadd.f32 0.0, %v601
        %v603 = vpop.f32.mrb[0].mxu0
        %604 = vmatprep.mubr.bf16.mxu0 0
        %605 = vmatmul.mubr.bf16.gmra.mrb[0].mxu0 %v465
        %v606 = vpop.f32.mrb[0].mxu0
        %v607 = vadd.f32 0.0, %v606
        %v608 = vpop.f32.mrb[0].mxu0
        %v609 = vpop.f32.mrb[0].mxu0
        %v610 = vadd.f32 0.0, %v609
        %v611 = vpop.f32.mrb[0].mxu0
        %612 = vmatprep.mubr.bf16.mxu0 0
        %613 = vmatmul.mubr.bf16.gmra.mrb[0].mxu0 %v468
        %v614 = vpop.f32.mrb[0].mxu0
        %v615 = vadd.f32 0.0, %v614
        %v616 = vpop.f32.mrb[0].mxu0
        %v617 = vpop.f32.mrb[0].mxu0
        %v618 = vadd.f32 0.0, %v617
        %v619 = vpop.f32.mrb[0].mxu0
        %620 = vmatprep.mubr.bf16.mxu0 0
        %621 = vmatmul.mubr.bf16.gmra.mrb[0].mxu0 %v471
        %v622 = vpop.f32.mrb[0].mxu0
        %v623 = vadd.f32 0.0, %v622
        %v624 = vpop.f32.mrb[0].mxu0
        %v625 = vpop.f32.mrb[0].mxu0
        %v626 = vadd.f32 0.0, %v625
        %v627 = vpop.f32.mrb[0].mxu0
        %628 = vmatprep.mubr.bf16.mxu0 0
        %629 = vmatmul.mubr.bf16.gmra.mrb[0].mxu0 %v474
        %v630 = vpop.f32.mrb[0].mxu0
        %v631 = vadd.f32 0.0, %v630
        %v632 = vpop.f32.mrb[0].mxu0
        %v633 = vpop.f32.mrb[0].mxu0
        %v634 = vadd.f32 0.0, %v633
        %v635 = vpop.f32.mrb[0].mxu0
        %636 = vdwg.mxu0
        %637 = vadd.xlane.f32.xlu0 %v511
        %v638 = vpop.xlane.xlu0 %637
        %639 = vadd.xlane.f32.xlu0 %v514
        %v640 = vpop.xlane.xlu0 %639
        %641 = vadd.xlane.f32.xlu0 %v519
        %v642 = vpop.xlane.xlu0 %641
        %643 = vadd.xlane.f32.xlu0 %v522
        %v644 = vpop.xlane.xlu0 %643
        %645 = vadd.xlane.f32.xlu0 %v527
        %v646 = vpop.xlane.xlu0 %645
        %647 = vadd.xlane.f32.xlu0 %v530
        %v648 = vpop.xlane.xlu0 %647
        %649 = vadd.xlane.f32.xlu0 %v535
        %v650 = vpop.xlane.xlu0 %649
        %651 = vadd.xlane.f32.xlu0 %v538
        %v652 = vpop.xlane.xlu0 %651
        %653 = vadd.xlane.f32.xlu0 %v543
        %v654 = vpop.xlane.xlu0 %653
        %655 = vadd.xlane.f32.xlu0 %v546
        %v656 = vpop.xlane.xlu0 %655
        %657 = vadd.xlane.f32.xlu0 %v551
        %v658 = vpop.xlane.xlu0 %657
        %659 = vadd.xlane.f32.xlu0 %v554
        %v660 = vpop.xlane.xlu0 %659
        %661 = vadd.xlane.f32.xlu0 %v559
        %v662 = vpop.xlane.xlu0 %661
        %663 = vadd.xlane.f32.xlu0 %v562
        %v664 = vpop.xlane.xlu0 %663
        %665 = vadd.xlane.f32.xlu0 %v567
        %v666 = vpop.xlane.xlu0 %665
        %667 = vadd.xlane.f32.xlu0 %v570
        %v668 = vpop.xlane.xlu0 %667
        %669 = vadd.xlane.f32.xlu0 %v575
        %v670 = vpop.xlane.xlu0 %669
        %671 = vadd.xlane.f32.xlu0 %v578
        %v672 = vpop.xlane.xlu0 %671
        %673 = vadd.xlane.f32.xlu0 %v583
        %v674 = vpop.xlane.xlu0 %673
        %675 = vadd.xlane.f32.xlu0 %v586
        %v676 = vpop.xlane.xlu0 %675
        %677 = vadd.xlane.f32.xlu0 %v591
        %v678 = vpop.xlane.xlu0 %677
        %679 = vadd.xlane.f32.xlu0 %v594
        %v680 = vpop.xlane.xlu0 %679
        %681 = vadd.xlane.f32.xlu0 %v599
        %v682 = vpop.xlane.xlu0 %681
        %683 = vadd.xlane.f32.xlu0 %v602
        %v684 = vpop.xlane.xlu0 %683
        %685 = vadd.xlane.f32.xlu0 %v607
        %v686 = vpop.xlane.xlu0 %685
        %687 = vadd.xlane.f32.xlu0 %v610
        %v688 = vpop.xlane.xlu0 %687
        %689 = vadd.xlane.f32.xlu0 %v615
        %v690 = vpop.xlane.xlu0 %689
        %691 = vadd.xlane.f32.xlu0 %v618
        %v692 = vpop.xlane.xlu0 %691
        %693 = vadd.xlane.f32.xlu0 %v623
        %v694 = vpop.xlane.xlu0 %693
        %695 = vadd.xlane.f32.xlu0 %v626
        %v696 = vpop.xlane.xlu0 %695
        %697 = vadd.xlane.f32.xlu0 %v631
        %v698 = vpop.xlane.xlu0 %697
        %699 = vadd.xlane.f32.xlu0 %v634
        %v700 = vpop.xlane.xlu0 %699
        %v701 = vrcp.pop 128.0
        %v702 = vmul.f32 %v638, %v701
        %v703 = vmul.f32 %v640, %v701
        %v704 = vmul.f32 %v642, %v701
        %v705 = vmul.f32 %v644, %v701
        %v706 = vmul.f32 %v646, %v701
        %v707 = vmul.f32 %v648, %v701
        %v708 = vmul.f32 %v650, %v701
        %v709 = vmul.f32 %v652, %v701
        %v710 = vmul.f32 %v654, %v701
        %v711 = vmul.f32 %v656, %v701
        %v712 = vmul.f32 %v658, %v701
        %v713 = vmul.f32 %v660, %v701
        %v714 = vmul.f32 %v662, %v701
        %v715 = vmul.f32 %v664, %v701
        %v716 = vmul.f32 %v666, %v701
        %v717 = vmul.f32 %v668, %v701
        %v718 = vmul.f32 %v670, %v701
        %v719 = vmul.f32 %v672, %v701
        %v720 = vmul.f32 %v674, %v701
        %v721 = vmul.f32 %v676, %v701
        %v722 = vmul.f32 %v678, %v701
        %v723 = vmul.f32 %v680, %v701
        %v724 = vmul.f32 %v682, %v701
        %v725 = vmul.f32 %v684, %v701
        %v726 = vmul.f32 %v686, %v701
        %v727 = vmul.f32 %v688, %v701
        %v728 = vmul.f32 %v690, %v701
        %v729 = vmul.f32 %v692, %v701
        %v730 = vmul.f32 %v694, %v701
        %v731 = vmul.f32 %v696, %v701
        %v732 = vmul.f32 %v698, %v701
        %v733 = vmul.f32 %v700, %v701
        %v734 = vsub.f32 %v511, %v702
        %v735 = vsub.f32 %v514, %v703
        %v736 = vsub.f32 %v519, %v704
        %v737 = vsub.f32 %v522, %v705
        %v738 = vsub.f32 %v527, %v706
        %v739 = vsub.f32 %v530, %v707
        %v740 = vsub.f32 %v535, %v708
        %v741 = vsub.f32 %v538, %v709
        %v742 = vsub.f32 %v543, %v710
        %v743 = vsub.f32 %v546, %v711
        %v744 = vsub.f32 %v551, %v712
        %v745 = vsub.f32 %v554, %v713
        %v746 = vsub.f32 %v559, %v714
        %v747 = vsub.f32 %v562, %v715
        %v748 = vsub.f32 %v567, %v716
        %v749 = vsub.f32 %v570, %v717
        %v750 = vsub.f32 %v575, %v718
        %v751 = vsub.f32 %v578, %v719
        %v752 = vsub.f32 %v583, %v720
        %v753 = vsub.f32 %v586, %v721
        %v754 = vsub.f32 %v591, %v722
        %v755 = vsub.f32 %v594, %v723
        %v756 = vsub.f32 %v599, %v724
        %v757 = vsub.f32 %v602, %v725
        %v758 = vsub.f32 %v607, %v726
        %v759 = vsub.f32 %v610, %v727
        %v760 = vsub.f32 %v615, %v728
        %v761 = vsub.f32 %v618, %v729
        %v762 = vsub.f32 %v623, %v730
        %v763 = vsub.f32 %v626, %v731
        %v764 = vsub.f32 %v631, %v732
        %v765 = vsub.f32 %v634, %v733
        %v766 = vmul.f32 %v734, %v734
        %v767 = vmul.f32 %v735, %v735
        %v768 = vmul.f32 %v736, %v736
        %v769 = vmul.f32 %v737, %v737
        %v770 = vmul.f32 %v738, %v738
        %v771 = vmul.f32 %v739, %v739
        %v772 = vmul.f32 %v740, %v740
        %v773 = vmul.f32 %v741, %v741
        %v774 = vmul.f32 %v742, %v742
        %v775 = vmul.f32 %v743, %v743
        %v776 = vmul.f32 %v744, %v744
        %v777 = vmul.f32 %v745, %v745
        %v778 = vmul.f32 %v746, %v746
        %v779 = vmul.f32 %v747, %v747
        %v780 = vmul.f32 %v748, %v748
        %v781 = vmul.f32 %v749, %v749
        %v782 = vmul.f32 %v750, %v750
        %v783 = vmul.f32 %v751, %v751
        %v784 = vmul.f32 %v752, %v752
        %v785 = vmul.f32 %v753, %v753
        %v786 = vmul.f32 %v754, %v754
        %v787 = vmul.f32 %v755, %v755
        %v788 = vmul.f32 %v756, %v756
        %v789 = vmul.f32 %v757, %v757
        %v790 = vmul.f32 %v758, %v758
        %v791 = vmul.f32 %v759, %v759
        %v792 = vmul.f32 %v760, %v760
        %v793 = vmul.f32 %v761, %v761
        %v794 = vmul.f32 %v762, %v762
        %v795 = vmul.f32 %v763, %v763
        %v796 = vmul.f32 %v764, %v764
        %v797 = vmul.f32 %v765, %v765
        %798 = vadd.xlane.f32.xlu0 %v766
        %v799 = vpop.xlane.xlu0 %798
        %800 = vadd.xlane.f32.xlu0 %v767
        %v801 = vpop.xlane.xlu0 %800
        %802 = vadd.xlane.f32.xlu0 %v768
        %v803 = vpop.xlane.xlu0 %802
        %804 = vadd.xlane.f32.xlu0 %v769
        %v805 = vpop.xlane.xlu0 %804
        %806 = vadd.xlane.f32.xlu0 %v770
        %v807 = vpop.xlane.xlu0 %806
        %808 = vadd.xlane.f32.xlu0 %v771
        %v809 = vpop.xlane.xlu0 %808
        %810 = vadd.xlane.f32.xlu0 %v772
        %v811 = vpop.xlane.xlu0 %810
        %812 = vadd.xlane.f32.xlu0 %v773
        %v813 = vpop.xlane.xlu0 %812
        %814 = vadd.xlane.f32.xlu0 %v774
        %v815 = vpop.xlane.xlu0 %814
        %816 = vadd.xlane.f32.xlu0 %v775
        %v817 = vpop.xlane.xlu0 %816
        %818 = vadd.xlane.f32.xlu0 %v776
        %v819 = vpop.xlane.xlu0 %818
        %820 = vadd.xlane.f32.xlu0 %v777
        %v821 = vpop.xlane.xlu0 %820
        %822 = vadd.xlane.f32.xlu0 %v778
        %v823 = vpop.xlane.xlu0 %822
        %824 = vadd.xlane.f32.xlu0 %v779
        %v825 = vpop.xlane.xlu0 %824
        %826 = vadd.xlane.f32.xlu0 %v780
        %v827 = vpop.xlane.xlu0 %826
        %828 = vadd.xlane.f32.xlu0 %v781
        %v829 = vpop.xlane.xlu0 %828
        %830 = vadd.xlane.f32.xlu0 %v782
        %v831 = vpop.xlane.xlu0 %830
        %832 = vadd.xlane.f32.xlu0 %v783
        %v833 = vpop.xlane.xlu0 %832
        %834 = vadd.xlane.f32.xlu0 %v784
        %v835 = vpop.xlane.xlu0 %834
        %836 = vadd.xlane.f32.xlu0 %v785
        %v837 = vpop.xlane.xlu0 %836
        %838 = vadd.xlane.f32.xlu0 %v786
        %v839 = vpop.xlane.xlu0 %838
        %840 = vadd.xlane.f32.xlu0 %v787
        %v841 = vpop.xlane.xlu0 %840
        %842 = vadd.xlane.f32.xlu0 %v788
        %v843 = vpop.xlane.xlu0 %842
        %844 = vadd.xlane.f32.xlu0 %v789
        %v845 = vpop.xlane.xlu0 %844
        %846 = vadd.xlane.f32.xlu0 %v790
        %v847 = vpop.xlane.xlu0 %846
        %848 = vadd.xlane.f32.xlu0 %v791
        %v849 = vpop.xlane.xlu0 %848
        %850 = vadd.xlane.f32.xlu0 %v792
        %v851 = vpop.xlane.xlu0 %850
        %852 = vadd.xlane.f32.xlu0 %v793
        %v853 = vpop.xlane.xlu0 %852
        %854 = vadd.xlane.f32.xlu0 %v794
        %v855 = vpop.xlane.xlu0 %854
        %856 = vadd.xlane.f32.xlu0 %v795
        %v857 = vpop.xlane.xlu0 %856
        %858 = vadd.xlane.f32.xlu0 %v796
        %v859 = vpop.xlane.xlu0 %858
        %860 = vadd.xlane.f32.xlu0 %v797
        %v861 = vpop.xlane.xlu0 %860
        %v862 = vmul.f32 %v799, %v701
        %v863 = vmul.f32 %v801, %v701
        %v864 = vmul.f32 %v803, %v701
        %v865 = vmul.f32 %v805, %v701
        %v866 = vmul.f32 %v807, %v701
        %v867 = vmul.f32 %v809, %v701
        %v868 = vmul.f32 %v811, %v701
        %v869 = vmul.f32 %v813, %v701
        %v870 = vmul.f32 %v815, %v701
        %v871 = vmul.f32 %v817, %v701
        %v872 = vmul.f32 %v819, %v701
        %v873 = vmul.f32 %v821, %v701
        %v874 = vmul.f32 %v823, %v701
        %v875 = vmul.f32 %v825, %v701
        %v876 = vmul.f32 %v827, %v701
        %v877 = vmul.f32 %v829, %v701
        %v878 = vmul.f32 %v831, %v701
        %v879 = vmul.f32 %v833, %v701
        %v880 = vmul.f32 %v835, %v701
        %v881 = vmul.f32 %v837, %v701
        %v882 = vmul.f32 %v839, %v701
        %v883 = vmul.f32 %v841, %v701
        %v884 = vmul.f32 %v843, %v701
        %v885 = vmul.f32 %v845, %v701
        %v886 = vmul.f32 %v847, %v701
        %v887 = vmul.f32 %v849, %v701
        %v888 = vmul.f32 %v851, %v701
        %v889 = vmul.f32 %v853, %v701
        %v890 = vmul.f32 %v855, %v701
        %v891 = vmul.f32 %v857, %v701
        %v892 = vmul.f32 %v859, %v701
        %v893 = vmul.f32 %v861, %v701
        %v894 = vadd.f32 %v862, 1e-06
        %v895 = vadd.f32 %v863, 1e-06
        %v896 = vadd.f32 %v864, 1e-06
        %v897 = vadd.f32 %v865, 1e-06
        %v898 = vadd.f32 %v866, 1e-06
        %v899 = vadd.f32 %v867, 1e-06
        %v900 = vadd.f32 %v868, 1e-06
        %v901 = vadd.f32 %v869, 1e-06
        %v902 = vadd.f32 %v870, 1e-06
        %v903 = vadd.f32 %v871, 1e-06
        %v904 = vadd.f32 %v872, 1e-06
        %v905 = vadd.f32 %v873, 1e-06
        %v906 = vadd.f32 %v874, 1e-06
        %v907 = vadd.f32 %v875, 1e-06
        %v908 = vadd.f32 %v876, 1e-06
        %v909 = vadd.f32 %v877, 1e-06
        %v910 = vadd.f32 %v878, 1e-06
        %v911 = vadd.f32 %v879, 1e-06
        %v912 = vadd.f32 %v880, 1e-06
        %v913 = vadd.f32 %v881, 1e-06
        %v914 = vadd.f32 %v882, 1e-06
        %v915 = vadd.f32 %v883, 1e-06
        %v916 = vadd.f32 %v884, 1e-06
        %v917 = vadd.f32 %v885, 1e-06
        %v918 = vadd.f32 %v886, 1e-06
        %v919 = vadd.f32 %v887, 1e-06
        %v920 = vadd.f32 %v888, 1e-06
        %v921 = vadd.f32 %v889, 1e-06
        %v922 = vadd.f32 %v890, 1e-06
        %v923 = vadd.f32 %v891, 1e-06
        %v924 = vadd.f32 %v892, 1e-06
        %v925 = vadd.f32 %v893, 1e-06
        %v926 = vrsqrt.pop %v894
        %v927 = vrsqrt.pop %v895
        %v928 = vrsqrt.pop %v896
        %v929 = vrsqrt.pop %v897
        %v930 = vrsqrt.pop %v898
        %v931 = vrsqrt.pop %v899
        %v932 = vrsqrt.pop %v900
        %v933 = vrsqrt.pop %v901
        %v934 = vrsqrt.pop %v902
        %v935 = vrsqrt.pop %v903
        %v936 = vrsqrt.pop %v904
        %v937 = vrsqrt.pop %v905
        %v938 = vrsqrt.pop %v906
        %v939 = vrsqrt.pop %v907
        %v940 = vrsqrt.pop %v908
        %v941 = vrsqrt.pop %v909
        %v942 = vrsqrt.pop %v910
        %v943 = vrsqrt.pop %v911
        %v944 = vrsqrt.pop %v912
        %v945 = vrsqrt.pop %v913
        %v946 = vrsqrt.pop %v914
        %v947 = vrsqrt.pop %v915
        %v948 = vrsqrt.pop %v916
        %v949 = vrsqrt.pop %v917
        %v950 = vrsqrt.pop %v918
        %v951 = vrsqrt.pop %v919
        %v952 = vrsqrt.pop %v920
        %v953 = vrsqrt.pop %v921
        %v954 = vrsqrt.pop %v922
        %v955 = vrsqrt.pop %v923
        %v956 = vrsqrt.pop %v924
        %v957 = vrsqrt.pop %v925
        %v958 = vmul.f32 %v734, %v926
        %v959 = vmul.f32 %v735, %v927
        %v960 = vmul.f32 %v736, %v928
        %v961 = vmul.f32 %v737, %v929
        %v962 = vmul.f32 %v738, %v930
        %v963 = vmul.f32 %v739, %v931
        %v964 = vmul.f32 %v740, %v932
        %v965 = vmul.f32 %v741, %v933
        %v966 = vmul.f32 %v742, %v934
        %v967 = vmul.f32 %v743, %v935
        %v968 = vmul.f32 %v744, %v936
        %v969 = vmul.f32 %v745, %v937
        %v970 = vmul.f32 %v746, %v938
        %v971 = vmul.f32 %v747, %v939
        %v972 = vmul.f32 %v748, %v940
        %v973 = vmul.f32 %v749, %v941
        %v974 = vmul.f32 %v750, %v942
        %v975 = vmul.f32 %v751, %v943
        %v976 = vmul.f32 %v752, %v944
        %v977 = vmul.f32 %v753, %v945
        %v978 = vmul.f32 %v754, %v946
        %v979 = vmul.f32 %v755, %v947
        %v980 = vmul.f32 %v756, %v948
        %v981 = vmul.f32 %v757, %v949
        %v982 = vmul.f32 %v758, %v950
        %v983 = vmul.f32 %v759, %v951
        %v984 = vmul.f32 %v760, %v952
        %v985 = vmul.f32 %v761, %v953
        %v986 = vmul.f32 %v762, %v954
        %v987 = vmul.f32 %v763, %v955
        %v988 = vmul.f32 %v764, %v956
        %v989 = vmul.f32 %v765, %v957
        %v991 = vlaneseq
        %v992 = vshrl.u32 %v991, 7
        %v993 = vsub.s32 0, %v992
        %v994 = vrot.slane %v301, %v993
        %v996 = vmul.f32 %v958, %v994
        %v997 = vmul.f32 %v959, %v994
        %v998 = vmul.f32 %v960, %v994
        %v999 = vmul.f32 %v961, %v994
        %v1000 = vmul.f32 %v962, %v994
        %v1001 = vmul.f32 %v963, %v994
        %v1002 = vmul.f32 %v964, %v994
        %v1003 = vmul.f32 %v965, %v994
        %v1004 = vmul.f32 %v966, %v994
        %v1005 = vmul.f32 %v967, %v994
        %v1006 = vmul.f32 %v968, %v994
        %v1007 = vmul.f32 %v969, %v994
        %v1008 = vmul.f32 %v970, %v994
        %v1009 = vmul.f32 %v971, %v994
        %v1010 = vmul.f32 %v972, %v994
        %v1011 = vmul.f32 %v973, %v994
        %v1012 = vmul.f32 %v974, %v994
        %v1013 = vmul.f32 %v975, %v994
        %v1014 = vmul.f32 %v976, %v994
        %v1015 = vmul.f32 %v977, %v994
        %v1016 = vmul.f32 %v978, %v994
        %v1017 = vmul.f32 %v979, %v994
        %v1018 = vmul.f32 %v980, %v994
        %v1019 = vmul.f32 %v981, %v994
        %v1020 = vmul.f32 %v982, %v994
        %v1021 = vmul.f32 %v983, %v994
        %v1022 = vmul.f32 %v984, %v994
        %v1023 = vmul.f32 %v985, %v994
        %v1024 = vmul.f32 %v986, %v994
        %v1025 = vmul.f32 %v987, %v994
        %v1026 = vmul.f32 %v988, %v994
        %v1027 = vmul.f32 %v989, %v994
        %v1029 = vlaneseq
        %v1030 = vshrl.u32 %v1029, 7
        %v1031 = vsub.s32 0, %v1030
        %v1032 = vrot.slane %v302, %v1031
        %v1034 = vadd.f32 %v996, %v1032
        %v1035 = vadd.f32 %v997, %v1032
        %v1036 = vadd.f32 %v998, %v1032
        %v1037 = vadd.f32 %v999, %v1032
        %v1038 = vadd.f32 %v1000, %v1032
        %v1039 = vadd.f32 %v1001, %v1032
        %v1040 = vadd.f32 %v1002, %v1032
        %v1041 = vadd.f32 %v1003, %v1032
        %v1042 = vadd.f32 %v1004, %v1032
        %v1043 = vadd.f32 %v1005, %v1032
        %v1044 = vadd.f32 %v1006, %v1032
        %v1045 = vadd.f32 %v1007, %v1032
        %v1046 = vadd.f32 %v1008, %v1032
        %v1047 = vadd.f32 %v1009, %v1032
        %v1048 = vadd.f32 %v1010, %v1032
        %v1049 = vadd.f32 %v1011, %v1032
        %v1050 = vadd.f32 %v1012, %v1032
        %v1051 = vadd.f32 %v1013, %v1032
        %v1052 = vadd.f32 %v1014, %v1032
        %v1053 = vadd.f32 %v1015, %v1032
        %v1054 = vadd.f32 %v1016, %v1032
        %v1055 = vadd.f32 %v1017, %v1032
        %v1056 = vadd.f32 %v1018, %v1032
        %v1057 = vadd.f32 %v1019, %v1032
        %v1058 = vadd.f32 %v1020, %v1032
        %v1059 = vadd.f32 %v1021, %v1032
        %v1060 = vadd.f32 %v1022, %v1032
        %v1061 = vadd.f32 %v1023, %v1032
        %v1062 = vadd.f32 %v1024, %v1032
        %v1063 = vadd.f32 %v1025, %v1032
        %v1064 = vadd.f32 %v1026, %v1032
        %v1065 = vadd.f32 %v1027, %v1032
        %v1066 = vpack.c.bf16 %v1035, %v1034
        %v1067 = vpack.c.bf16 %v1037, %v1036
        %v1068 = vpack.c.bf16 %v1039, %v1038
        %v1069 = vpack.c.bf16 %v1041, %v1040
        %v1070 = vpack.c.bf16 %v1043, %v1042
        %v1071 = vpack.c.bf16 %v1045, %v1044
        %v1072 = vpack.c.bf16 %v1047, %v1046
        %v1073 = vpack.c.bf16 %v1049, %v1048
        %v1074 = vpack.c.bf16 %v1051, %v1050
        %v1075 = vpack.c.bf16 %v1053, %v1052
        %v1076 = vpack.c.bf16 %v1055, %v1054
        %v1077 = vpack.c.bf16 %v1057, %v1056
        %v1078 = vpack.c.bf16 %v1059, %v1058
        %v1079 = vpack.c.bf16 %v1061, %v1060
        %v1080 = vpack.c.bf16 %v1063, %v1062
        %v1081 = vpack.c.bf16 %v1065, %v1064
        %1082 = vst [vmem:[#allocation2 + $0x10] sm:$0xff] %v1066
        %1083 = vst [vmem:[#allocation2 + $0x18] sm:$0xff] %v1067
        %1084 = vst [vmem:[#allocation2 + $0x20] sm:$0xff] %v1068
        %1085 = vst [vmem:[#allocation2 + $0x28] sm:$0xff] %v1069
        %1086 = vst [vmem:[#allocation2 + $0x30] sm:$0xff] %v1070
        %1087 = vst [vmem:[#allocation2 + $0x38] sm:$0xff] %v1071
        %1088 = vst [vmem:[#allocation2 + $0x40] sm:$0xff] %v1072
        %1089 = vst [vmem:[#allocation2 + $0x48] sm:$0xff] %v1073
        %1090 = vst [vmem:[#allocation2 + $0x50] sm:$0xff] %v1074
        %1091 = vst [vmem:[#allocation2 + $0x58] sm:$0xff] %v1075
        %1092 = vst [vmem:[#allocation2 + $0x60] sm:$0xff] %v1076
        %1093 = vst [vmem:[#allocation2 + $0x68] sm:$0xff] %v1077
        %1094 = vst [vmem:[#allocation2 + $0x70] sm:$0xff] %v1078
        %1095 = vst [vmem:[#allocation2 + $0x78] sm:$0xff] %v1079
        %1096 = vst [vmem:[#allocation2 + $0x80] sm:$0xff] %v1080
        %1097 = vst [vmem:[#allocation2 + $0x88] sm:$0xff] %v1081
        %v1098 = vlaneseq
        %v1099 = vshrl.u32 %v1098, 7
        %v1100 = vadd.s32 %v1099, 8
        %v1101 = vadd.s32 %v1099, 16
        %v1102 = vadd.s32 %v1099, 24
        %v1103 = vadd.s32 %v1099, 32
        %v1104 = vadd.s32 %v1099, 40
        %v1105 = vadd.s32 %v1099, 48
        %v1106 = vadd.s32 %v1099, 56
        %v1107 = vadd.s32 %v1099, 64
        %v1108 = vadd.s32 %v1099, 72
        %v1109 = vadd.s32 %v1099, 80
        %v1110 = vadd.s32 %v1099, 88
        %v1111 = vadd.s32 %v1099, 96
        %v1112 = vadd.s32 %v1099, 104
        %v1113 = vadd.s32 %v1099, 112
        %v1114 = vadd.s32 %v1099, 120
        %v1115 = vadd.s32 %v1099, 128
        %v1116 = vadd.s32 %v1099, 136
        %v1117 = vadd.s32 %v1099, 144
        %v1118 = vadd.s32 %v1099, 152
        %v1119 = vadd.s32 %v1099, 160
        %v1120 = vadd.s32 %v1099, 168
        %v1121 = vadd.s32 %v1099, 176
        %v1122 = vadd.s32 %v1099, 184
        %v1123 = vadd.s32 %v1099, 192
        %v1124 = vadd.s32 %v1099, 200
        %v1125 = vadd.s32 %v1099, 208
        %v1126 = vadd.s32 %v1099, 216
        %v1127 = vadd.s32 %v1099, 224
        %v1128 = vadd.s32 %v1099, 232
        %v1129 = vadd.s32 %v1099, 240
        %v1130 = vadd.s32 %v1099, 248
        %vm1131 = vcmp.lt.s32.totalorder %v1099, 0
        %v1132 = vsub.s32 0, %v1099
        %v1133 = vsel %vm1131, %v1132, %v1099
        %v1134 = vshrl.u32 %v1133, 4
        %v1135 = vand.u32 %v1133, 15
        %v1136 = vsub.s32 0, %v1135
        %v1137 = vsel %vm1131, %v1136, %v1135
        %vm1138 = vcmp.lt.s32.totalorder %v1100, 0
        %v1139 = vsub.s32 0, %v1100
        %v1140 = vsel %vm1138, %v1139, %v1100
        %v1141 = vshrl.u32 %v1140, 4
        %v1142 = vand.u32 %v1140, 15
        %v1143 = vsub.s32 0, %v1142
        %v1144 = vsel %vm1138, %v1143, %v1142
        %vm1145 = vcmp.lt.s32.totalorder %v1101, 0
        %v1146 = vsub.s32 0, %v1101
        %v1147 = vsel %vm1145, %v1146, %v1101
        %v1148 = vshrl.u32 %v1147, 4
        %v1149 = vand.u32 %v1147, 15
        %v1150 = vsub.s32 0, %v1149
        %v1151 = vsel %vm1145, %v1150, %v1149
        %vm1152 = vcmp.lt.s32.totalorder %v1102, 0
        %v1153 = vsub.s32 0, %v1102
        %v1154 = vsel %vm1152, %v1153, %v1102
        %v1155 = vshrl.u32 %v1154, 4
        %v1156 = vand.u32 %v1154, 15
        %v1157 = vsub.s32 0, %v1156
        %v1158 = vsel %vm1152, %v1157, %v1156
        %vm1159 = vcmp.lt.s32.totalorder %v1103, 0
        %v1160 = vsub.s32 0, %v1103
        %v1161 = vsel %vm1159, %v1160, %v1103
        %v1162 = vshrl.u32 %v1161, 4
        %v1163 = vand.u32 %v1161, 15
        %v1164 = vsub.s32 0, %v1163
        %v1165 = vsel %vm1159, %v1164, %v1163
        %vm1166 = vcmp.lt.s32.totalorder %v1104, 0
        %v1167 = vsub.s32 0, %v1104
        %v1168 = vsel %vm1166, %v1167, %v1104
        %v1169 = vshrl.u32 %v1168, 4
        %v1170 = vand.u32 %v1168, 15
        %v1171 = vsub.s32 0, %v1170
        %v1172 = vsel %vm1166, %v1171, %v1170
        %vm1173 = vcmp.lt.s32.totalorder %v1105, 0
        %v1174 = vsub.s32 0, %v1105
        %v1175 = vsel %vm1173, %v1174, %v1105
        %v1176 = vshrl.u32 %v1175, 4
        %v1177 = vand.u32 %v1175, 15
        %v1178 = vsub.s32 0, %v1177
        %v1179 = vsel %vm1173, %v1178, %v1177
        %vm1180 = vcmp.lt.s32.totalorder %v1106, 0
        %v1181 = vsub.s32 0, %v1106
        %v1182 = vsel %vm1180, %v1181, %v1106
        %v1183 = vshrl.u32 %v1182, 4
        %v1184 = vand.u32 %v1182, 15
        %v1185 = vsub.s32 0, %v1184
        %v1186 = vsel %vm1180, %v1185, %v1184
        %vm1187 = vcmp.lt.s32.totalorder %v1107, 0
        %v1188 = vsub.s32 0, %v1107
        %v1189 = vsel %vm1187, %v1188, %v1107
        %v1190 = vshrl.u32 %v1189, 4
        %v1191 = vand.u32 %v1189, 15
        %v1192 = vsub.s32 0, %v1191
        %v1193 = vsel %vm1187, %v1192, %v1191
        %vm1194 = vcmp.lt.s32.totalorder %v1108, 0
        %v1195 = vsub.s32 0, %v1108
        %v1196 = vsel %vm1194, %v1195, %v1108
        %v1197 = vshrl.u32 %v1196, 4
        %v1198 = vand.u32 %v1196, 15
        %v1199 = vsub.s32 0, %v1198
        %v1200 = vsel %vm1194, %v1199, %v1198
        %vm1201 = vcmp.lt.s32.totalorder %v1109, 0
        %v1202 = vsub.s32 0, %v1109
        %v1203 = vsel %vm1201, %v1202, %v1109
        %v1204 = vshrl.u32 %v1203, 4
        %v1205 = vand.u32 %v1203, 15
        %v1206 = vsub.s32 0, %v1205
        %v1207 = vsel %vm1201, %v1206, %v1205
        %vm1208 = vcmp.lt.s32.totalorder %v1110, 0
        %v1209 = vsub.s32 0, %v1110
        %v1210 = vsel %vm1208, %v1209, %v1110
        %v1211 = vshrl.u32 %v1210, 4
        %v1212 = vand.u32 %v1210, 15
        %v1213 = vsub.s32 0, %v1212
        %v1214 = vsel %vm1208, %v1213, %v1212
        %vm1215 = vcmp.lt.s32.totalorder %v1111, 0
        %v1216 = vsub.s32 0, %v1111
        %v1217 = vsel %vm1215, %v1216, %v1111
        %v1218 = vshrl.u32 %v1217, 4
        %v1219 = vand.u32 %v1217, 15
        %v1220 = vsub.s32 0, %v1219
        %v1221 = vsel %vm1215, %v1220, %v1219
        %vm1222 = vcmp.lt.s32.totalorder %v1112, 0
        %v1223 = vsub.s32 0, %v1112
        %v1224 = vsel %vm1222, %v1223, %v1112
        %v1225 = vshrl.u32 %v1224, 4
        %v1226 = vand.u32 %v1224, 15
        %v1227 = vsub.s32 0, %v1226
        %v1228 = vsel %vm1222, %v1227, %v1226
        %vm1229 = vcmp.lt.s32.totalorder %v1113, 0
        %v1230 = vsub.s32 0, %v1113
        %v1231 = vsel %vm1229, %v1230, %v1113
        %v1232 = vshrl.u32 %v1231, 4
        %v1233 = vand.u32 %v1231, 15
        %v1234 = vsub.s32 0, %v1233
        %v1235 = vsel %vm1229, %v1234, %v1233
        %vm1236 = vcmp.lt.s32.totalorder %v1114, 0
        %v1237 = vsub.s32 0, %v1114
        %v1238 = vsel %vm1236, %v1237, %v1114
        %v1239 = vshrl.u32 %v1238, 4
        %v1240 = vand.u32 %v1238, 15
        %v1241 = vsub.s32 0, %v1240
        %v1242 = vsel %vm1236, %v1241, %v1240
        %vm1243 = vcmp.lt.s32.totalorder %v1115, 0
        %v1244 = vsub.s32 0, %v1115
        %v1245 = vsel %vm1243, %v1244, %v1115
        %v1246 = vshrl.u32 %v1245, 4
        %v1247 = vand.u32 %v1245, 15
        %v1248 = vsub.s32 0, %v1247
        %v1249 = vsel %vm1243, %v1248, %v1247
        %vm1250 = vcmp.lt.s32.totalorder %v1116, 0
        %v1251 = vsub.s32 0, %v1116
        %v1252 = vsel %vm1250, %v1251, %v1116
        %v1253 = vshrl.u32 %v1252, 4
        %v1254 = vand.u32 %v1252, 15
        %v1255 = vsub.s32 0, %v1254
        %v1256 = vsel %vm1250, %v1255, %v1254
        %vm1257 = vcmp.lt.s32.totalorder %v1117, 0
        %v1258 = vsub.s32 0, %v1117
        %v1259 = vsel %vm1257, %v1258, %v1117
        %v1260 = vshrl.u32 %v1259, 4
        %v1261 = vand.u32 %v1259, 15
        %v1262 = vsub.s32 0, %v1261
        %v1263 = vsel %vm1257, %v1262, %v1261
        %vm1264 = vcmp.lt.s32.totalorder %v1118, 0
        %v1265 = vsub.s32 0, %v1118
        %v1266 = vsel %vm1264, %v1265, %v1118
        %v1267 = vshrl.u32 %v1266, 4
        %v1268 = vand.u32 %v1266, 15
        %v1269 = vsub.s32 0, %v1268
        %v1270 = vsel %vm1264, %v1269, %v1268
        %vm1271 = vcmp.lt.s32.totalorder %v1119, 0
        %v1272 = vsub.s32 0, %v1119
        %v1273 = vsel %vm1271, %v1272, %v1119
        %v1274 = vshrl.u32 %v1273, 4
        %v1275 = vand.u32 %v1273, 15
        %v1276 = vsub.s32 0, %v1275
        %v1277 = vsel %vm1271, %v1276, %v1275
        %vm1278 = vcmp.lt.s32.totalorder %v1120, 0
        %v1279 = vsub.s32 0, %v1120
        %v1280 = vsel %vm1278, %v1279, %v1120
        %v1281 = vshrl.u32 %v1280, 4
        %v1282 = vand.u32 %v1280, 15
        %v1283 = vsub.s32 0, %v1282
        %v1284 = vsel %vm1278, %v1283, %v1282
        %vm1285 = vcmp.lt.s32.totalorder %v1121, 0
        %v1286 = vsub.s32 0, %v1121
        %v1287 = vsel %vm1285, %v1286, %v1121
        %v1288 = vshrl.u32 %v1287, 4
        %v1289 = vand.u32 %v1287, 15
        %v1290 = vsub.s32 0, %v1289
        %v1291 = vsel %vm1285, %v1290, %v1289
        %vm1292 = vcmp.lt.s32.totalorder %v1122, 0
        %v1293 = vsub.s32 0, %v1122
        %v1294 = vsel %vm1292, %v1293, %v1122
        %v1295 = vshrl.u32 %v1294, 4
        %v1296 = vand.u32 %v1294, 15
        %v1297 = vsub.s32 0, %v1296
        %v1298 = vsel %vm1292, %v1297, %v1296
        %vm1299 = vcmp.lt.s32.totalorder %v1123, 0
        %v1300 = vsub.s32 0, %v1123
        %v1301 = vsel %vm1299, %v1300, %v1123
        %v1302 = vshrl.u32 %v1301, 4
        %v1303 = vand.u32 %v1301, 15
        %v1304 = vsub.s32 0, %v1303
        %v1305 = vsel %vm1299, %v1304, %v1303
        %vm1306 = vcmp.lt.s32.totalorder %v1124, 0
        %v1307 = vsub.s32 0, %v1124
        %v1308 = vsel %vm1306, %v1307, %v1124
        %v1309 = vshrl.u32 %v1308, 4
        %v1310 = vand.u32 %v1308, 15
        %v1311 = vsub.s32 0, %v1310
        %v1312 = vsel %vm1306, %v1311, %v1310
        %vm1313 = vcmp.lt.s32.totalorder %v1125, 0
        %v1314 = vsub.s32 0, %v1125
        %v1315 = vsel %vm1313, %v1314, %v1125
        %v1316 = vshrl.u32 %v1315, 4
        %v1317 = vand.u32 %v1315, 15
        %v1318 = vsub.s32 0, %v1317
        %v1319 = vsel %vm1313, %v1318, %v1317
        %vm1320 = vcmp.lt.s32.totalorder %v1126, 0
        %v1321 = vsub.s32 0, %v1126
        %v1322 = vsel %vm1320, %v1321, %v1126
        %v1323 = vshrl.u32 %v1322, 4
        %v1324 = vand.u32 %v1322, 15
        %v1325 = vsub.s32 0, %v1324
        %v1326 = vsel %vm1320, %v1325, %v1324
        %vm1327 = vcmp.lt.s32.totalorder %v1127, 0
        %v1328 = vsub.s32 0, %v1127
        %v1329 = vsel %vm1327, %v1328, %v1127
        %v1330 = vshrl.u32 %v1329, 4
        %v1331 = vand.u32 %v1329, 15
        %v1332 = vsub.s32 0, %v1331
        %v1333 = vsel %vm1327, %v1332, %v1331
        %vm1334 = vcmp.lt.s32.totalorder %v1128, 0
        %v1335 = vsub.s32 0, %v1128
        %v1336 = vsel %vm1334, %v1335, %v1128
        %v1337 = vshrl.u32 %v1336, 4
        %v1338 = vand.u32 %v1336, 15
        %v1339 = vsub.s32 0, %v1338
        %v1340 = vsel %vm1334, %v1339, %v1338
        %vm1341 = vcmp.lt.s32.totalorder %v1129, 0
        %v1342 = vsub.s32 0, %v1129
        %v1343 = vsel %vm1341, %v1342, %v1129
        %v1344 = vshrl.u32 %v1343, 4
        %v1345 = vand.u32 %v1343, 15
        %v1346 = vsub.s32 0, %v1345
        %v1347 = vsel %vm1341, %v1346, %v1345
        %vm1348 = vcmp.lt.s32.totalorder %v1130, 0
        %v1349 = vsub.s32 0, %v1130
        %v1350 = vsel %vm1348, %v1349, %v1130
        %v1351 = vshrl.u32 %v1350, 4
        %v1352 = vand.u32 %v1350, 15
        %v1353 = vsub.s32 0, %v1352
        %v1354 = vsel %vm1348, %v1353, %v1352
        %vm1355 = vcmp.ne.s32.totalorder %v1137, 0
        %vm1356 = vcmp.ne.s32.totalorder %v1144, 0
        %vm1357 = vcmp.ne.s32.totalorder %v1151, 0
        %vm1358 = vcmp.ne.s32.totalorder %v1158, 0
        %vm1359 = vcmp.ne.s32.totalorder %v1165, 0
        %vm1360 = vcmp.ne.s32.totalorder %v1172, 0
        %vm1361 = vcmp.ne.s32.totalorder %v1179, 0
        %vm1362 = vcmp.ne.s32.totalorder %v1186, 0
        %vm1363 = vcmp.ne.s32.totalorder %v1193, 0
        %vm1364 = vcmp.ne.s32.totalorder %v1200, 0
        %vm1365 = vcmp.ne.s32.totalorder %v1207, 0
        %vm1366 = vcmp.ne.s32.totalorder %v1214, 0
        %vm1367 = vcmp.ne.s32.totalorder %v1221, 0
        %vm1368 = vcmp.ne.s32.totalorder %v1228, 0
        %vm1369 = vcmp.ne.s32.totalorder %v1235, 0
        %vm1370 = vcmp.ne.s32.totalorder %v1242, 0
        %vm1371 = vcmp.ne.s32.totalorder %v1249, 0
        %vm1372 = vcmp.ne.s32.totalorder %v1256, 0
        %vm1373 = vcmp.ne.s32.totalorder %v1263, 0
        %vm1374 = vcmp.ne.s32.totalorder %v1270, 0
        %vm1375 = vcmp.ne.s32.totalorder %v1277, 0
        %vm1376 = vcmp.ne.s32.totalorder %v1284, 0
        %vm1377 = vcmp.ne.s32.totalorder %v1291, 0
        %vm1378 = vcmp.ne.s32.totalorder %v1298, 0
        %vm1379 = vcmp.ne.s32.totalorder %v1305, 0
        %vm1380 = vcmp.ne.s32.totalorder %v1312, 0
        %vm1381 = vcmp.ne.s32.totalorder %v1319, 0
        %vm1382 = vcmp.ne.s32.totalorder %v1326, 0
        %vm1383 = vcmp.ne.s32.totalorder %v1333, 0
        %vm1384 = vcmp.ne.s32.totalorder %v1340, 0
        %vm1385 = vcmp.ne.s32.totalorder %v1347, 0
        %vm1386 = vcmp.ne.s32.totalorder %v1354, 0
        %vm1387 = vcmp.lt.s32.totalorder %v1137, 0
        %vm1388 = vcmp.lt.s32.totalorder %v1144, 0
        %vm1389 = vcmp.lt.s32.totalorder %v1151, 0
        %vm1390 = vcmp.lt.s32.totalorder %v1158, 0
        %vm1391 = vcmp.lt.s32.totalorder %v1165, 0
        %vm1392 = vcmp.lt.s32.totalorder %v1172, 0
        %vm1393 = vcmp.lt.s32.totalorder %v1179, 0
        %vm1394 = vcmp.lt.s32.totalorder %v1186, 0
        %vm1395 = vcmp.lt.s32.totalorder %v1193, 0
        %vm1396 = vcmp.lt.s32.totalorder %v1200, 0
        %vm1397 = vcmp.lt.s32.totalorder %v1207, 0
        %vm1398 = vcmp.lt.s32.totalorder %v1214, 0
        %vm1399 = vcmp.lt.s32.totalorder %v1221, 0
        %vm1400 = vcmp.lt.s32.totalorder %v1228, 0
        %vm1401 = vcmp.lt.s32.totalorder %v1235, 0
        %vm1402 = vcmp.lt.s32.totalorder %v1242, 0
        %vm1403 = vcmp.lt.s32.totalorder %v1249, 0
        %vm1404 = vcmp.lt.s32.totalorder %v1256, 0
        %vm1405 = vcmp.lt.s32.totalorder %v1263, 0
        %vm1406 = vcmp.lt.s32.totalorder %v1270, 0
        %vm1407 = vcmp.lt.s32.totalorder %v1277, 0
        %vm1408 = vcmp.lt.s32.totalorder %v1284, 0
        %vm1409 = vcmp.lt.s32.totalorder %v1291, 0
        %vm1410 = vcmp.lt.s32.totalorder %v1298, 0
        %vm1411 = vcmp.lt.s32.totalorder %v1305, 0
        %vm1412 = vcmp.lt.s32.totalorder %v1312, 0
        %vm1413 = vcmp.lt.s32.totalorder %v1319, 0
        %vm1414 = vcmp.lt.s32.totalorder %v1326, 0
        %vm1415 = vcmp.lt.s32.totalorder %v1333, 0
        %vm1416 = vcmp.lt.s32.totalorder %v1340, 0
        %vm1417 = vcmp.lt.s32.totalorder %v1347, 0
        %vm1418 = vcmp.lt.s32.totalorder %v1354, 0
        %vm1419 = vmand %vm1387, %vm1355
        %vm1420 = vmand %vm1388, %vm1356
        %vm1421 = vmand %vm1389, %vm1357
        %vm1422 = vmand %vm1390, %vm1358
        %vm1423 = vmand %vm1391, %vm1359
        %vm1424 = vmand %vm1392, %vm1360
        %vm1425 = vmand %vm1393, %vm1361
        %vm1426 = vmand %vm1394, %vm1362
        %vm1427 = vmand %vm1395, %vm1363
        %vm1428 = vmand %vm1396, %vm1364
        %vm1429 = vmand %vm1397, %vm1365
        %vm1430 = vmand %vm1398, %vm1366
        %vm1431 = vmand %vm1399, %vm1367
        %vm1432 = vmand %vm1400, %vm1368
        %vm1433 = vmand %vm1401, %vm1369
        %vm1434 = vmand %vm1402, %vm1370
        %vm1435 = vmand %vm1403, %vm1371
        %vm1436 = vmand %vm1404, %vm1372
        %vm1437 = vmand %vm1405, %vm1373
        %vm1438 = vmand %vm1406, %vm1374
        %vm1439 = vmand %vm1407, %vm1375
        %vm1440 = vmand %vm1408, %vm1376
        %vm1441 = vmand %vm1409, %vm1377
        %vm1442 = vmand %vm1410, %vm1378
        %vm1443 = vmand %vm1411, %vm1379
        %vm1444 = vmand %vm1412, %vm1380
        %vm1445 = vmand %vm1413, %vm1381
        %vm1446 = vmand %vm1414, %vm1382
        %vm1447 = vmand %vm1415, %vm1383
        %vm1448 = vmand %vm1416, %vm1384
        %vm1449 = vmand %vm1417, %vm1385
        %vm1450 = vmand %vm1418, %vm1386
        %v1451 = vadd.s32 %v1137, 16
        %v1452 = vadd.s32 %v1144, 16
        %v1453 = vadd.s32 %v1151, 16
        %v1454 = vadd.s32 %v1158, 16
        %v1455 = vadd.s32 %v1165, 16
        %v1456 = vadd.s32 %v1172, 16
        %v1457 = vadd.s32 %v1179, 16
        %v1458 = vadd.s32 %v1186, 16
        %v1459 = vadd.s32 %v1193, 16
        %v1460 = vadd.s32 %v1200, 16
        %v1461 = vadd.s32 %v1207, 16
        %v1462 = vadd.s32 %v1214, 16
        %v1463 = vadd.s32 %v1221, 16
        %v1464 = vadd.s32 %v1228, 16
        %v1465 = vadd.s32 %v1235, 16
        %v1466 = vadd.s32 %v1242, 16
        %v1467 = vadd.s32 %v1249, 16
        %v1468 = vadd.s32 %v1256, 16
        %v1469 = vadd.s32 %v1263, 16
        %v1470 = vadd.s32 %v1270, 16
        %v1471 = vadd.s32 %v1277, 16
        %v1472 = vadd.s32 %v1284, 16
        %v1473 = vadd.s32 %v1291, 16
        %v1474 = vadd.s32 %v1298, 16
        %v1475 = vadd.s32 %v1305, 16
        %v1476 = vadd.s32 %v1312, 16
        %v1477 = vadd.s32 %v1319, 16
        %v1478 = vadd.s32 %v1326, 16
        %v1479 = vadd.s32 %v1333, 16
        %v1480 = vadd.s32 %v1340, 16
        %v1481 = vadd.s32 %v1347, 16
        %v1482 = vadd.s32 %v1354, 16
        %v1483 = vsel %vm1419, %v1451, %v1137
        %v1484 = vsel %vm1420, %v1452, %v1144
        %v1485 = vsel %vm1421, %v1453, %v1151
        %v1486 = vsel %vm1422, %v1454, %v1158
        %v1487 = vsel %vm1423, %v1455, %v1165
        %v1488 = vsel %vm1424, %v1456, %v1172
        %v1489 = vsel %vm1425, %v1457, %v1179
        %v1490 = vsel %vm1426, %v1458, %v1186
        %v1491 = vsel %vm1427, %v1459, %v1193
        %v1492 = vsel %vm1428, %v1460, %v1200
        %v1493 = vsel %vm1429, %v1461, %v1207
        %v1494 = vsel %vm1430, %v1462, %v1214
        %v1495 = vsel %vm1431, %v1463, %v1221
        %v1496 = vsel %vm1432, %v1464, %v1228
        %v1497 = vsel %vm1433, %v1465, %v1235
        %v1498 = vsel %vm1434, %v1466, %v1242
        %v1499 = vsel %vm1435, %v1467, %v1249
        %v1500 = vsel %vm1436, %v1468, %v1256
        %v1501 = vsel %vm1437, %v1469, %v1263
        %v1502 = vsel %vm1438, %v1470, %v1270
        %v1503 = vsel %vm1439, %v1471, %v1277
        %v1504 = vsel %vm1440, %v1472, %v1284
        %v1505 = vsel %vm1441, %v1473, %v1291
        %v1506 = vsel %vm1442, %v1474, %v1298
        %v1507 = vsel %vm1443, %v1475, %v1305
        %v1508 = vsel %vm1444, %v1476, %v1312
        %v1509 = vsel %vm1445, %v1477, %v1319
        %v1510 = vsel %vm1446, %v1478, %v1326
        %v1511 = vsel %vm1447, %v1479, %v1333
        %v1512 = vsel %vm1448, %v1480, %v1340
        %v1513 = vsel %vm1449, %v1481, %v1347
        %v1514 = vsel %vm1450, %v1482, %v1354
        %vm1515 = vcmp.ne.s32.totalorder %v1483, 0
        %vm1516 = vcmp.ne.s32.totalorder %v1484, 0
        %vm1517 = vcmp.ne.s32.totalorder %v1485, 0
        %vm1518 = vcmp.ne.s32.totalorder %v1486, 0
        %vm1519 = vcmp.ne.s32.totalorder %v1487, 0
        %vm1520 = vcmp.ne.s32.totalorder %v1488, 0
        %vm1521 = vcmp.ne.s32.totalorder %v1489, 0
        %vm1522 = vcmp.ne.s32.totalorder %v1490, 0
        %vm1523 = vcmp.ne.s32.totalorder %v1491, 0
        %vm1524 = vcmp.ne.s32.totalorder %v1492, 0
        %vm1525 = vcmp.ne.s32.totalorder %v1493, 0
        %vm1526 = vcmp.ne.s32.totalorder %v1494, 0
        %vm1527 = vcmp.ne.s32.totalorder %v1495, 0
        %vm1528 = vcmp.ne.s32.totalorder %v1496, 0
        %vm1529 = vcmp.ne.s32.totalorder %v1497, 0
        %vm1530 = vcmp.ne.s32.totalorder %v1498, 0
        %vm1531 = vcmp.ne.s32.totalorder %v1499, 0
        %vm1532 = vcmp.ne.s32.totalorder %v1500, 0
        %vm1533 = vcmp.ne.s32.totalorder %v1501, 0
        %vm1534 = vcmp.ne.s32.totalorder %v1502, 0
        %vm1535 = vcmp.ne.s32.totalorder %v1503, 0
        %vm1536 = vcmp.ne.s32.totalorder %v1504, 0
        %vm1537 = vcmp.ne.s32.totalorder %v1505, 0
        %vm1538 = vcmp.ne.s32.totalorder %v1506, 0
        %vm1539 = vcmp.ne.s32.totalorder %v1507, 0
        %vm1540 = vcmp.ne.s32.totalorder %v1508, 0
        %vm1541 = vcmp.ne.s32.totalorder %v1509, 0
        %vm1542 = vcmp.ne.s32.totalorder %v1510, 0
        %vm1543 = vcmp.ne.s32.totalorder %v1511, 0
        %vm1544 = vcmp.ne.s32.totalorder %v1512, 0
        %vm1545 = vcmp.ne.s32.totalorder %v1513, 0
        %vm1546 = vcmp.ne.s32.totalorder %v1514, 0
        %v1547 = vsel %vm1515, 1.0, 0.0
        %v1548 = vsel %vm1516, 1.0, 0.0
        %v1549 = vsel %vm1517, 1.0, 0.0
        %v1550 = vsel %vm1518, 1.0, 0.0
        %v1551 = vsel %vm1519, 1.0, 0.0
        %v1552 = vsel %vm1520, 1.0, 0.0
        %v1553 = vsel %vm1521, 1.0, 0.0
        %v1554 = vsel %vm1522, 1.0, 0.0
        %v1555 = vsel %vm1523, 1.0, 0.0
        %v1556 = vsel %vm1524, 1.0, 0.0
        %v1557 = vsel %vm1525, 1.0, 0.0
        %v1558 = vsel %vm1526, 1.0, 0.0
        %v1559 = vsel %vm1527, 1.0, 0.0
        %v1560 = vsel %vm1528, 1.0, 0.0
        %v1561 = vsel %vm1529, 1.0, 0.0
        %v1562 = vsel %vm1530, 1.0, 0.0
        %v1563 = vsel %vm1531, 1.0, 0.0
        %v1564 = vsel %vm1532, 1.0, 0.0
        %v1565 = vsel %vm1533, 1.0, 0.0
        %v1566 = vsel %vm1534, 1.0, 0.0
        %v1567 = vsel %vm1535, 1.0, 0.0
        %v1568 = vsel %vm1536, 1.0, 0.0
        %v1569 = vsel %vm1537, 1.0, 0.0
        %v1570 = vsel %vm1538, 1.0, 0.0
        %v1571 = vsel %vm1539, 1.0, 0.0
        %v1572 = vsel %vm1540, 1.0, 0.0
        %v1573 = vsel %vm1541, 1.0, 0.0
        %v1574 = vsel %vm1542, 1.0, 0.0
        %v1575 = vsel %vm1543, 1.0, 0.0
        %v1576 = vsel %vm1544, 1.0, 0.0
        %v1577 = vsel %vm1545, 1.0, 0.0
        %v1578 = vsel %vm1546, 1.0, 0.0
        %vm1579 = vcmp.ne.s32.totalorder %v1483, 15
        %vm1580 = vcmp.ne.s32.totalorder %v1484, 15
        %vm1581 = vcmp.ne.s32.totalorder %v1485, 15
        %vm1582 = vcmp.ne.s32.totalorder %v1486, 15
        %vm1583 = vcmp.ne.s32.totalorder %v1487, 15
        %vm1584 = vcmp.ne.s32.totalorder %v1488, 15
        %vm1585 = vcmp.ne.s32.totalorder %v1489, 15
        %vm1586 = vcmp.ne.s32.totalorder %v1490, 15
        %vm1587 = vcmp.ne.s32.totalorder %v1491, 15
        %vm1588 = vcmp.ne.s32.totalorder %v1492, 15
        %vm1589 = vcmp.ne.s32.totalorder %v1493, 15
        %vm1590 = vcmp.ne.s32.totalorder %v1494, 15
        %vm1591 = vcmp.ne.s32.totalorder %v1495, 15
        %vm1592 = vcmp.ne.s32.totalorder %v1496, 15
        %vm1593 = vcmp.ne.s32.totalorder %v1497, 15
        %vm1594 = vcmp.ne.s32.totalorder %v1498, 15
        %vm1595 = vcmp.ne.s32.totalorder %v1499, 15
        %vm1596 = vcmp.ne.s32.totalorder %v1500, 15
        %vm1597 = vcmp.ne.s32.totalorder %v1501, 15
        %vm1598 = vcmp.ne.s32.totalorder %v1502, 15
        %vm1599 = vcmp.ne.s32.totalorder %v1503, 15
        %vm1600 = vcmp.ne.s32.totalorder %v1504, 15
        %vm1601 = vcmp.ne.s32.totalorder %v1505, 15
        %vm1602 = vcmp.ne.s32.totalorder %v1506, 15
        %vm1603 = vcmp.ne.s32.totalorder %v1507, 15
        %vm1604 = vcmp.ne.s32.totalorder %v1508, 15
        %vm1605 = vcmp.ne.s32.totalorder %v1509, 15
        %vm1606 = vcmp.ne.s32.totalorder %v1510, 15
        %vm1607 = vcmp.ne.s32.totalorder %v1511, 15
        %vm1608 = vcmp.ne.s32.totalorder %v1512, 15
        %vm1609 = vcmp.ne.s32.totalorder %v1513, 15
        %vm1610 = vcmp.ne.s32.totalorder %v1514, 15
        %v1611 = vsel %vm1579, 1.0, 0.0
        %v1612 = vsel %vm1580, 1.0, 0.0
        %v1613 = vsel %vm1581, 1.0, 0.0
        %v1614 = vsel %vm1582, 1.0, 0.0
        %v1615 = vsel %vm1583, 1.0, 0.0
        %v1616 = vsel %vm1584, 1.0, 0.0
        %v1617 = vsel %vm1585, 1.0, 0.0
        %v1618 = vsel %vm1586, 1.0, 0.0
        %v1619 = vsel %vm1587, 1.0, 0.0
        %v1620 = vsel %vm1588, 1.0, 0.0
        %v1621 = vsel %vm1589, 1.0, 0.0
        %v1622 = vsel %vm1590, 1.0, 0.0
        %v1623 = vsel %vm1591, 1.0, 0.0
        %v1624 = vsel %vm1592, 1.0, 0.0
        %v1625 = vsel %vm1593, 1.0, 0.0
        %v1626 = vsel %vm1594, 1.0, 0.0
        %v1627 = vsel %vm1595, 1.0, 0.0
        %v1628 = vsel %vm1596, 1.0, 0.0
        %v1629 = vsel %vm1597, 1.0, 0.0
        %v1630 = vsel %vm1598, 1.0, 0.0
        %v1631 = vsel %vm1599, 1.0, 0.0
        %v1632 = vsel %vm1600, 1.0, 0.0
        %v1633 = vsel %vm1601, 1.0, 0.0
        %v1634 = vsel %vm1602, 1.0, 0.0
        %v1635 = vsel %vm1603, 1.0, 0.0
        %v1636 = vsel %vm1604, 1.0, 0.0
        %v1637 = vsel %vm1605, 1.0, 0.0
        %v1638 = vsel %vm1606, 1.0, 0.0
        %v1639 = vsel %vm1607, 1.0, 0.0
        %v1640 = vsel %vm1608, 1.0, 0.0
        %v1641 = vsel %vm1609, 1.0, 0.0
        %v1642 = vsel %vm1610, 1.0, 0.0
        %v1643 = vld [vmem:[#allocation3] sm:$0xf]
        %v1644 = vld [vmem:[#allocation3 + $0x4] sm:$0xf]
        %v1645 = vld [vmem:[#allocation3 + $0x8] sm:$0xf]
        %v1646 = vld [vmem:[#allocation3 + $0xc] sm:$0xf]
        %v1647 = vld [vmem:[#allocation3 + $0x10] sm:$0xf]
        %v1648 = vld [vmem:[#allocation3 + $0x14] sm:$0xf]
        %v1649 = vld [vmem:[#allocation3 + $0x18] sm:$0xf]
        %v1650 = vld [vmem:[#allocation3 + $0x1c] sm:$0xf]
        %v1651 = vld [vmem:[#allocation3 + $0x20] sm:$0xf]
        %v1652 = vld [vmem:[#allocation3 + $0x24] sm:$0xf]
        %v1653 = vld [vmem:[#allocation3 + $0x28] sm:$0xf]
        %v1654 = vld [vmem:[#allocation3 + $0x2c] sm:$0xf]
        %v1655 = vld [vmem:[#allocation3 + $0x30] sm:$0xf]
        %v1656 = vld [vmem:[#allocation3 + $0x34] sm:$0xf]
        %v1657 = vld [vmem:[#allocation3 + $0x38] sm:$0xf]
        %v1658 = vld [vmem:[#allocation3 + $0x3c] sm:$0xf]
        %s1659 = scalar_lea.vmem [#allocation3], 64
        %v1660 = vld [vmem:[%s1659] sm:$0xf]
        %v1661 = vld [vmem:[%s1659 + $0x4] sm:$0xf]
        %v1662 = vld [vmem:[%s1659 + $0x8] sm:$0xf]
        %v1663 = vld [vmem:[%s1659 + $0xc] sm:$0xf]
        %v1664 = vld [vmem:[%s1659 + $0x10] sm:$0xf]
        %v1665 = vld [vmem:[%s1659 + $0x14] sm:$0xf]
        %v1666 = vld [vmem:[%s1659 + $0x18] sm:$0xf]
        %v1667 = vld [vmem:[%s1659 + $0x1c] sm:$0xf]
        %v1668 = vld [vmem:[%s1659 + $0x20] sm:$0xf]
        %v1669 = vld [vmem:[%s1659 + $0x24] sm:$0xf]
        %v1670 = vld [vmem:[%s1659 + $0x28] sm:$0xf]
        %v1671 = vld [vmem:[%s1659 + $0x2c] sm:$0xf]
        %v1672 = vld [vmem:[%s1659 + $0x30] sm:$0xf]
        %v1673 = vld [vmem:[%s1659 + $0x34] sm:$0xf]
        %v1674 = vld [vmem:[%s1659 + $0x38] sm:$0xf]
        %v1675 = vld [vmem:[%s1659 + $0x3c] sm:$0xf]
        %s1676 = scalar_lea.vmem [#allocation3], 128
        %v1677 = vld [vmem:[%s1676] sm:$0xf]
        %v1678 = vld [vmem:[%s1676 + $0x4] sm:$0xf]
        %v1679 = vld [vmem:[%s1676 + $0x8] sm:$0xf]
        %v1680 = vld [vmem:[%s1676 + $0xc] sm:$0xf]
        %v1681 = vld [vmem:[%s1676 + $0x10] sm:$0xf]
        %v1682 = vld [vmem:[%s1676 + $0x14] sm:$0xf]
        %v1683 = vld [vmem:[%s1676 + $0x18] sm:$0xf]
        %v1684 = vld [vmem:[%s1676 + $0x1c] sm:$0xf]
        %v1685 = vld [vmem:[%s1676 + $0x20] sm:$0xf]
        %v1686 = vld [vmem:[%s1676 + $0x24] sm:$0xf]
        %v1687 = vld [vmem:[%s1676 + $0x28] sm:$0xf]
        %v1688 = vld [vmem:[%s1676 + $0x2c] sm:$0xf]
        %v1689 = vld [vmem:[%s1676 + $0x30] sm:$0xf]
        %v1690 = vld [vmem:[%s1676 + $0x34] sm:$0xf]
        %v1691 = vld [vmem:[%s1676 + $0x38] sm:$0xf]
        %v1692 = vld [vmem:[%s1676 + $0x3c] sm:$0xf]
        %s1693 = scalar_lea.vmem [#allocation3], 192
        %v1694 = vld [vmem:[%s1693] sm:$0xf]
        %v1695 = vld [vmem:[%s1693 + $0x4] sm:$0xf]
        %v1696 = vld [vmem:[%s1693 + $0x8] sm:$0xf]
        %v1697 = vld [vmem:[%s1693 + $0xc] sm:$0xf]
        %v1698 = vld [vmem:[%s1693 + $0x10] sm:$0xf]
        %v1699 = vld [vmem:[%s1693 + $0x14] sm:$0xf]
        %v1700 = vld [vmem:[%s1693 + $0x18] sm:$0xf]
        %v1701 = vld [vmem:[%s1693 + $0x1c] sm:$0xf]
        %v1702 = vld [vmem:[%s1693 + $0x20] sm:$0xf]
        %v1703 = vld [vmem:[%s1693 + $0x24] sm:$0xf]
        %v1704 = vld [vmem:[%s1693 + $0x28] sm:$0xf]
        %v1705 = vld [vmem:[%s1693 + $0x2c] sm:$0xf]
        %v1706 = vld [vmem:[%s1693 + $0x30] sm:$0xf]
        %v1707 = vld [vmem:[%s1693 + $0x34] sm:$0xf]
        %v1708 = vld [vmem:[%s1693 + $0x38] sm:$0xf]
        %v1709 = vld [vmem:[%s1693 + $0x3c] sm:$0xf]
        %s1710 = scalar_lea.vmem [#allocation3], 256
        %v1711 = vld [vmem:[%s1710] sm:$0xf]
        %v1712 = vld [vmem:[%s1710 + $0x4] sm:$0xf]
        %v1713 = vld [vmem:[%s1710 + $0x8] sm:$0xf]
        %v1714 = vld [vmem:[%s1710 + $0xc] sm:$0xf]
        %v1715 = vld [vmem:[%s1710 + $0x10] sm:$0xf]
        %v1716 = vld [vmem:[%s1710 + $0x14] sm:$0xf]
        %v1717 = vld [vmem:[%s1710 + $0x18] sm:$0xf]
        %v1718 = vld [vmem:[%s1710 + $0x1c] sm:$0xf]
        %v1719 = vld [vmem:[%s1710 + $0x20] sm:$0xf]
        %v1720 = vld [vmem:[%s1710 + $0x24] sm:$0xf]
        %v1721 = vld [vmem:[%s1710 + $0x28] sm:$0xf]
        %v1722 = vld [vmem:[%s1710 + $0x2c] sm:$0xf]
        %v1723 = vld [vmem:[%s1710 + $0x30] sm:$0xf]
        %v1724 = vld [vmem:[%s1710 + $0x34] sm:$0xf]
        %v1725 = vld [vmem:[%s1710 + $0x38] sm:$0xf]
        %v1726 = vld [vmem:[%s1710 + $0x3c] sm:$0xf]
        %s1727 = scalar_lea.vmem [#allocation3], 320
        %v1728 = vld [vmem:[%s1727] sm:$0xf]
        %v1729 = vld [vmem:[%s1727 + $0x4] sm:$0xf]
        %v1730 = vld [vmem:[%s1727 + $0x8] sm:$0xf]
        %v1731 = vld [vmem:[%s1727 + $0xc] sm:$0xf]
        %v1732 = vld [vmem:[%s1727 + $0x10] sm:$0xf]
        %v1733 = vld [vmem:[%s1727 + $0x14] sm:$0xf]
        %v1734 = vld [vmem:[%s1727 + $0x18] sm:$0xf]
        %v1735 = vld [vmem:[%s1727 + $0x1c] sm:$0xf]
        %v1736 = vld [vmem:[%s1727 + $0x20] sm:$0xf]
        %v1737 = vld [vmem:[%s1727 + $0x24] sm:$0xf]
        %v1738 = vld [vmem:[%s1727 + $0x28] sm:$0xf]
        %v1739 = vld [vmem:[%s1727 + $0x2c] sm:$0xf]
        %v1740 = vld [vmem:[%s1727 + $0x30] sm:$0xf]
        %v1741 = vld [vmem:[%s1727 + $0x34] sm:$0xf]
        %v1742 = vld [vmem:[%s1727 + $0x38] sm:$0xf]
        %v1743 = vld [vmem:[%s1727 + $0x3c] sm:$0xf]
        %s1744 = scalar_lea.vmem [#allocation3], 384
        %v1745 = vld [vmem:[%s1744] sm:$0xf]
        %v1746 = vld [vmem:[%s1744 + $0x4] sm:$0xf]
        %v1747 = vld [vmem:[%s1744 + $0x8] sm:$0xf]
        %v1748 = vld [vmem:[%s1744 + $0xc] sm:$0xf]
        %v1749 = vld [vmem:[%s1744 + $0x10] sm:$0xf]
        %v1750 = vld [vmem:[%s1744 + $0x14] sm:$0xf]
        %v1751 = vld [vmem:[%s1744 + $0x18] sm:$0xf]
        %v1752 = vld [vmem:[%s1744 + $0x1c] sm:$0xf]
        %v1753 = vld [vmem:[%s1744 + $0x20] sm:$0xf]
        %v1754 = vld [vmem:[%s1744 + $0x24] sm:$0xf]
        %v1755 = vld [vmem:[%s1744 + $0x28] sm:$0xf]
        %v1756 = vld [vmem:[%s1744 + $0x2c] sm:$0xf]
        %v1757 = vld [vmem:[%s1744 + $0x30] sm:$0xf]
        %v1758 = vld [vmem:[%s1744 + $0x34] sm:$0xf]
        %v1759 = vld [vmem:[%s1744 + $0x38] sm:$0xf]
        %v1760 = vld [vmem:[%s1744 + $0x3c] sm:$0xf]
        %s1761 = scalar_lea.vmem [#allocation3], 448
        %v1762 = vld [vmem:[%s1761] sm:$0xf]
        %v1763 = vld [vmem:[%s1761 + $0x4] sm:$0xf]
        %v1764 = vld [vmem:[%s1761 + $0x8] sm:$0xf]
        %v1765 = vld [vmem:[%s1761 + $0xc] sm:$0xf]
        %v1766 = vld [vmem:[%s1761 + $0x10] sm:$0xf]
        %v1767 = vld [vmem:[%s1761 + $0x14] sm:$0xf]
        %v1768 = vld [vmem:[%s1761 + $0x18] sm:$0xf]
        %v1769 = vld [vmem:[%s1761 + $0x1c] sm:$0xf]
        %v1770 = vld [vmem:[%s1761 + $0x20] sm:$0xf]
        %v1771 = vld [vmem:[%s1761 + $0x24] sm:$0xf]
        %v1772 = vld [vmem:[%s1761 + $0x28] sm:$0xf]
        %v1773 = vld [vmem:[%s1761 + $0x2c] sm:$0xf]
        %v1774 = vld [vmem:[%s1761 + $0x30] sm:$0xf]
        %v1775 = vld [vmem:[%s1761 + $0x34] sm:$0xf]
        %v1776 = vld [vmem:[%s1761 + $0x38] sm:$0xf]
        %v1777 = vld [vmem:[%s1761 + $0x3c] sm:$0xf]
        %s1778 = scalar_lea.vmem [#allocation3], 512
        %v1779 = vld [vmem:[%s1778] sm:$0xf]
        %v1780 = vld [vmem:[%s1778 + $0x4] sm:$0xf]
        %v1781 = vld [vmem:[%s1778 + $0x8] sm:$0xf]
        %v1782 = vld [vmem:[%s1778 + $0xc] sm:$0xf]
        %v1783 = vld [vmem:[%s1778 + $0x10] sm:$0xf]
        %v1784 = vld [vmem:[%s1778 + $0x14] sm:$0xf]
        %v1785 = vld [vmem:[%s1778 + $0x18] sm:$0xf]
        %v1786 = vld [vmem:[%s1778 + $0x1c] sm:$0xf]
        %v1787 = vld [vmem:[%s1778 + $0x20] sm:$0xf]
        %v1788 = vld [vmem:[%s1778 + $0x24] sm:$0xf]
        %v1789 = vld [vmem:[%s1778 + $0x28] sm:$0xf]
        %v1790 = vld [vmem:[%s1778 + $0x2c] sm:$0xf]
        %v1791 = vld [vmem:[%s1778 + $0x30] sm:$0xf]
        %v1792 = vld [vmem:[%s1778 + $0x34] sm:$0xf]
        %v1793 = vld [vmem:[%s1778 + $0x38] sm:$0xf]
        %v1794 = vld [vmem:[%s1778 + $0x3c] sm:$0xf]
        %v1795 = vld [vmem:[%s5] sm:$0x1]
        %v1796 = vld [vmem:[%s6] sm:$0x1]
        %v1797 = vld [vmem:[#allocation2 + $0x8] sm:$0xff]
        %v1798 = vld [vmem:[#allocation2 + $0x10] sm:$0xff]
        %v1799 = vld [vmem:[#allocation2 + $0x18] sm:$0xff]
        %v1800 = vld [vmem:[#allocation2 + $0x20] sm:$0xff]
        %v1801 = vld [vmem:[#allocation2 + $0x28] sm:$0xff]
        %v1802 = vld [vmem:[#allocation2 + $0x30] sm:$0xff]
        %v1803 = vld [vmem:[#allocation2 + $0x38] sm:$0xff]
        %v1804 = vld [vmem:[#allocation2 + $0x40] sm:$0xff]
        %v1805 = vld [vmem:[#allocation2 + $0x48] sm:$0xff]
        %v1806 = vld [vmem:[#allocation2 + $0x50] sm:$0xff]
        %v1807 = vld [vmem:[#allocation2 + $0x58] sm:$0xff]
        %v1808 = vld [vmem:[#allocation2 + $0x60] sm:$0xff]
        %v1809 = vld [vmem:[#allocation2 + $0x68] sm:$0xff]
        %v1810 = vld [vmem:[#allocation2 + $0x70] sm:$0xff]
        %v1811 = vld [vmem:[#allocation2 + $0x78] sm:$0xff]
        %v1812 = vld [vmem:[#allocation2 + $0x80] sm:$0xff]
        %v1813 = vld [vmem:[#allocation2 + $0x88] sm:$0xff]
        %v1830 = vunpack.c.l.b16 %v1694
        %v1831 = vunpack.c.l.b16 %v1695
        %v1832 = vunpack.c.l.b16 %v1696
        %v1833 = vunpack.c.l.b16 %v1697
        %v1834 = vunpack.c.l.b16 %v1698
        %v1835 = vunpack.c.l.b16 %v1699
        %v1836 = vunpack.c.l.b16 %v1700
        %v1837 = vunpack.c.l.b16 %v1701
        %v1838 = vunpack.c.l.b16 %v1702
        %v1839 = vunpack.c.l.b16 %v1703
        %v1840 = vunpack.c.l.b16 %v1704
        %v1841 = vunpack.c.l.b16 %v1705
        %v1842 = vunpack.c.l.b16 %v1706
        %v1843 = vunpack.c.l.b16 %v1707
        %v1844 = vunpack.c.l.b16 %v1708
        %v1845 = vunpack.c.l.b16 %v1709
        %v1846 = vpack.c.b16 %v1831, %v1830
        %v1847 = vpack.c.b16 %v1833, %v1832
        %v1848 = vpack.c.b16 %v1835, %v1834
        %v1849 = vpack.c.b16 %v1837, %v1836
        %v1850 = vpack.c.b16 %v1839, %v1838
        %v1851 = vpack.c.b16 %v1841, %v1840
        %v1852 = vpack.c.b16 %v1843, %v1842
        %v1853 = vpack.c.b16 %v1845, %v1844
        %1862 = vmatprep.subr.bf16.mxu0 0
        %1863 = vmatpush1.bf16.msra.mxu0 %v1846
        %1864 = vmatprep.subr.bf16.mxu0 0
        %1865 = vmatpush1.bf16.msra.mxu0 %v1847
        %1866 = vmatprep.subr.bf16.mxu0 0
        %1867 = vmatpush1.bf16.msra.mxu0 %v1848
        %1868 = vmatprep.subr.bf16.mxu0 0
        %1869 = vmatpush1.bf16.msra.mxu0 %v1849
        %1870 = vmatprep.subr.bf16.mxu0 0
        %1871 = vmatpush1.bf16.msra.mxu0 %v1850
        %1872 = vmatprep.subr.bf16.mxu0 0
        %1873 = vmatpush1.bf16.msra.mxu0 %v1851
        %1874 = vmatprep.subr.bf16.mxu0 0
        %1875 = vmatpush1.bf16.msra.mxu0 %v1852
        %1876 = vmatprep.subr.bf16.mxu0 0
        %1877 = vmatpush1.bf16.msra.mxu0 %v1853
        %1878 = vmatprep.subr.bf16.mxu0 0
        %1879 = vmatpush1.bf16.msra.mxu0 0
        %1880 = vmatprep.subr.bf16.mxu0 0
        %1881 = vmatpush1.bf16.msra.mxu0 0
        %1882 = vmatprep.subr.bf16.mxu0 0
        %1883 = vmatpush1.bf16.msra.mxu0 0
        %1884 = vmatprep.subr.bf16.mxu0 0
        %1885 = vmatpush1.bf16.msra.mxu0 0
        %1886 = vmatprep.subr.bf16.mxu0 0
        %1887 = vmatpush1.bf16.msra.mxu0 0
        %1888 = vmatprep.subr.bf16.mxu0 0
        %1889 = vmatpush1.bf16.msra.mxu0 0
        %1890 = vmatprep.subr.bf16.mxu0 0
        %1891 = vmatpush1.bf16.msra.mxu0 0
        %1892 = vmatprep.subr.bf16.mxu0 0
        %1893 = vmatpush1.bf16.msra.mxu0 0
        %1894 = vmatprep.mubr.bf16.mxu0 0
        %1895 = vmatmul.mubr.bf16.gmra.mrb[0].mxu0 %v1798
        %v1896 = vpop.f32.mrb[0].mxu0
        %v1897 = vadd.f32 0.0, %v1896
        %v1898 = vpop.f32.mrb[0].mxu0
        %v1899 = vpop.f32.mrb[0].mxu0
        %v1900 = vadd.f32 0.0, %v1899
        %v1901 = vpop.f32.mrb[0].mxu0
        %1902 = vmatprep.mubr.bf16.mxu0 0
        %1903 = vmatmul.mubr.bf16.gmra.mrb[0].mxu0 %v1799
        %v1904 = vpop.f32.mrb[0].mxu0
        %v1905 = vadd.f32 0.0, %v1904
        %v1906 = vpop.f32.mrb[0].mxu0
        %v1907 = vpop.f32.mrb[0].mxu0
        %v1908 = vadd.f32 0.0, %v1907
        %v1909 = vpop.f32.mrb[0].mxu0
        %1910 = vmatprep.mubr.bf16.mxu0 0
        %1911 = vmatmul.mubr.bf16.gmra.mrb[0].mxu0 %v1800
        %v1912 = vpop.f32.mrb[0].mxu0
        %v1913 = vadd.f32 0.0, %v1912
        %v1914 = vpop.f32.mrb[0].mxu0
        %v1915 = vpop.f32.mrb[0].mxu0
        %v1916 = vadd.f32 0.0, %v1915
        %v1917 = vpop.f32.mrb[0].mxu0
        %1918 = vmatprep.mubr.bf16.mxu0 0
        %1919 = vmatmul.mubr.bf16.gmra.mrb[0].mxu0 %v1801
        %v1920 = vpop.f32.mrb[0].mxu0
        %v1921 = vadd.f32 0.0, %v1920
        %v1922 = vpop.f32.mrb[0].mxu0
        %v1923 = vpop.f32.mrb[0].mxu0
        %v1924 = vadd.f32 0.0, %v1923
        %v1925 = vpop.f32.mrb[0].mxu0
        %1926 = vmatprep.mubr.bf16.mxu0 0
        %1927 = vmatmul.mubr.bf16.gmra.mrb[0].mxu0 %v1802
        %v1928 = vpop.f32.mrb[0].mxu0
        %v1929 = vadd.f32 0.0, %v1928
        %v1930 = vpop.f32.mrb[0].mxu0
        %v1931 = vpop.f32.mrb[0].mxu0
        %v1932 = vadd.f32 0.0, %v1931
        %v1933 = vpop.f32.mrb[0].mxu0
        %1934 = vmatprep.mubr.bf16.mxu0 0
        %1935 = vmatmul.mubr.bf16.gmra.mrb[0].mxu0 %v1803
        %v1936 = vpop.f32.mrb[0].mxu0
        %v1937 = vadd.f32 0.0, %v1936
        %v1938 = vpop.f32.mrb[0].mxu0
        %v1939 = vpop.f32.mrb[0].mxu0
        %v1940 = vadd.f32 0.0, %v1939
        %v1941 = vpop.f32.mrb[0].mxu0
        %1942 = vmatprep.mubr.bf16.mxu0 0
        %1943 = vmatmul.mubr.bf16.gmra.mrb[0].mxu0 %v1804
        %v1944 = vpop.f32.mrb[0].mxu0
        %v1945 = vadd.f32 0.0, %v1944
        %v1946 = vpop.f32.mrb[0].mxu0
        %v1947 = vpop.f32.mrb[0].mxu0
        %v1948 = vadd.f32 0.0, %v1947
        %v1949 = vpop.f32.mrb[0].mxu0
        %1950 = vmatprep.mubr.bf16.mxu0 0
        %1951 = vmatmul.mubr.bf16.gmra.mrb[0].mxu0 %v1805
        %v1952 = vpop.f32.mrb[0].mxu0
        %v1953 = vadd.f32 0.0, %v1952
        %v1954 = vpop.f32.mrb[0].mxu0
        %v1955 = vpop.f32.mrb[0].mxu0
        %v1956 = vadd.f32 0.0, %v1955
        %v1957 = vpop.f32.mrb[0].mxu0
        %1958 = vmatprep.mubr.bf16.mxu0 0
        %1959 = vmatmul.mubr.bf16.gmra.mrb[0].mxu0 %v1806
        %v1960 = vpop.f32.mrb[0].mxu0
        %v1961 = vadd.f32 0.0, %v1960
        %v1962 = vpop.f32.mrb[0].mxu0
        %v1963 = vpop.f32.mrb[0].mxu0
        %v1964 = vadd.f32 0.0, %v1963
        %v1965 = vpop.f32.mrb[0].mxu0
        %1966 = vmatprep.mubr.bf16.mxu0 0
        %1967 = vmatmul.mubr.bf16.gmra.mrb[0].mxu0 %v1807
        %v1968 = vpop.f32.mrb[0].mxu0
        %v1969 = vadd.f32 0.0, %v1968
        %v1970 = vpop.f32.mrb[0].mxu0
        %v1971 = vpop.f32.mrb[0].mxu0
        %v1972 = vadd.f32 0.0, %v1971
        %v1973 = vpop.f32.mrb[0].mxu0
        %1974 = vmatprep.mubr.bf16.mxu0 0
        %1975 = vmatmul.mubr.bf16.gmra.mrb[0].mxu0 %v1808
        %v1976 = vpop.f32.mrb[0].mxu0
        %v1977 = vadd.f32 0.0, %v1976
        %v1978 = vpop.f32.mrb[0].mxu0
        %v1979 = vpop.f32.mrb[0].mxu0
        %v1980 = vadd.f32 0.0, %v1979
        %v1981 = vpop.f32.mrb[0].mxu0
        %1982 = vmatprep.mubr.bf16.mxu0 0
        %1983 = vmatmul.mubr.bf16.gmra.mrb[0].mxu0 %v1809
        %v1984 = vpop.f32.mrb[0].mxu0
        %v1985 = vadd.f32 0.0, %v1984
        %v1986 = vpop.f32.mrb[0].mxu0
        %v1987 = vpop.f32.mrb[0].mxu0
        %v1988 = vadd.f32 0.0, %v1987
        %v1989 = vpop.f32.mrb[0].mxu0
        %1990 = vmatprep.mubr.bf16.mxu0 0
        %1991 = vmatmul.mubr.bf16.gmra.mrb[0].mxu0 %v1810
        %v1992 = vpop.f32.mrb[0].mxu0
        %v1993 = vadd.f32 0.0, %v1992
        %v1994 = vpop.f32.mrb[0].mxu0
        %v1995 = vpop.f32.mrb[0].mxu0
        %v1996 = vadd.f32 0.0, %v1995
        %v1997 = vpop.f32.mrb[0].mxu0
        %1998 = vmatprep.mubr.bf16.mxu0 0
        %1999 = vmatmul.mubr.bf16.gmra.mrb[0].mxu0 %v1811
        %v2000 = vpop.f32.mrb[0].mxu0
        %v2001 = vadd.f32 0.0, %v2000
        %v2002 = vpop.f32.mrb[0].mxu0
        %v2003 = vpop.f32.mrb[0].mxu0
        %v2004 = vadd.f32 0.0, %v2003
        %v2005 = vpop.f32.mrb[0].mxu0
        %2006 = vmatprep.mubr.bf16.mxu0 0
        %2007 = vmatmul.mubr.bf16.gmra.mrb[0].mxu0 %v1812
        %v2008 = vpop.f32.mrb[0].mxu0
        %v2009 = vadd.f32 0.0, %v2008
        %v2010 = vpop.f32.mrb[0].mxu0
        %v2011 = vpop.f32.mrb[0].mxu0
        %v2012 = vadd.f32 0.0, %v2011
        %v2013 = vpop.f32.mrb[0].mxu0
        %2014 = vmatprep.mubr.bf16.mxu0 0
        %2015 = vmatmul.mubr.bf16.gmra.mrb[0].mxu0 %v1813
        %v2016 = vpop.f32.mrb[0].mxu0
        %v2017 = vadd.f32 0.0, %v2016
        %v2018 = vpop.f32.mrb[0].mxu0
        %v2019 = vpop.f32.mrb[0].mxu0
        %v2020 = vadd.f32 0.0, %v2019
        %v2021 = vpop.f32.mrb[0].mxu0
        %2022 = vdwg.mxu0
        %v2039 = vunpack.c.l.b16 %v1711
        %v2040 = vunpack.c.l.b16 %v1712
        %v2041 = vunpack.c.l.b16 %v1713
        %v2042 = vunpack.c.l.b16 %v1714
        %v2043 = vunpack.c.l.b16 %v1715
        %v2044 = vunpack.c.l.b16 %v1716
        %v2045 = vunpack.c.l.b16 %v1717
        %v2046 = vunpack.c.l.b16 %v1718
        %v2047 = vunpack.c.l.b16 %v1719
        %v2048 = vunpack.c.l.b16 %v1720
        %v2049 = vunpack.c.l.b16 %v1721
        %v2050 = vunpack.c.l.b16 %v1722
        %v2051 = vunpack.c.l.b16 %v1723
        %v2052 = vunpack.c.l.b16 %v1724
        %v2053 = vunpack.c.l.b16 %v1725
        %v2054 = vunpack.c.l.b16 %v1726
        %v2055 = vpack.c.b16 %v2040, %v2039
        %v2056 = vpack.c.b16 %v2042, %v2041
        %v2057 = vpack.c.b16 %v2044, %v2043
        %v2058 = vpack.c.b16 %v2046, %v2045
        %v2059 = vpack.c.b16 %v2048, %v2047
        %v2060 = vpack.c.b16 %v2050, %v2049
        %v2061 = vpack.c.b16 %v2052, %v2051
        %v2062 = vpack.c.b16 %v2054, %v2053
        %2071 = vmatprep.subr.bf16.mxu0 0
        %2072 = vmatpush1.bf16.msra.mxu0 %v2055
        %2073 = vmatprep.subr.bf16.mxu0 0
        %2074 = vmatpush1.bf16.msra.mxu0 %v2056
        %2075 = vmatprep.subr.bf16.mxu0 0
        %2076 = vmatpush1.bf16.msra.mxu0 %v2057
        %2077 = vmatprep.subr.bf16.mxu0 0
        %2078 = vmatpush1.bf16.msra.mxu0 %v2058
        %2079 = vmatprep.subr.bf16.mxu0 0
        %2080 = vmatpush1.bf16.msra.mxu0 %v2059
        %2081 = vmatprep.subr.bf16.mxu0 0
        %2082 = vmatpush1.bf16.msra.mxu0 %v2060
        %2083 = vmatprep.subr.bf16.mxu0 0
        %2084 = vmatpush1.bf16.msra.mxu0 %v2061
        %2085 = vmatprep.subr.bf16.mxu0 0
        %2086 = vmatpush1.bf16.msra.mxu0 %v2062
        %2087 = vmatprep.subr.bf16.mxu0 0
        %2088 = vmatpush1.bf16.msra.mxu0 0
        %2089 = vmatprep.subr.bf16.mxu0 0
        %2090 = vmatpush1.bf16.msra.mxu0 0
        %2091 = vmatprep.subr.bf16.mxu0 0
        %2092 = vmatpush1.bf16.msra.mxu0 0
        %2093 = vmatprep.subr.bf16.mxu0 0
        %2094 = vmatpush1.bf16.msra.mxu0 0
        %2095 = vmatprep.subr.bf16.mxu0 0
        %2096 = vmatpush1.bf16.msra.mxu0 0
        %2097 = vmatprep.subr.bf16.mxu0 0
        %2098 = vmatpush1.bf16.msra.mxu0 0
        %2099 = vmatprep.subr.bf16.mxu0 0
        %2100 = vmatpush1.bf16.msra.mxu0 0
        %2101 = vmatprep.subr.bf16.mxu0 0
        %2102 = vmatpush1.bf16.msra.mxu0 0
        %2103 = vmatprep.mubr.bf16.mxu0 0
        %2104 = vmatmul.mubr.bf16.gmra.mrb[0].mxu0 %v1798
        %v2105 = vpop.f32.mrb[0].mxu0
        %v2106 = vadd.f32 0.0, %v2105
        %v2107 = vpop.f32.mrb[0].mxu0
        %v2108 = vpop.f32.mrb[0].mxu0
        %v2109 = vadd.f32 0.0, %v2108
        %v2110 = vpop.f32.mrb[0].mxu0
        %2111 = vmatprep.mubr.bf16.mxu0 0
        %2112 = vmatmul.mubr.bf16.gmra.mrb[0].mxu0 %v1799
        %v2113 = vpop.f32.mrb[0].mxu0
        %v2114 = vadd.f32 0.0, %v2113
        %v2115 = vpop.f32.mrb[0].mxu0
        %v2116 = vpop.f32.mrb[0].mxu0
        %v2117 = vadd.f32 0.0, %v2116
        %v2118 = vpop.f32.mrb[0].mxu0
        %2119 = vmatprep.mubr.bf16.mxu0 0
        %2120 = vmatmul.mubr.bf16.gmra.mrb[0].mxu0 %v1800
        %v2121 = vpop.f32.mrb[0].mxu0
        %v2122 = vadd.f32 0.0, %v2121
        %v2123 = vpop.f32.mrb[0].mxu0
        %v2124 = vpop.f32.mrb[0].mxu0
        %v2125 = vadd.f32 0.0, %v2124
        %v2126 = vpop.f32.mrb[0].mxu0
        %2127 = vmatprep.mubr.bf16.mxu0 0
        %2128 = vmatmul.mubr.bf16.gmra.mrb[0].mxu0 %v1801
        %v2129 = vpop.f32.mrb[0].mxu0
        %v2130 = vadd.f32 0.0, %v2129
        %v2131 = vpop.f32.mrb[0].mxu0
        %v2132 = vpop.f32.mrb[0].mxu0
        %v2133 = vadd.f32 0.0, %v2132
        %v2134 = vpop.f32.mrb[0].mxu0
        %2135 = vmatprep.mubr.bf16.mxu0 0
        %2136 = vmatmul.mubr.bf16.gmra.mrb[0].mxu0 %v1802
        %v2137 = vpop.f32.mrb[0].mxu0
        %v2138 = vadd.f32 0.0, %v2137
        %v2139 = vpop.f32.mrb[0].mxu0
        %v2140 = vpop.f32.mrb[0].mxu0
        %v2141 = vadd.f32 0.0, %v2140
        %v2142 = vpop.f32.mrb[0].mxu0
        %2143 = vmatprep.mubr.bf16.mxu0 0
        %2144 = vmatmul.mubr.bf16.gmra.mrb[0].mxu0 %v1803
        %v2145 = vpop.f32.mrb[0].mxu0
        %v2146 = vadd.f32 0.0, %v2145
        %v2147 = vpop.f32.mrb[0].mxu0
        %v2148 = vpop.f32.mrb[0].mxu0
        %v2149 = vadd.f32 0.0, %v2148
        %v2150 = vpop.f32.mrb[0].mxu0
        %2151 = vmatprep.mubr.bf16.mxu0 0
        %2152 = vmatmul.mubr.bf16.gmra.mrb[0].mxu0 %v1804
        %v2153 = vpop.f32.mrb[0].mxu0
        %v2154 = vadd.f32 0.0, %v2153
        %v2155 = vpop.f32.mrb[0].mxu0
        %v2156 = vpop.f32.mrb[0].mxu0
        %v2157 = vadd.f32 0.0, %v2156
        %v2158 = vpop.f32.mrb[0].mxu0
        %2159 = vmatprep.mubr.bf16.mxu0 0
        %2160 = vmatmul.mubr.bf16.gmra.mrb[0].mxu0 %v1805
        %v2161 = vpop.f32.mrb[0].mxu0
        %v2162 = vadd.f32 0.0, %v2161
        %v2163 = vpop.f32.mrb[0].mxu0
        %v2164 = vpop.f32.mrb[0].mxu0
        %v2165 = vadd.f32 0.0, %v2164
        %v2166 = vpop.f32.mrb[0].mxu0
        %2167 = vmatprep.mubr.bf16.mxu0 0
        %2168 = vmatmul.mubr.bf16.gmra.mrb[0].mxu0 %v1806
        %v2169 = vpop.f32.mrb[0].mxu0
        %v2170 = vadd.f32 0.0, %v2169
        %v2171 = vpop.f32.mrb[0].mxu0
        %v2172 = vpop.f32.mrb[0].mxu0
        %v2173 = vadd.f32 0.0, %v2172
        %v2174 = vpop.f32.mrb[0].mxu0
        %2175 = vmatprep.mubr.bf16.mxu0 0
        %2176 = vmatmul.mubr.bf16.gmra.mrb[0].mxu0 %v1807
        %v2177 = vpop.f32.mrb[0].mxu0
        %v2178 = vadd.f32 0.0, %v2177
        %v2179 = vpop.f32.mrb[0].mxu0
        %v2180 = vpop.f32.mrb[0].mxu0
        %v2181 = vadd.f32 0.0, %v2180
        %v2182 = vpop.f32.mrb[0].mxu0
        %2183 = vmatprep.mubr.bf16.mxu0 0
        %2184 = vmatmul.mubr.bf16.gmra.mrb[0].mxu0 %v1808
        %v2185 = vpop.f32.mrb[0].mxu0
        %v2186 = vadd.f32 0.0, %v2185
        %v2187 = vpop.f32.mrb[0].mxu0
        %v2188 = vpop.f32.mrb[0].mxu0
        %v2189 = vadd.f32 0.0, %v2188
        %v2190 = vpop.f32.mrb[0].mxu0
        %2191 = vmatprep.mubr.bf16.mxu0 0
        %2192 = vmatmul.mubr.bf16.gmra.mrb[0].mxu0 %v1809
        %v2193 = vpop.f32.mrb[0].mxu0
        %v2194 = vadd.f32 0.0, %v2193
        %v2195 = vpop.f32.mrb[0].mxu0
        %v2196 = vpop.f32.mrb[0].mxu0
        %v2197 = vadd.f32 0.0, %v2196
        %v2198 = vpop.f32.mrb[0].mxu0
        %2199 = vmatprep.mubr.bf16.mxu0 0
        %2200 = vmatmul.mubr.bf16.gmra.mrb[0].mxu0 %v1810
        %v2201 = vpop.f32.mrb[0].mxu0
        %v2202 = vadd.f32 0.0, %v2201
        %v2203 = vpop.f32.mrb[0].mxu0
        %v2204 = vpop.f32.mrb[0].mxu0
        %v2205 = vadd.f32 0.0, %v2204
        %v2206 = vpop.f32.mrb[0].mxu0
        %2207 = vmatprep.mubr.bf16.mxu0 0
        %2208 = vmatmul.mubr.bf16.gmra.mrb[0].mxu0 %v1811
        %v2209 = vpop.f32.mrb[0].mxu0
        %v2210 = vadd.f32 0.0, %v2209
        %v2211 = vpop.f32.mrb[0].mxu0
        %v2212 = vpop.f32.mrb[0].mxu0
        %v2213 = vadd.f32 0.0, %v2212
        %v2214 = vpop.f32.mrb[0].mxu0
        %2215 = vmatprep.mubr.bf16.mxu0 0
        %2216 = vmatmul.mubr.bf16.gmra.mrb[0].mxu0 %v1812
        %v2217 = vpop.f32.mrb[0].mxu0
        %v2218 = vadd.f32 0.0, %v2217
        %v2219 = vpop.f32.mrb[0].mxu0
        %v2220 = vpop.f32.mrb[0].mxu0
        %v2221 = vadd.f32 0.0, %v2220
        %v2222 = vpop.f32.mrb[0].mxu0
        %2223 = vmatprep.mubr.bf16.mxu0 0
        %2224 = vmatmul.mubr.bf16.gmra.mrb[0].mxu0 %v1813
        %v2225 = vpop.f32.mrb[0].mxu0
        %v2226 = vadd.f32 0.0, %v2225
        %v2227 = vpop.f32.mrb[0].mxu0
        %v2228 = vpop.f32.mrb[0].mxu0
        %v2229 = vadd.f32 0.0, %v2228
        %v2230 = vpop.f32.mrb[0].mxu0
        %2231 = vdwg.mxu0
        %v2248 = vunpack.c.l.b16 %v1728
        %v2249 = vunpack.c.l.b16 %v1729
        %v2250 = vunpack.c.l.b16 %v1730
        %v2251 = vunpack.c.l.b16 %v1731
        %v2252 = vunpack.c.l.b16 %v1732
        %v2253 = vunpack.c.l.b16 %v1733
        %v2254 = vunpack.c.l.b16 %v1734
        %v2255 = vunpack.c.l.b16 %v1735
        %v2256 = vunpack.c.l.b16 %v1736
        %v2257 = vunpack.c.l.b16 %v1737
        %v2258 = vunpack.c.l.b16 %v1738
        %v2259 = vunpack.c.l.b16 %v1739
        %v2260 = vunpack.c.l.b16 %v1740
        %v2261 = vunpack.c.l.b16 %v1741
        %v2262 = vunpack.c.l.b16 %v1742
        %v2263 = vunpack.c.l.b16 %v1743
        %v2264 = vpack.c.b16 %v2249, %v2248
        %v2265 = vpack.c.b16 %v2251, %v2250
        %v2266 = vpack.c.b16 %v2253, %v2252
        %v2267 = vpack.c.b16 %v2255, %v2254
        %v2268 = vpack.c.b16 %v2257, %v2256
        %v2269 = vpack.c.b16 %v2259, %v2258
        %v2270 = vpack.c.b16 %v2261, %v2260
        %v2271 = vpack.c.b16 %v2263, %v2262
        %2280 = vmatprep.subr.bf16.mxu0 0
        %2281 = vmatpush1.bf16.msra.mxu0 %v2264
        %2282 = vmatprep.subr.bf16.mxu0 0
        %2283 = vmatpush1.bf16.msra.mxu0 %v2265
        %2284 = vmatprep.subr.bf16.mxu0 0
        %2285 = vmatpush1.bf16.msra.mxu0 %v2266
        %2286 = vmatprep.subr.bf16.mxu0 0
        %2287 = vmatpush1.bf16.msra.mxu0 %v2267
        %2288 = vmatprep.subr.bf16.mxu0 0
        %2289 = vmatpush1.bf16.msra.mxu0 %v2268
        %2290 = vmatprep.subr.bf16.mxu0 0
        %2291 = vmatpush1.bf16.msra.mxu0 %v2269
        %2292 = vmatprep.subr.bf16.mxu0 0
        %2293 = vmatpush1.bf16.msra.mxu0 %v2270
        %2294 = vmatprep.subr.bf16.mxu0 0
        %2295 = vmatpush1.bf16.msra.mxu0 %v2271
        %2296 = vmatprep.subr.bf16.mxu0 0
        %2297 = vmatpush1.bf16.msra.mxu0 0
        %2298 = vmatprep.subr.bf16.mxu0 0
        %2299 = vmatpush1.bf16.msra.mxu0 0
        %2300 = vmatprep.subr.bf16.mxu0 0
        %2301 = vmatpush1.bf16.msra.mxu0 0
        %2302 = vmatprep.subr.bf16.mxu0 0
        %2303 = vmatpush1.bf16.msra.mxu0 0
        %2304 = vmatprep.subr.bf16.mxu0 0
        %2305 = vmatpush1.bf16.msra.mxu0 0
        %2306 = vmatprep.subr.bf16.mxu0 0
        %2307 = vmatpush1.bf16.msra.mxu0 0
        %2308 = vmatprep.subr.bf16.mxu0 0
        %2309 = vmatpush1.bf16.msra.mxu0 0
        %2310 = vmatprep.subr.bf16.mxu0 0
        %2311 = vmatpush1.bf16.msra.mxu0 0
        %2312 = vmatprep.mubr.bf16.mxu0 0
        %2313 = vmatmul.mubr.bf16.gmra.mrb[0].mxu0 %v1798
        %v2314 = vpop.f32.mrb[0].mxu0
        %v2315 = vadd.f32 0.0, %v2314
        %v2316 = vpop.f32.mrb[0].mxu0
        %v2317 = vpop.f32.mrb[0].mxu0
        %v2318 = vadd.f32 0.0, %v2317
        %v2319 = vpop.f32.mrb[0].mxu0
        %2320 = vmatprep.mubr.bf16.mxu0 0
        %2321 = vmatmul.mubr.bf16.gmra.mrb[0].mxu0 %v1799
        %v2322 = vpop.f32.mrb[0].mxu0
        %v2323 = vadd.f32 0.0, %v2322
        %v2324 = vpop.f32.mrb[0].mxu0
        %v2325 = vpop.f32.mrb[0].mxu0
        %v2326 = vadd.f32 0.0, %v2325
        %v2327 = vpop.f32.mrb[0].mxu0
        %2328 = vmatprep.mubr.bf16.mxu0 0
        %2329 = vmatmul.mubr.bf16.gmra.mrb[0].mxu0 %v1800
        %v2330 = vpop.f32.mrb[0].mxu0
        %v2331 = vadd.f32 0.0, %v2330
        %v2332 = vpop.f32.mrb[0].mxu0
        %v2333 = vpop.f32.mrb[0].mxu0
        %v2334 = vadd.f32 0.0, %v2333
        %v2335 = vpop.f32.mrb[0].mxu0
        %2336 = vmatprep.mubr.bf16.mxu0 0
        %2337 = vmatmul.mubr.bf16.gmra.mrb[0].mxu0 %v1801
        %v2338 = vpop.f32.mrb[0].mxu0
        %v2339 = vadd.f32 0.0, %v2338
        %v2340 = vpop.f32.mrb[0].mxu0
        %v2341 = vpop.f32.mrb[0].mxu0
        %v2342 = vadd.f32 0.0, %v2341
        %v2343 = vpop.f32.mrb[0].mxu0
        %2344 = vmatprep.mubr.bf16.mxu0 0
        %2345 = vmatmul.mubr.bf16.gmra.mrb[0].mxu0 %v1802
        %v2346 = vpop.f32.mrb[0].mxu0
        %v2347 = vadd.f32 0.0, %v2346
        %v2348 = vpop.f32.mrb[0].mxu0
        %v2349 = vpop.f32.mrb[0].mxu0
        %v2350 = vadd.f32 0.0, %v2349
        %v2351 = vpop.f32.mrb[0].mxu0
        %2352 = vmatprep.mubr.bf16.mxu0 0
        %2353 = vmatmul.mubr.bf16.gmra.mrb[0].mxu0 %v1803
        %v2354 = vpop.f32.mrb[0].mxu0
        %v2355 = vadd.f32 0.0, %v2354
        %v2356 = vpop.f32.mrb[0].mxu0
        %v2357 = vpop.f32.mrb[0].mxu0
        %v2358 = vadd.f32 0.0, %v2357
        %v2359 = vpop.f32.mrb[0].mxu0
        %2360 = vmatprep.mubr.bf16.mxu0 0
        %2361 = vmatmul.mubr.bf16.gmra.mrb[0].mxu0 %v1804
        %v2362 = vpop.f32.mrb[0].mxu0
        %v2363 = vadd.f32 0.0, %v2362
        %v2364 = vpop.f32.mrb[0].mxu0
        %v2365 = vpop.f32.mrb[0].mxu0
        %v2366 = vadd.f32 0.0, %v2365
        %v2367 = vpop.f32.mrb[0].mxu0
        %2368 = vmatprep.mubr.bf16.mxu0 0
        %2369 = vmatmul.mubr.bf16.gmra.mrb[0].mxu0 %v1805
        %v2370 = vpop.f32.mrb[0].mxu0
        %v2371 = vadd.f32 0.0, %v2370
        %v2372 = vpop.f32.mrb[0].mxu0
        %v2373 = vpop.f32.mrb[0].mxu0
        %v2374 = vadd.f32 0.0, %v2373
        %v2375 = vpop.f32.mrb[0].mxu0
        %2376 = vmatprep.mubr.bf16.mxu0 0
        %2377 = vmatmul.mubr.bf16.gmra.mrb[0].mxu0 %v1806
        %v2378 = vpop.f32.mrb[0].mxu0
        %v2379 = vadd.f32 0.0, %v2378
        %v2380 = vpop.f32.mrb[0].mxu0
        %v2381 = vpop.f32.mrb[0].mxu0
        %v2382 = vadd.f32 0.0, %v2381
        %v2383 = vpop.f32.mrb[0].mxu0
        %2384 = vmatprep.mubr.bf16.mxu0 0
        %2385 = vmatmul.mubr.bf16.gmra.mrb[0].mxu0 %v1807
        %v2386 = vpop.f32.mrb[0].mxu0
        %v2387 = vadd.f32 0.0, %v2386
        %v2388 = vpop.f32.mrb[0].mxu0
        %v2389 = vpop.f32.mrb[0].mxu0
        %v2390 = vadd.f32 0.0, %v2389
        %v2391 = vpop.f32.mrb[0].mxu0
        %2392 = vmatprep.mubr.bf16.mxu0 0
        %2393 = vmatmul.mubr.bf16.gmra.mrb[0].mxu0 %v1808
        %v2394 = vpop.f32.mrb[0].mxu0
        %v2395 = vadd.f32 0.0, %v2394
        %v2396 = vpop.f32.mrb[0].mxu0
        %v2397 = vpop.f32.mrb[0].mxu0
        %v2398 = vadd.f32 0.0, %v2397
        %v2399 = vpop.f32.mrb[0].mxu0
        %2400 = vmatprep.mubr.bf16.mxu0 0
        %2401 = vmatmul.mubr.bf16.gmra.mrb[0].mxu0 %v1809
        %v2402 = vpop.f32.mrb[0].mxu0
        %v2403 = vadd.f32 0.0, %v2402
        %v2404 = vpop.f32.mrb[0].mxu0
        %v2405 = vpop.f32.mrb[0].mxu0
        %v2406 = vadd.f32 0.0, %v2405
        %v2407 = vpop.f32.mrb[0].mxu0
        %2408 = vmatprep.mubr.bf16.mxu0 0
        %2409 = vmatmul.mubr.bf16.gmra.mrb[0].mxu0 %v1810
        %v2410 = vpop.f32.mrb[0].mxu0
        %v2411 = vadd.f32 0.0, %v2410
        %v2412 = vpop.f32.mrb[0].mxu0
        %v2413 = vpop.f32.mrb[0].mxu0
        %v2414 = vadd.f32 0.0, %v2413
        %v2415 = vpop.f32.mrb[0].mxu0
        %2416 = vmatprep.mubr.bf16.mxu0 0
        %2417 = vmatmul.mubr.bf16.gmra.mrb[0].mxu0 %v1811
        %v2418 = vpop.f32.mrb[0].mxu0
        %v2419 = vadd.f32 0.0, %v2418
        %v2420 = vpop.f32.mrb[0].mxu0
        %v2421 = vpop.f32.mrb[0].mxu0
        %v2422 = vadd.f32 0.0, %v2421
        %v2423 = vpop.f32.mrb[0].mxu0
        %2424 = vmatprep.mubr.bf16.mxu0 0
        %2425 = vmatmul.mubr.bf16.gmra.mrb[0].mxu0 %v1812
        %v2426 = vpop.f32.mrb[0].mxu0
        %v2427 = vadd.f32 0.0, %v2426
        %v2428 = vpop.f32.mrb[0].mxu0
        %v2429 = vpop.f32.mrb[0].mxu0
        %v2430 = vadd.f32 0.0, %v2429
        %v2431 = vpop.f32.mrb[0].mxu0
        %2432 = vmatprep.mubr.bf16.mxu0 0
        %2433 = vmatmul.mubr.bf16.gmra.mrb[0].mxu0 %v1813
        %v2434 = vpop.f32.mrb[0].mxu0
        %v2435 = vadd.f32 0.0, %v2434
        %v2436 = vpop.f32.mrb[0].mxu0
        %v2437 = vpop.f32.mrb[0].mxu0
        %v2438 = vadd.f32 0.0, %v2437
        %v2439 = vpop.f32.mrb[0].mxu0
        %2440 = vdwg.mxu0
        %v2441 = vld [vmem:[#allocation2 + $0x18] sm:$0xff]
        %v2442 = vld [vmem:[#allocation2 + $0x20] sm:$0xff]
        %v2443 = vld [vmem:[#allocation2 + $0x28] sm:$0xff]
        %v2444 = vld [vmem:[#allocation2 + $0x30] sm:$0xff]
        %v2445 = vld [vmem:[#allocation2 + $0x38] sm:$0xff]
        %v2446 = vld [vmem:[#allocation2 + $0x40] sm:$0xff]
        %v2447 = vld [vmem:[#allocation2 + $0x48] sm:$0xff]
        %v2448 = vld [vmem:[#allocation2 + $0x50] sm:$0xff]
        %v2449 = vld [vmem:[#allocation2 + $0x58] sm:$0xff]
        %v2450 = vld [vmem:[#allocation2 + $0x60] sm:$0xff]
        %v2451 = vld [vmem:[#allocation2 + $0x68] sm:$0xff]
        %v2452 = vld [vmem:[#allocation2 + $0x70] sm:$0xff]
        %v2453 = vld [vmem:[#allocation2 + $0x78] sm:$0xff]
        %v2454 = vld [vmem:[#allocation2 + $0x80] sm:$0xff]
        %v2455 = vld [vmem:[#allocation2 + $0x88] sm:$0xff]
        %v2456 = vld [vmem:[#allocation2 + $0x90] sm:$0xff]
        %v2473 = vunpack.c.l.b16 %v1745
        %v2474 = vunpack.c.l.b16 %v1746
        %v2475 = vunpack.c.l.b16 %v1747
        %v2476 = vunpack.c.l.b16 %v1748
        %v2477 = vunpack.c.l.b16 %v1749
        %v2478 = vunpack.c.l.b16 %v1750
        %v2479 = vunpack.c.l.b16 %v1751
        %v2480 = vunpack.c.l.b16 %v1752
        %v2481 = vunpack.c.l.b16 %v1753
        %v2482 = vunpack.c.l.b16 %v1754
        %v2483 = vunpack.c.l.b16 %v1755
        %v2484 = vunpack.c.l.b16 %v1756
        %v2485 = vunpack.c.l.b16 %v1757
        %v2486 = vunpack.c.l.b16 %v1758
        %v2487 = vunpack.c.l.b16 %v1759
        %v2488 = vunpack.c.l.b16 %v1760
        %v2489 = vpack.c.b16 %v2474, %v2473
        %v2490 = vpack.c.b16 %v2476, %v2475
        %v2491 = vpack.c.b16 %v2478, %v2477
        %v2492 = vpack.c.b16 %v2480, %v2479
        %v2493 = vpack.c.b16 %v2482, %v2481
        %v2494 = vpack.c.b16 %v2484, %v2483
        %v2495 = vpack.c.b16 %v2486, %v2485
        %v2496 = vpack.c.b16 %v2488, %v2487
        %2505 = vmatprep.subr.bf16.mxu0 0
        %2506 = vmatpush1.bf16.msra.mxu0 %v2489
        %2507 = vmatprep.subr.bf16.mxu0 0
        %2508 = vmatpush1.bf16.msra.mxu0 %v2490
        %2509 = vmatprep.subr.bf16.mxu0 0
        %2510 = vmatpush1.bf16.msra.mxu0 %v2491
        %2511 = vmatprep.subr.bf16.mxu0 0
        %2512 = vmatpush1.bf16.msra.mxu0 %v2492
        %2513 = vmatprep.subr.bf16.mxu0 0
        %2514 = vmatpush1.bf16.msra.mxu0 %v2493
        %2515 = vmatprep.subr.bf16.mxu0 0
        %2516 = vmatpush1.bf16.msra.mxu0 %v2494
        %2517 = vmatprep.subr.bf16.mxu0 0
        %2518 = vmatpush1.bf16.msra.mxu0 %v2495
        %2519 = vmatprep.subr.bf16.mxu0 0
        %2520 = vmatpush1.bf16.msra.mxu0 %v2496
        %2521 = vmatprep.subr.bf16.mxu0 0
        %2522 = vmatpush1.bf16.msra.mxu0 0
        %2523 = vmatprep.subr.bf16.mxu0 0
        %2524 = vmatpush1.bf16.msra.mxu0 0
        %2525 = vmatprep.subr.bf16.mxu0 0
        %2526 = vmatpush1.bf16.msra.mxu0 0
        %2527 = vmatprep.subr.bf16.mxu0 0
        %2528 = vmatpush1.bf16.msra.mxu0 0
        %2529 = vmatprep.subr.bf16.mxu0 0
        %2530 = vmatpush1.bf16.msra.mxu0 0
        %2531 = vmatprep.subr.bf16.mxu0 0
        %2532 = vmatpush1.bf16.msra.mxu0 0
        %2533 = vmatprep.subr.bf16.mxu0 0
        %2534 = vmatpush1.bf16.msra.mxu0 0
        %2535 = vmatprep.subr.bf16.mxu0 0
        %2536 = vmatpush1.bf16.msra.mxu0 0
        %2537 = vmatprep.mubr.bf16.mxu0 0
        %2538 = vmatmul.mubr.bf16.gmra.mrb[0].mxu0 %v2441
        %v2539 = vpop.f32.mrb[0].mxu0
        %v2540 = vadd.f32 0.0, %v2539
        %v2541 = vpop.f32.mrb[0].mxu0
        %v2542 = vpop.f32.mrb[0].mxu0
        %v2543 = vadd.f32 0.0, %v2542
        %v2544 = vpop.f32.mrb[0].mxu0
        %2545 = vmatprep.mubr.bf16.mxu0 0
        %2546 = vmatmul.mubr.bf16.gmra.mrb[0].mxu0 %v2442
        %v2547 = vpop.f32.mrb[0].mxu0
        %v2548 = vadd.f32 0.0, %v2547
        %v2549 = vpop.f32.mrb[0].mxu0
        %v2550 = vpop.f32.mrb[0].mxu0
        %v2551 = vadd.f32 0.0, %v2550
        %v2552 = vpop.f32.mrb[0].mxu0
        %2553 = vmatprep.mubr.bf16.mxu0 0
        %2554 = vmatmul.mubr.bf16.gmra.mrb[0].mxu0 %v2443
        %v2555 = vpop.f32.mrb[0].mxu0
        %v2556 = vadd.f32 0.0, %v2555
        %v2557 = vpop.f32.mrb[0].mxu0
        %v2558 = vpop.f32.mrb[0].mxu0
        %v2559 = vadd.f32 0.0, %v2558
        %v2560 = vpop.f32.mrb[0].mxu0
        %2561 = vmatprep.mubr.bf16.mxu0 0
        %2562 = vmatmul.mubr.bf16.gmra.mrb[0].mxu0 %v2444
        %v2563 = vpop.f32.mrb[0].mxu0
        %v2564 = vadd.f32 0.0, %v2563
        %v2565 = vpop.f32.mrb[0].mxu0
        %v2566 = vpop.f32.mrb[0].mxu0
        %v2567 = vadd.f32 0.0, %v2566
        %v2568 = vpop.f32.mrb[0].mxu0
        %2569 = vmatprep.mubr.bf16.mxu0 0
        %2570 = vmatmul.mubr.bf16.gmra.mrb[0].mxu0 %v2445
        %v2571 = vpop.f32.mrb[0].mxu0
        %v2572 = vadd.f32 0.0, %v2571
        %v2573 = vpop.f32.mrb[0].mxu0
        %v2574 = vpop.f32.mrb[0].mxu0
        %v2575 = vadd.f32 0.0, %v2574
        %v2576 = vpop.f32.mrb[0].mxu0
        %2577 = vmatprep.mubr.bf16.mxu0 0
        %2578 = vmatmul.mubr.bf16.gmra.mrb[0].mxu0 %v2446
        %v2579 = vpop.f32.mrb[0].mxu0
        %v2580 = vadd.f32 0.0, %v2579
        %v2581 = vpop.f32.mrb[0].mxu0
        %v2582 = vpop.f32.mrb[0].mxu0
        %v2583 = vadd.f32 0.0, %v2582
        %v2584 = vpop.f32.mrb[0].mxu0
        %2585 = vmatprep.mubr.bf16.mxu0 0
        %2586 = vmatmul.mubr.bf16.gmra.mrb[0].mxu0 %v2447
        %v2587 = vpop.f32.mrb[0].mxu0
        %v2588 = vadd.f32 0.0, %v2587
        %v2589 = vpop.f32.mrb[0].mxu0
        %v2590 = vpop.f32.mrb[0].mxu0
        %v2591 = vadd.f32 0.0, %v2590
        %v2592 = vpop.f32.mrb[0].mxu0
        %2593 = vmatprep.mubr.bf16.mxu0 0
        %2594 = vmatmul.mubr.bf16.gmra.mrb[0].mxu0 %v2448
        %v2595 = vpop.f32.mrb[0].mxu0
        %v2596 = vadd.f32 0.0, %v2595
        %v2597 = vpop.f32.mrb[0].mxu0
        %v2598 = vpop.f32.mrb[0].mxu0
        %v2599 = vadd.f32 0.0, %v2598
        %v2600 = vpop.f32.mrb[0].mxu0
        %2601 = vmatprep.mubr.bf16.mxu0 0
        %2602 = vmatmul.mubr.bf16.gmra.mrb[0].mxu0 %v2449
        %v2603 = vpop.f32.mrb[0].mxu0
        %v2604 = vadd.f32 0.0, %v2603
        %v2605 = vpop.f32.mrb[0].mxu0
        %v2606 = vpop.f32.mrb[0].mxu0
        %v2607 = vadd.f32 0.0, %v2606
        %v2608 = vpop.f32.mrb[0].mxu0
        %2609 = vmatprep.mubr.bf16.mxu0 0
        %2610 = vmatmul.mubr.bf16.gmra.mrb[0].mxu0 %v2450
        %v2611 = vpop.f32.mrb[0].mxu0
        %v2612 = vadd.f32 0.0, %v2611
        %v2613 = vpop.f32.mrb[0].mxu0
        %v2614 = vpop.f32.mrb[0].mxu0
        %v2615 = vadd.f32 0.0, %v2614
        %v2616 = vpop.f32.mrb[0].mxu0
        %2617 = vmatprep.mubr.bf16.mxu0 0
        %2618 = vmatmul.mubr.bf16.gmra.mrb[0].mxu0 %v2451
        %v2619 = vpop.f32.mrb[0].mxu0
        %v2620 = vadd.f32 0.0, %v2619
        %v2621 = vpop.f32.mrb[0].mxu0
        %v2622 = vpop.f32.mrb[0].mxu0
        %v2623 = vadd.f32 0.0, %v2622
        %v2624 = vpop.f32.mrb[0].mxu0
        %2625 = vmatprep.mubr.bf16.mxu0 0
        %2626 = vmatmul.mubr.bf16.gmra.mrb[0].mxu0 %v2452
        %v2627 = vpop.f32.mrb[0].mxu0
        %v2628 = vadd.f32 0.0, %v2627
        %v2629 = vpop.f32.mrb[0].mxu0
        %v2630 = vpop.f32.mrb[0].mxu0
        %v2631 = vadd.f32 0.0, %v2630
        %v2632 = vpop.f32.mrb[0].mxu0
        %2633 = vmatprep.mubr.bf16.mxu0 0
        %2634 = vmatmul.mubr.bf16.gmra.mrb[0].mxu0 %v2453
        %v2635 = vpop.f32.mrb[0].mxu0
        %v2636 = vadd.f32 0.0, %v2635
        %v2637 = vpop.f32.mrb[0].mxu0
        %v2638 = vpop.f32.mrb[0].mxu0
        %v2639 = vadd.f32 0.0, %v2638
        %v2640 = vpop.f32.mrb[0].mxu0
        %2641 = vmatprep.mubr.bf16.mxu0 0
        %2642 = vmatmul.mubr.bf16.gmra.mrb[0].mxu0 %v2454
        %v2643 = vpop.f32.mrb[0].mxu0
        %v2644 = vadd.f32 0.0, %v2643
        %v2645 = vpop.f32.mrb[0].mxu0
        %v2646 = vpop.f32.mrb[0].mxu0
        %v2647 = vadd.f32 0.0, %v2646
        %v2648 = vpop.f32.mrb[0].mxu0
        %2649 = vmatprep.mubr.bf16.mxu0 0
        %2650 = vmatmul.mubr.bf16.gmra.mrb[0].mxu0 %v2455
        %v2651 = vpop.f32.mrb[0].mxu0
        %v2652 = vadd.f32 0.0, %v2651
        %v2653 = vpop.f32.mrb[0].mxu0
        %v2654 = vpop.f32.mrb[0].mxu0
        %v2655 = vadd.f32 0.0, %v2654
        %v2656 = vpop.f32.mrb[0].mxu0
        %2657 = vmatprep.mubr.bf16.mxu0 0
        %2658 = vmatmul.mubr.bf16.gmra.mrb[0].mxu0 %v2456
        %v2659 = vpop.f32.mrb[0].mxu0
        %v2660 = vadd.f32 0.0, %v2659
        %v2661 = vpop.f32.mrb[0].mxu0
        %v2662 = vpop.f32.mrb[0].mxu0
        %v2663 = vadd.f32 0.0, %v2662
        %v2664 = vpop.f32.mrb[0].mxu0
        %2665 = vdwg.mxu0
        %v2682 = vunpack.c.l.b16 %v1762
        %v2683 = vunpack.c.l.b16 %v1763
        %v2684 = vunpack.c.l.b16 %v1764
        %v2685 = vunpack.c.l.b16 %v1765
        %v2686 = vunpack.c.l.b16 %v1766
        %v2687 = vunpack.c.l.b16 %v1767
        %v2688 = vunpack.c.l.b16 %v1768
        %v2689 = vunpack.c.l.b16 %v1769
        %v2690 = vunpack.c.l.b16 %v1770
        %v2691 = vunpack.c.l.b16 %v1771
        %v2692 = vunpack.c.l.b16 %v1772
        %v2693 = vunpack.c.l.b16 %v1773
        %v2694 = vunpack.c.l.b16 %v1774
        %v2695 = vunpack.c.l.b16 %v1775
        %v2696 = vunpack.c.l.b16 %v1776
        %v2697 = vunpack.c.l.b16 %v1777
        %v2698 = vpack.c.b16 %v2683, %v2682
        %v2699 = vpack.c.b16 %v2685, %v2684
        %v2700 = vpack.c.b16 %v2687, %v2686
        %v2701 = vpack.c.b16 %v2689, %v2688
        %v2702 = vpack.c.b16 %v2691, %v2690
        %v2703 = vpack.c.b16 %v2693, %v2692
        %v2704 = vpack.c.b16 %v2695, %v2694
        %v2705 = vpack.c.b16 %v2697, %v2696
        %2714 = vmatprep.subr.bf16.mxu0 0
        %2715 = vmatpush1.bf16.msra.mxu0 %v2698
        %2716 = vmatprep.subr.bf16.mxu0 0
        %2717 = vmatpush1.bf16.msra.mxu0 %v2699
        %2718 = vmatprep.subr.bf16.mxu0 0
        %2719 = vmatpush1.bf16.msra.mxu0 %v2700
        %2720 = vmatprep.subr.bf16.mxu0 0
        %2721 = vmatpush1.bf16.msra.mxu0 %v2701
        %2722 = vmatprep.subr.bf16.mxu0 0
        %2723 = vmatpush1.bf16.msra.mxu0 %v2702
        %2724 = vmatprep.subr.bf16.mxu0 0
        %2725 = vmatpush1.bf16.msra.mxu0 %v2703
        %2726 = vmatprep.subr.bf16.mxu0 0
        %2727 = vmatpush1.bf16.msra.mxu0 %v2704
        %2728 = vmatprep.subr.bf16.mxu0 0
        %2729 = vmatpush1.bf16.msra.mxu0 %v2705
        %2730 = vmatprep.subr.bf16.mxu0 0
        %2731 = vmatpush1.bf16.msra.mxu0 0
        %2732 = vmatprep.subr.bf16.mxu0 0
        %2733 = vmatpush1.bf16.msra.mxu0 0
        %2734 = vmatprep.subr.bf16.mxu0 0
        %2735 = vmatpush1.bf16.msra.mxu0 0
        %2736 = vmatprep.subr.bf16.mxu0 0
        %2737 = vmatpush1.bf16.msra.mxu0 0
        %2738 = vmatprep.subr.bf16.mxu0 0
        %2739 = vmatpush1.bf16.msra.mxu0 0
        %2740 = vmatprep.subr.bf16.mxu0 0
        %2741 = vmatpush1.bf16.msra.mxu0 0
        %2742 = vmatprep.subr.bf16.mxu0 0
        %2743 = vmatpush1.bf16.msra.mxu0 0
        %2744 = vmatprep.subr.bf16.mxu0 0
        %2745 = vmatpush1.bf16.msra.mxu0 0
        %2746 = vmatprep.mubr.bf16.mxu0 0
        %2747 = vmatmul.mubr.bf16.gmra.mrb[0].mxu0 %v2441
        %v2748 = vpop.f32.mrb[0].mxu0
        %v2749 = vadd.f32 0.0, %v2748
        %v2750 = vpop.f32.mrb[0].mxu0
        %v2751 = vpop.f32.mrb[0].mxu0
        %v2752 = vadd.f32 0.0, %v2751
        %v2753 = vpop.f32.mrb[0].mxu0
        %2754 = vmatprep.mubr.bf16.mxu0 0
        %2755 = vmatmul.mubr.bf16.gmra.mrb[0].mxu0 %v2442
        %v2756 = vpop.f32.mrb[0].mxu0
        %v2757 = vadd.f32 0.0, %v2756
        %v2758 = vpop.f32.mrb[0].mxu0
        %v2759 = vpop.f32.mrb[0].mxu0
        %v2760 = vadd.f32 0.0, %v2759
        %v2761 = vpop.f32.mrb[0].mxu0
        %2762 = vmatprep.mubr.bf16.mxu0 0
        %2763 = vmatmul.mubr.bf16.gmra.mrb[0].mxu0 %v2443
        %v2764 = vpop.f32.mrb[0].mxu0
        %v2765 = vadd.f32 0.0, %v2764
        %v2766 = vpop.f32.mrb[0].mxu0
        %v2767 = vpop.f32.mrb[0].mxu0
        %v2768 = vadd.f32 0.0, %v2767
        %v2769 = vpop.f32.mrb[0].mxu0
        %2770 = vmatprep.mubr.bf16.mxu0 0
        %2771 = vmatmul.mubr.bf16.gmra.mrb[0].mxu0 %v2444
        %v2772 = vpop.f32.mrb[0].mxu0
        %v2773 = vadd.f32 0.0, %v2772
        %v2774 = vpop.f32.mrb[0].mxu0
        %v2775 = vpop.f32.mrb[0].mxu0
        %v2776 = vadd.f32 0.0, %v2775
        %v2777 = vpop.f32.mrb[0].mxu0
        %2778 = vmatprep.mubr.bf16.mxu0 0
        %2779 = vmatmul.mubr.bf16.gmra.mrb[0].mxu0 %v2445
        %v2780 = vpop.f32.mrb[0].mxu0
        %v2781 = vadd.f32 0.0, %v2780
        %v2782 = vpop.f32.mrb[0].mxu0
        %v2783 = vpop.f32.mrb[0].mxu0
        %v2784 = vadd.f32 0.0, %v2783
        %v2785 = vpop.f32.mrb[0].mxu0
        %2786 = vmatprep.mubr.bf16.mxu0 0
        %2787 = vmatmul.mubr.bf16.gmra.mrb[0].mxu0 %v2446
        %v2788 = vpop.f32.mrb[0].mxu0
        %v2789 = vadd.f32 0.0, %v2788
        %v2790 = vpop.f32.mrb[0].mxu0
        %v2791 = vpop.f32.mrb[0].mxu0
        %v2792 = vadd.f32 0.0, %v2791
        %v2793 = vpop.f32.mrb[0].mxu0
        %2794 = vmatprep.mubr.bf16.mxu0 0
        %2795 = vmatmul.mubr.bf16.gmra.mrb[0].mxu0 %v2447
        %v2796 = vpop.f32.mrb[0].mxu0
        %v2797 = vadd.f32 0.0, %v2796
        %v2798 = vpop.f32.mrb[0].mxu0
        %v2799 = vpop.f32.mrb[0].mxu0
        %v2800 = vadd.f32 0.0, %v2799
        %v2801 = vpop.f32.mrb[0].mxu0
        %2802 = vmatprep.mubr.bf16.mxu0 0
        %2803 = vmatmul.mubr.bf16.gmra.mrb[0].mxu0 %v2448
        %v2804 = vpop.f32.mrb[0].mxu0
        %v2805 = vadd.f32 0.0, %v2804
        %v2806 = vpop.f32.mrb[0].mxu0
        %v2807 = vpop.f32.mrb[0].mxu0
        %v2808 = vadd.f32 0.0, %v2807
        %v2809 = vpop.f32.mrb[0].mxu0
        %2810 = vmatprep.mubr.bf16.mxu0 0
        %2811 = vmatmul.mubr.bf16.gmra.mrb[0].mxu0 %v2449
        %v2812 = vpop.f32.mrb[0].mxu0
        %v2813 = vadd.f32 0.0, %v2812
        %v2814 = vpop.f32.mrb[0].mxu0
        %v2815 = vpop.f32.mrb[0].mxu0
        %v2816 = vadd.f32 0.0, %v2815
        %v2817 = vpop.f32.mrb[0].mxu0
        %2818 = vmatprep.mubr.bf16.mxu0 0
        %2819 = vmatmul.mubr.bf16.gmra.mrb[0].mxu0 %v2450
        %v2820 = vpop.f32.mrb[0].mxu0
        %v2821 = vadd.f32 0.0, %v2820
        %v2822 = vpop.f32.mrb[0].mxu0
        %v2823 = vpop.f32.mrb[0].mxu0
        %v2824 = vadd.f32 0.0, %v2823
        %v2825 = vpop.f32.mrb[0].mxu0
        %2826 = vmatprep.mubr.bf16.mxu0 0
        %2827 = vmatmul.mubr.bf16.gmra.mrb[0].mxu0 %v2451
        %v2828 = vpop.f32.mrb[0].mxu0
        %v2829 = vadd.f32 0.0, %v2828
        %v2830 = vpop.f32.mrb[0].mxu0
        %v2831 = vpop.f32.mrb[0].mxu0
        %v2832 = vadd.f32 0.0, %v2831
        %v2833 = vpop.f32.mrb[0].mxu0
        %2834 = vmatprep.mubr.bf16.mxu0 0
        %2835 = vmatmul.mubr.bf16.gmra.mrb[0].mxu0 %v2452
        %v2836 = vpop.f32.mrb[0].mxu0
        %v2837 = vadd.f32 0.0, %v2836
        %v2838 = vpop.f32.mrb[0].mxu0
        %v2839 = vpop.f32.mrb[0].mxu0
        %v2840 = vadd.f32 0.0, %v2839
        %v2841 = vpop.f32.mrb[0].mxu0
        %2842 = vmatprep.mubr.bf16.mxu0 0
        %2843 = vmatmul.mubr.bf16.gmra.mrb[0].mxu0 %v2453
        %v2844 = vpop.f32.mrb[0].mxu0
        %v2845 = vadd.f32 0.0, %v2844
        %v2846 = vpop.f32.mrb[0].mxu0
        %v2847 = vpop.f32.mrb[0].mxu0
        %v2848 = vadd.f32 0.0, %v2847
        %v2849 = vpop.f32.mrb[0].mxu0
        %2850 = vmatprep.mubr.bf16.mxu0 0
        %2851 = vmatmul.mubr.bf16.gmra.mrb[0].mxu0 %v2454
        %v2852 = vpop.f32.mrb[0].mxu0
        %v2853 = vadd.f32 0.0, %v2852
        %v2854 = vpop.f32.mrb[0].mxu0
        %v2855 = vpop.f32.mrb[0].mxu0
        %v2856 = vadd.f32 0.0, %v2855
        %v2857 = vpop.f32.mrb[0].mxu0
        %2858 = vmatprep.mubr.bf16.mxu0 0
        %2859 = vmatmul.mubr.bf16.gmra.mrb[0].mxu0 %v2455
        %v2860 = vpop.f32.mrb[0].mxu0
        %v2861 = vadd.f32 0.0, %v2860
        %v2862 = vpop.f32.mrb[0].mxu0
        %v2863 = vpop.f32.mrb[0].mxu0
        %v2864 = vadd.f32 0.0, %v2863
        %v2865 = vpop.f32.mrb[0].mxu0
        %2866 = vmatprep.mubr.bf16.mxu0 0
        %2867 = vmatmul.mubr.bf16.gmra.mrb[0].mxu0 %v2456
        %v2868 = vpop.f32.mrb[0].mxu0
        %v2869 = vadd.f32 0.0, %v2868
        %v2870 = vpop.f32.mrb[0].mxu0
        %v2871 = vpop.f32.mrb[0].mxu0
        %v2872 = vadd.f32 0.0, %v2871
        %v2873 = vpop.f32.mrb[0].mxu0
        %2874 = vdwg.mxu0
        %v2891 = vunpack.c.l.b16 %v1779
        %v2892 = vunpack.c.l.b16 %v1780
        %v2893 = vunpack.c.l.b16 %v1781
        %v2894 = vunpack.c.l.b16 %v1782
        %v2895 = vunpack.c.l.b16 %v1783
        %v2896 = vunpack.c.l.b16 %v1784
        %v2897 = vunpack.c.l.b16 %v1785
        %v2898 = vunpack.c.l.b16 %v1786
        %v2899 = vunpack.c.l.b16 %v1787
        %v2900 = vunpack.c.l.b16 %v1788
        %v2901 = vunpack.c.l.b16 %v1789
        %v2902 = vunpack.c.l.b16 %v1790
        %v2903 = vunpack.c.l.b16 %v1791
        %v2904 = vunpack.c.l.b16 %v1792
        %v2905 = vunpack.c.l.b16 %v1793
        %v2906 = vunpack.c.l.b16 %v1794
        %v2907 = vpack.c.b16 %v2892, %v2891
        %v2908 = vpack.c.b16 %v2894, %v2893
        %v2909 = vpack.c.b16 %v2896, %v2895
        %v2910 = vpack.c.b16 %v2898, %v2897
        %v2911 = vpack.c.b16 %v2900, %v2899
        %v2912 = vpack.c.b16 %v2902, %v2901
        %v2913 = vpack.c.b16 %v2904, %v2903
        %v2914 = vpack.c.b16 %v2906, %v2905
        %2923 = vmatprep.subr.bf16.mxu0 0
        %2924 = vmatpush1.bf16.msra.mxu0 %v2907
        %2925 = vmatprep.subr.bf16.mxu0 0
        %2926 = vmatpush1.bf16.msra.mxu0 %v2908
        %2927 = vmatprep.subr.bf16.mxu0 0
        %2928 = vmatpush1.bf16.msra.mxu0 %v2909
        %2929 = vmatprep.subr.bf16.mxu0 0
        %2930 = vmatpush1.bf16.msra.mxu0 %v2910
        %2931 = vmatprep.subr.bf16.mxu0 0
        %2932 = vmatpush1.bf16.msra.mxu0 %v2911
        %2933 = vmatprep.subr.bf16.mxu0 0
        %2934 = vmatpush1.bf16.msra.mxu0 %v2912
        %2935 = vmatprep.subr.bf16.mxu0 0
        %2936 = vmatpush1.bf16.msra.mxu0 %v2913
        %2937 = vmatprep.subr.bf16.mxu0 0
        %2938 = vmatpush1.bf16.msra.mxu0 %v2914
        %2939 = vmatprep.subr.bf16.mxu0 0
        %2940 = vmatpush1.bf16.msra.mxu0 0
        %2941 = vmatprep.subr.bf16.mxu0 0
        %2942 = vmatpush1.bf16.msra.mxu0 0
        %2943 = vmatprep.subr.bf16.mxu0 0
        %2944 = vmatpush1.bf16.msra.mxu0 0
        %2945 = vmatprep.subr.bf16.mxu0 0
        %2946 = vmatpush1.bf16.msra.mxu0 0
        %2947 = vmatprep.subr.bf16.mxu0 0
        %2948 = vmatpush1.bf16.msra.mxu0 0
        %2949 = vmatprep.subr.bf16.mxu0 0
        %2950 = vmatpush1.bf16.msra.mxu0 0
        %2951 = vmatprep.subr.bf16.mxu0 0
        %2952 = vmatpush1.bf16.msra.mxu0 0
        %2953 = vmatprep.subr.bf16.mxu0 0
        %2954 = vmatpush1.bf16.msra.mxu0 0
        %2955 = vmatprep.mubr.bf16.mxu0 0
        %2956 = vmatmul.mubr.bf16.gmra.mrb[0].mxu0 %v2441
        %v2957 = vpop.f32.mrb[0].mxu0
        %v2958 = vadd.f32 0.0, %v2957
        %v2959 = vpop.f32.mrb[0].mxu0
        %v2960 = vpop.f32.mrb[0].mxu0
        %v2961 = vadd.f32 0.0, %v2960
        %v2962 = vpop.f32.mrb[0].mxu0
        %2963 = vmatprep.mubr.bf16.mxu0 0
        %2964 = vmatmul.mubr.bf16.gmra.mrb[0].mxu0 %v2442
        %v2965 = vpop.f32.mrb[0].mxu0
        %v2966 = vadd.f32 0.0, %v2965
        %v2967 = vpop.f32.mrb[0].mxu0
        %v2968 = vpop.f32.mrb[0].mxu0
        %v2969 = vadd.f32 0.0, %v2968
        %v2970 = vpop.f32.mrb[0].mxu0
        %2971 = vmatprep.mubr.bf16.mxu0 0
        %2972 = vmatmul.mubr.bf16.gmra.mrb[0].mxu0 %v2443
        %v2973 = vpop.f32.mrb[0].mxu0
        %v2974 = vadd.f32 0.0, %v2973
        %v2975 = vpop.f32.mrb[0].mxu0
        %v2976 = vpop.f32.mrb[0].mxu0
        %v2977 = vadd.f32 0.0, %v2976
        %v2978 = vpop.f32.mrb[0].mxu0
        %2979 = vmatprep.mubr.bf16.mxu0 0
        %2980 = vmatmul.mubr.bf16.gmra.mrb[0].mxu0 %v2444
        %v2981 = vpop.f32.mrb[0].mxu0
        %v2982 = vadd.f32 0.0, %v2981
        %v2983 = vpop.f32.mrb[0].mxu0
        %v2984 = vpop.f32.mrb[0].mxu0
        %v2985 = vadd.f32 0.0, %v2984
        %v2986 = vpop.f32.mrb[0].mxu0
        %2987 = vmatprep.mubr.bf16.mxu0 0
        %2988 = vmatmul.mubr.bf16.gmra.mrb[0].mxu0 %v2445
        %v2989 = vpop.f32.mrb[0].mxu0
        %v2990 = vadd.f32 0.0, %v2989
        %v2991 = vpop.f32.mrb[0].mxu0
        %v2992 = vpop.f32.mrb[0].mxu0
        %v2993 = vadd.f32 0.0, %v2992
        %v2994 = vpop.f32.mrb[0].mxu0
        %2995 = vmatprep.mubr.bf16.mxu0 0
        %2996 = vmatmul.mubr.bf16.gmra.mrb[0].mxu0 %v2446
        %v2997 = vpop.f32.mrb[0].mxu0
        %v2998 = vadd.f32 0.0, %v2997
        %v2999 = vpop.f32.mrb[0].mxu0
        %v3000 = vpop.f32.mrb[0].mxu0
        %v3001 = vadd.f32 0.0, %v3000
        %v3002 = vpop.f32.mrb[0].mxu0
        %3003 = vmatprep.mubr.bf16.mxu0 0
        %3004 = vmatmul.mubr.bf16.gmra.mrb[0].mxu0 %v2447
        %v3005 = vpop.f32.mrb[0].mxu0
        %v3006 = vadd.f32 0.0, %v3005
        %v3007 = vpop.f32.mrb[0].mxu0
        %v3008 = vpop.f32.mrb[0].mxu0
        %v3009 = vadd.f32 0.0, %v3008
        %v3010 = vpop.f32.mrb[0].mxu0
        %3011 = vmatprep.mubr.bf16.mxu0 0
        %3012 = vmatmul.mubr.bf16.gmra.mrb[0].mxu0 %v2448
        %v3013 = vpop.f32.mrb[0].mxu0
        %v3014 = vadd.f32 0.0, %v3013
        %v3015 = vpop.f32.mrb[0].mxu0
        %v3016 = vpop.f32.mrb[0].mxu0
        %v3017 = vadd.f32 0.0, %v3016
        %v3018 = vpop.f32.mrb[0].mxu0
        %3019 = vmatprep.mubr.bf16.mxu0 0
        %3020 = vmatmul.mubr.bf16.gmra.mrb[0].mxu0 %v2449
        %v3021 = vpop.f32.mrb[0].mxu0
        %v3022 = vadd.f32 0.0, %v3021
        %v3023 = vpop.f32.mrb[0].mxu0
        %v3024 = vpop.f32.mrb[0].mxu0
        %v3025 = vadd.f32 0.0, %v3024
        %v3026 = vpop.f32.mrb[0].mxu0
        %3027 = vmatprep.mubr.bf16.mxu0 0
        %3028 = vmatmul.mubr.bf16.gmra.mrb[0].mxu0 %v2450
        %v3029 = vpop.f32.mrb[0].mxu0
        %v3030 = vadd.f32 0.0, %v3029
        %v3031 = vpop.f32.mrb[0].mxu0
        %v3032 = vpop.f32.mrb[0].mxu0
        %v3033 = vadd.f32 0.0, %v3032
        %v3034 = vpop.f32.mrb[0].mxu0
        %3035 = vmatprep.mubr.bf16.mxu0 0
        %3036 = vmatmul.mubr.bf16.gmra.mrb[0].mxu0 %v2451
        %v3037 = vpop.f32.mrb[0].mxu0
        %v3038 = vadd.f32 0.0, %v3037
        %v3039 = vpop.f32.mrb[0].mxu0
        %v3040 = vpop.f32.mrb[0].mxu0
        %v3041 = vadd.f32 0.0, %v3040
        %v3042 = vpop.f32.mrb[0].mxu0
        %3043 = vmatprep.mubr.bf16.mxu0 0
        %3044 = vmatmul.mubr.bf16.gmra.mrb[0].mxu0 %v2452
        %v3045 = vpop.f32.mrb[0].mxu0
        %v3046 = vadd.f32 0.0, %v3045
        %v3047 = vpop.f32.mrb[0].mxu0
        %v3048 = vpop.f32.mrb[0].mxu0
        %v3049 = vadd.f32 0.0, %v3048
        %v3050 = vpop.f32.mrb[0].mxu0
        %3051 = vmatprep.mubr.bf16.mxu0 0
        %3052 = vmatmul.mubr.bf16.gmra.mrb[0].mxu0 %v2453
        %v3053 = vpop.f32.mrb[0].mxu0
        %v3054 = vadd.f32 0.0, %v3053
        %v3055 = vpop.f32.mrb[0].mxu0
        %v3056 = vpop.f32.mrb[0].mxu0
        %v3057 = vadd.f32 0.0, %v3056
        %v3058 = vpop.f32.mrb[0].mxu0
        %3059 = vmatprep.mubr.bf16.mxu0 0
        %3060 = vmatmul.mubr.bf16.gmra.mrb[0].mxu0 %v2454
        %v3061 = vpop.f32.mrb[0].mxu0
        %v3062 = vadd.f32 0.0, %v3061
        %v3063 = vpop.f32.mrb[0].mxu0
        %v3064 = vpop.f32.mrb[0].mxu0
        %v3065 = vadd.f32 0.0, %v3064
        %v3066 = vpop.f32.mrb[0].mxu0
        %3067 = vmatprep.mubr.bf16.mxu0 0
        %3068 = vmatmul.mubr.bf16.gmra.mrb[0].mxu0 %v2455
        %v3069 = vpop.f32.mrb[0].mxu0
        %v3070 = vadd.f32 0.0, %v3069
        %v3071 = vpop.f32.mrb[0].mxu0
        %v3072 = vpop.f32.mrb[0].mxu0
        %v3073 = vadd.f32 0.0, %v3072
        %v3074 = vpop.f32.mrb[0].mxu0
        %3075 = vmatprep.mubr.bf16.mxu0 0
        %3076 = vmatmul.mubr.bf16.gmra.mrb[0].mxu0 %v2456
        %v3077 = vpop.f32.mrb[0].mxu0
        %v3078 = vadd.f32 0.0, %v3077
        %v3079 = vpop.f32.mrb[0].mxu0
        %v3080 = vpop.f32.mrb[0].mxu0
        %v3081 = vadd.f32 0.0, %v3080
        %v3082 = vpop.f32.mrb[0].mxu0
        %3083 = vdwg.mxu0
        %v3100 = vunpack.c.l.b16 %v1660
        %v3101 = vunpack.c.l.b16 %v1661
        %v3102 = vunpack.c.l.b16 %v1662
        %v3103 = vunpack.c.l.b16 %v1663
        %v3104 = vunpack.c.l.b16 %v1664
        %v3105 = vunpack.c.l.b16 %v1665
        %v3106 = vunpack.c.l.b16 %v1666
        %v3107 = vunpack.c.l.b16 %v1667
        %v3108 = vunpack.c.l.b16 %v1668
        %v3109 = vunpack.c.l.b16 %v1669
        %v3110 = vunpack.c.l.b16 %v1670
        %v3111 = vunpack.c.l.b16 %v1671
        %v3112 = vunpack.c.l.b16 %v1672
        %v3113 = vunpack.c.l.b16 %v1673
        %v3114 = vunpack.c.l.b16 %v1674
        %v3115 = vunpack.c.l.b16 %v1675
        %v3116 = vpack.c.b16 %v3101, %v3100
        %v3117 = vpack.c.b16 %v3103, %v3102
        %v3118 = vpack.c.b16 %v3105, %v3104
        %v3119 = vpack.c.b16 %v3107, %v3106
        %v3120 = vpack.c.b16 %v3109, %v3108
        %v3121 = vpack.c.b16 %v3111, %v3110
        %v3122 = vpack.c.b16 %v3113, %v3112
        %v3123 = vpack.c.b16 %v3115, %v3114
        %3132 = vmatprep.subr.bf16.mxu0 0
        %3133 = vmatpush1.bf16.msra.mxu0 %v3116
        %3134 = vmatprep.subr.bf16.mxu0 0
        %3135 = vmatpush1.bf16.msra.mxu0 %v3117
        %3136 = vmatprep.subr.bf16.mxu0 0
        %3137 = vmatpush1.bf16.msra.mxu0 %v3118
        %3138 = vmatprep.subr.bf16.mxu0 0
        %3139 = vmatpush1.bf16.msra.mxu0 %v3119
        %3140 = vmatprep.subr.bf16.mxu0 0
        %3141 = vmatpush1.bf16.msra.mxu0 %v3120
        %3142 = vmatprep.subr.bf16.mxu0 0
        %3143 = vmatpush1.bf16.msra.mxu0 %v3121
        %3144 = vmatprep.subr.bf16.mxu0 0
        %3145 = vmatpush1.bf16.msra.mxu0 %v3122
        %3146 = vmatprep.subr.bf16.mxu0 0
        %3147 = vmatpush1.bf16.msra.mxu0 %v3123
        %3148 = vmatprep.subr.bf16.mxu0 0
        %3149 = vmatpush1.bf16.msra.mxu0 0
        %3150 = vmatprep.subr.bf16.mxu0 0
        %3151 = vmatpush1.bf16.msra.mxu0 0
        %3152 = vmatprep.subr.bf16.mxu0 0
        %3153 = vmatpush1.bf16.msra.mxu0 0
        %3154 = vmatprep.subr.bf16.mxu0 0
        %3155 = vmatpush1.bf16.msra.mxu0 0
        %3156 = vmatprep.subr.bf16.mxu0 0
        %3157 = vmatpush1.bf16.msra.mxu0 0
        %3158 = vmatprep.subr.bf16.mxu0 0
        %3159 = vmatpush1.bf16.msra.mxu0 0
        %3160 = vmatprep.subr.bf16.mxu0 0
        %3161 = vmatpush1.bf16.msra.mxu0 0
        %3162 = vmatprep.subr.bf16.mxu0 0
        %3163 = vmatpush1.bf16.msra.mxu0 0
        %3164 = vmatprep.mubr.bf16.mxu0 0
        %3165 = vmatmul.mubr.bf16.gmra.mrb[0].mxu0 %v1797
        %v3166 = vpop.f32.mrb[0].mxu0
        %v3167 = vadd.f32 %v2106, %v3166
        %v3168 = vpop.f32.mrb[0].mxu0
        %v3169 = vpop.f32.mrb[0].mxu0
        %v3170 = vadd.f32 %v2109, %v3169
        %v3171 = vpop.f32.mrb[0].mxu0
        %3172 = vmatprep.mubr.bf16.mxu0 0
        %3173 = vmatmul.mubr.bf16.gmra.mrb[0].mxu0 %v1798
        %v3174 = vpop.f32.mrb[0].mxu0
        %v3175 = vadd.f32 %v2114, %v3174
        %v3176 = vpop.f32.mrb[0].mxu0
        %v3177 = vpop.f32.mrb[0].mxu0
        %v3178 = vadd.f32 %v2117, %v3177
        %v3179 = vpop.f32.mrb[0].mxu0
        %3180 = vmatprep.mubr.bf16.mxu0 0
        %3181 = vmatmul.mubr.bf16.gmra.mrb[0].mxu0 %v1799
        %v3182 = vpop.f32.mrb[0].mxu0
        %v3183 = vadd.f32 %v2122, %v3182
        %v3184 = vpop.f32.mrb[0].mxu0
        %v3185 = vpop.f32.mrb[0].mxu0
        %v3186 = vadd.f32 %v2125, %v3185
        %v3187 = vpop.f32.mrb[0].mxu0
        %3188 = vmatprep.mubr.bf16.mxu0 0
        %3189 = vmatmul.mubr.bf16.gmra.mrb[0].mxu0 %v1800
        %v3190 = vpop.f32.mrb[0].mxu0
        %v3191 = vadd.f32 %v2130, %v3190
        %v3192 = vpop.f32.mrb[0].mxu0
        %v3193 = vpop.f32.mrb[0].mxu0
        %v3194 = vadd.f32 %v2133, %v3193
        %v3195 = vpop.f32.mrb[0].mxu0
        %3196 = vmatprep.mubr.bf16.mxu0 0
        %3197 = vmatmul.mubr.bf16.gmra.mrb[0].mxu0 %v1801
        %v3198 = vpop.f32.mrb[0].mxu0
        %v3199 = vadd.f32 %v2138, %v3198
        %v3200 = vpop.f32.mrb[0].mxu0
        %v3201 = vpop.f32.mrb[0].mxu0
        %v3202 = vadd.f32 %v2141, %v3201
        %v3203 = vpop.f32.mrb[0].mxu0
        %3204 = vmatprep.mubr.bf16.mxu0 0
        %3205 = vmatmul.mubr.bf16.gmra.mrb[0].mxu0 %v1802
        %v3206 = vpop.f32.mrb[0].mxu0
        %v3207 = vadd.f32 %v2146, %v3206
        %v3208 = vpop.f32.mrb[0].mxu0
        %v3209 = vpop.f32.mrb[0].mxu0
        %v3210 = vadd.f32 %v2149, %v3209
        %v3211 = vpop.f32.mrb[0].mxu0
        %3212 = vmatprep.mubr.bf16.mxu0 0
        %3213 = vmatmul.mubr.bf16.gmra.mrb[0].mxu0 %v1803
        %v3214 = vpop.f32.mrb[0].mxu0
        %v3215 = vadd.f32 %v2154, %v3214
        %v3216 = vpop.f32.mrb[0].mxu0
        %v3217 = vpop.f32.mrb[0].mxu0
        %v3218 = vadd.f32 %v2157, %v3217
        %v3219 = vpop.f32.mrb[0].mxu0
        %3220 = vmatprep.mubr.bf16.mxu0 0
        %3221 = vmatmul.mubr.bf16.gmra.mrb[0].mxu0 %v1804
        %v3222 = vpop.f32.mrb[0].mxu0
        %v3223 = vadd.f32 %v2162, %v3222
        %v3224 = vpop.f32.mrb[0].mxu0
        %v3225 = vpop.f32.mrb[0].mxu0
        %v3226 = vadd.f32 %v2165, %v3225
        %v3227 = vpop.f32.mrb[0].mxu0
        %3228 = vmatprep.mubr.bf16.mxu0 0
        %3229 = vmatmul.mubr.bf16.gmra.mrb[0].mxu0 %v1805
        %v3230 = vpop.f32.mrb[0].mxu0
        %v3231 = vadd.f32 %v2170, %v3230
        %v3232 = vpop.f32.mrb[0].mxu0
        %v3233 = vpop.f32.mrb[0].mxu0
        %v3234 = vadd.f32 %v2173, %v3233
        %v3235 = vpop.f32.mrb[0].mxu0
        %3236 = vmatprep.mubr.bf16.mxu0 0
        %3237 = vmatmul.mubr.bf16.gmra.mrb[0].mxu0 %v1806
        %v3238 = vpop.f32.mrb[0].mxu0
        %v3239 = vadd.f32 %v2178, %v3238
        %v3240 = vpop.f32.mrb[0].mxu0
        %v3241 = vpop.f32.mrb[0].mxu0
        %v3242 = vadd.f32 %v2181, %v3241
        %v3243 = vpop.f32.mrb[0].mxu0
        %3244 = vmatprep.mubr.bf16.mxu0 0
        %3245 = vmatmul.mubr.bf16.gmra.mrb[0].mxu0 %v1807
        %v3246 = vpop.f32.mrb[0].mxu0
        %v3247 = vadd.f32 %v2186, %v3246
        %v3248 = vpop.f32.mrb[0].mxu0
        %v3249 = vpop.f32.mrb[0].mxu0
        %v3250 = vadd.f32 %v2189, %v3249
        %v3251 = vpop.f32.mrb[0].mxu0
        %3252 = vmatprep.mubr.bf16.mxu0 0
        %3253 = vmatmul.mubr.bf16.gmra.mrb[0].mxu0 %v1808
        %v3254 = vpop.f32.mrb[0].mxu0
        %v3255 = vadd.f32 %v2194, %v3254
        %v3256 = vpop.f32.mrb[0].mxu0
        %v3257 = vpop.f32.mrb[0].mxu0
        %v3258 = vadd.f32 %v2197, %v3257
        %v3259 = vpop.f32.mrb[0].mxu0
        %3260 = vmatprep.mubr.bf16.mxu0 0
        %3261 = vmatmul.mubr.bf16.gmra.mrb[0].mxu0 %v1809
        %v3262 = vpop.f32.mrb[0].mxu0
        %v3263 = vadd.f32 %v2202, %v3262
        %v3264 = vpop.f32.mrb[0].mxu0
        %v3265 = vpop.f32.mrb[0].mxu0
        %v3266 = vadd.f32 %v2205, %v3265
        %v3267 = vpop.f32.mrb[0].mxu0
        %3268 = vmatprep.mubr.bf16.mxu0 0
        %3269 = vmatmul.mubr.bf16.gmra.mrb[0].mxu0 %v1810
        %v3270 = vpop.f32.mrb[0].mxu0
        %v3271 = vadd.f32 %v2210, %v3270
        %v3272 = vpop.f32.mrb[0].mxu0
        %v3273 = vpop.f32.mrb[0].mxu0
        %v3274 = vadd.f32 %v2213, %v3273
        %v3275 = vpop.f32.mrb[0].mxu0
        %3276 = vmatprep.mubr.bf16.mxu0 0
        %3277 = vmatmul.mubr.bf16.gmra.mrb[0].mxu0 %v1811
        %v3278 = vpop.f32.mrb[0].mxu0
        %v3279 = vadd.f32 %v2218, %v3278
        %v3280 = vpop.f32.mrb[0].mxu0
        %v3281 = vpop.f32.mrb[0].mxu0
        %v3282 = vadd.f32 %v2221, %v3281
        %v3283 = vpop.f32.mrb[0].mxu0
        %3284 = vmatprep.mubr.bf16.mxu0 0
        %3285 = vmatmul.mubr.bf16.gmra.mrb[0].mxu0 %v1812
        %v3286 = vpop.f32.mrb[0].mxu0
        %v3287 = vadd.f32 %v2226, %v3286
        %v3288 = vpop.f32.mrb[0].mxu0
        %v3289 = vpop.f32.mrb[0].mxu0
        %v3290 = vadd.f32 %v2229, %v3289
        %v3291 = vpop.f32.mrb[0].mxu0
        %3292 = vdwg.mxu0
        %v3293 = vadd.f32 %v3167, %v2749
        %v3294 = vadd.f32 %v3170, %v2752
        %v3295 = vadd.f32 %v3175, %v2757
        %v3296 = vadd.f32 %v3178, %v2760
        %v3297 = vadd.f32 %v3183, %v2765
        %v3298 = vadd.f32 %v3186, %v2768
        %v3299 = vadd.f32 %v3191, %v2773
        %v3300 = vadd.f32 %v3194, %v2776
        %v3301 = vadd.f32 %v3199, %v2781
        %v3302 = vadd.f32 %v3202, %v2784
        %v3303 = vadd.f32 %v3207, %v2789
        %v3304 = vadd.f32 %v3210, %v2792
        %v3305 = vadd.f32 %v3215, %v2797
        %v3306 = vadd.f32 %v3218, %v2800
        %v3307 = vadd.f32 %v3223, %v2805
        %v3308 = vadd.f32 %v3226, %v2808
        %v3309 = vadd.f32 %v3231, %v2813
        %v3310 = vadd.f32 %v3234, %v2816
        %v3311 = vadd.f32 %v3239, %v2821
        %v3312 = vadd.f32 %v3242, %v2824
        %v3313 = vadd.f32 %v3247, %v2829
        %v3314 = vadd.f32 %v3250, %v2832
        %v3315 = vadd.f32 %v3255, %v2837
        %v3316 = vadd.f32 %v3258, %v2840
        %v3317 = vadd.f32 %v3263, %v2845
        %v3318 = vadd.f32 %v3266, %v2848
        %v3319 = vadd.f32 %v3271, %v2853
        %v3320 = vadd.f32 %v3274, %v2856
        %v3321 = vadd.f32 %v3279, %v2861
        %v3322 = vadd.f32 %v3282, %v2864
        %v3323 = vadd.f32 %v3287, %v2869
        %v3324 = vadd.f32 %v3290, %v2872
        %v3341 = vunpack.c.l.b16 %v1643
        %v3342 = vunpack.c.l.b16 %v1644
        %v3343 = vunpack.c.l.b16 %v1645
        %v3344 = vunpack.c.l.b16 %v1646
        %v3345 = vunpack.c.l.b16 %v1647
        %v3346 = vunpack.c.l.b16 %v1648
        %v3347 = vunpack.c.l.b16 %v1649
        %v3348 = vunpack.c.l.b16 %v1650
        %v3349 = vunpack.c.l.b16 %v1651
        %v3350 = vunpack.c.l.b16 %v1652
        %v3351 = vunpack.c.l.b16 %v1653
        %v3352 = vunpack.c.l.b16 %v1654
        %v3353 = vunpack.c.l.b16 %v1655
        %v3354 = vunpack.c.l.b16 %v1656
        %v3355 = vunpack.c.l.b16 %v1657
        %v3356 = vunpack.c.l.b16 %v1658
        %v3357 = vpack.c.b16 %v3342, %v3341
        %v3358 = vpack.c.b16 %v3344, %v3343
        %v3359 = vpack.c.b16 %v3346, %v3345
        %v3360 = vpack.c.b16 %v3348, %v3347
        %v3361 = vpack.c.b16 %v3350, %v3349
        %v3362 = vpack.c.b16 %v3352, %v3351
        %v3363 = vpack.c.b16 %v3354, %v3353
        %v3364 = vpack.c.b16 %v3356, %v3355
        %3373 = vmatprep.subr.bf16.mxu0 0
        %3374 = vmatpush1.bf16.msra.mxu0 %v3357
        %3375 = vmatprep.subr.bf16.mxu0 0
        %3376 = vmatpush1.bf16.msra.mxu0 %v3358
        %3377 = vmatprep.subr.bf16.mxu0 0
        %3378 = vmatpush1.bf16.msra.mxu0 %v3359
        %3379 = vmatprep.subr.bf16.mxu0 0
        %3380 = vmatpush1.bf16.msra.mxu0 %v3360
        %3381 = vmatprep.subr.bf16.mxu0 0
        %3382 = vmatpush1.bf16.msra.mxu0 %v3361
        %3383 = vmatprep.subr.bf16.mxu0 0
        %3384 = vmatpush1.bf16.msra.mxu0 %v3362
        %3385 = vmatprep.subr.bf16.mxu0 0
        %3386 = vmatpush1.bf16.msra.mxu0 %v3363
        %3387 = vmatprep.subr.bf16.mxu0 0
        %3388 = vmatpush1.bf16.msra.mxu0 %v3364
        %3389 = vmatprep.subr.bf16.mxu0 0
        %3390 = vmatpush1.bf16.msra.mxu0 0
        %3391 = vmatprep.subr.bf16.mxu0 0
        %3392 = vmatpush1.bf16.msra.mxu0 0
        %3393 = vmatprep.subr.bf16.mxu0 0
        %3394 = vmatpush1.bf16.msra.mxu0 0
        %3395 = vmatprep.subr.bf16.mxu0 0
        %3396 = vmatpush1.bf16.msra.mxu0 0
        %3397 = vmatprep.subr.bf16.mxu0 0
        %3398 = vmatpush1.bf16.msra.mxu0 0
        %3399 = vmatprep.subr.bf16.mxu0 0
        %3400 = vmatpush1.bf16.msra.mxu0 0
        %3401 = vmatprep.subr.bf16.mxu0 0
        %3402 = vmatpush1.bf16.msra.mxu0 0
        %3403 = vmatprep.subr.bf16.mxu0 0
        %3404 = vmatpush1.bf16.msra.mxu0 0
        %3405 = vmatprep.mubr.bf16.mxu0 0
        %3406 = vmatmul.mubr.bf16.gmra.mrb[0].mxu0 %v1797
        %v3407 = vpop.f32.mrb[0].mxu0
        %v3408 = vadd.f32 %v1897, %v3407
        %v3409 = vpop.f32.mrb[0].mxu0
        %v3410 = vpop.f32.mrb[0].mxu0
        %v3411 = vadd.f32 %v1900, %v3410
        %v3412 = vpop.f32.mrb[0].mxu0
        %3413 = vmatprep.mubr.bf16.mxu0 0
        %3414 = vmatmul.mubr.bf16.gmra.mrb[0].mxu0 %v1798
        %v3415 = vpop.f32.mrb[0].mxu0
        %v3416 = vadd.f32 %v1905, %v3415
        %v3417 = vpop.f32.mrb[0].mxu0
        %v3418 = vpop.f32.mrb[0].mxu0
        %v3419 = vadd.f32 %v1908, %v3418
        %v3420 = vpop.f32.mrb[0].mxu0
        %3421 = vmatprep.mubr.bf16.mxu0 0
        %3422 = vmatmul.mubr.bf16.gmra.mrb[0].mxu0 %v1799
        %v3423 = vpop.f32.mrb[0].mxu0
        %v3424 = vadd.f32 %v1913, %v3423
        %v3425 = vpop.f32.mrb[0].mxu0
        %v3426 = vpop.f32.mrb[0].mxu0
        %v3427 = vadd.f32 %v1916, %v3426
        %v3428 = vpop.f32.mrb[0].mxu0
        %3429 = vmatprep.mubr.bf16.mxu0 0
        %3430 = vmatmul.mubr.bf16.gmra.mrb[0].mxu0 %v1800
        %v3431 = vpop.f32.mrb[0].mxu0
        %v3432 = vadd.f32 %v1921, %v3431
        %v3433 = vpop.f32.mrb[0].mxu0
        %v3434 = vpop.f32.mrb[0].mxu0
        %v3435 = vadd.f32 %v1924, %v3434
        %v3436 = vpop.f32.mrb[0].mxu0
        %3437 = vmatprep.mubr.bf16.mxu0 0
        %3438 = vmatmul.mubr.bf16.gmra.mrb[0].mxu0 %v1801
        %v3439 = vpop.f32.mrb[0].mxu0
        %v3440 = vadd.f32 %v1929, %v3439
        %v3441 = vpop.f32.mrb[0].mxu0
        %v3442 = vpop.f32.mrb[0].mxu0
        %v3443 = vadd.f32 %v1932, %v3442
        %v3444 = vpop.f32.mrb[0].mxu0
        %3445 = vmatprep.mubr.bf16.mxu0 0
        %3446 = vmatmul.mubr.bf16.gmra.mrb[0].mxu0 %v1802
        %v3447 = vpop.f32.mrb[0].mxu0
        %v3448 = vadd.f32 %v1937, %v3447
        %v3449 = vpop.f32.mrb[0].mxu0
        %v3450 = vpop.f32.mrb[0].mxu0
        %v3451 = vadd.f32 %v1940, %v3450
        %v3452 = vpop.f32.mrb[0].mxu0
        %3453 = vmatprep.mubr.bf16.mxu0 0
        %3454 = vmatmul.mubr.bf16.gmra.mrb[0].mxu0 %v1803
        %v3455 = vpop.f32.mrb[0].mxu0
        %v3456 = vadd.f32 %v1945, %v3455
        %v3457 = vpop.f32.mrb[0].mxu0
        %v3458 = vpop.f32.mrb[0].mxu0
        %v3459 = vadd.f32 %v1948, %v3458
        %v3460 = vpop.f32.mrb[0].mxu0
        %3461 = vmatprep.mubr.bf16.mxu0 0
        %3462 = vmatmul.mubr.bf16.gmra.mrb[0].mxu0 %v1804
        %v3463 = vpop.f32.mrb[0].mxu0
        %v3464 = vadd.f32 %v1953, %v3463
        %v3465 = vpop.f32.mrb[0].mxu0
        %v3466 = vpop.f32.mrb[0].mxu0
        %v3467 = vadd.f32 %v1956, %v3466
        %v3468 = vpop.f32.mrb[0].mxu0
        %3469 = vmatprep.mubr.bf16.mxu0 0
        %3470 = vmatmul.mubr.bf16.gmra.mrb[0].mxu0 %v1805
        %v3471 = vpop.f32.mrb[0].mxu0
        %v3472 = vadd.f32 %v1961, %v3471
        %v3473 = vpop.f32.mrb[0].mxu0
        %v3474 = vpop.f32.mrb[0].mxu0
        %v3475 = vadd.f32 %v1964, %v3474
        %v3476 = vpop.f32.mrb[0].mxu0
        %3477 = vmatprep.mubr.bf16.mxu0 0
        %3478 = vmatmul.mubr.bf16.gmra.mrb[0].mxu0 %v1806
        %v3479 = vpop.f32.mrb[0].mxu0
        %v3480 = vadd.f32 %v1969, %v3479
        %v3481 = vpop.f32.mrb[0].mxu0
        %v3482 = vpop.f32.mrb[0].mxu0
        %v3483 = vadd.f32 %v1972, %v3482
        %v3484 = vpop.f32.mrb[0].mxu0
        %3485 = vmatprep.mubr.bf16.mxu0 0
        %3486 = vmatmul.mubr.bf16.gmra.mrb[0].mxu0 %v1807
        %v3487 = vpop.f32.mrb[0].mxu0
        %v3488 = vadd.f32 %v1977, %v3487
        %v3489 = vpop.f32.mrb[0].mxu0
        %v3490 = vpop.f32.mrb[0].mxu0
        %v3491 = vadd.f32 %v1980, %v3490
        %v3492 = vpop.f32.mrb[0].mxu0
        %3493 = vmatprep.mubr.bf16.mxu0 0
        %3494 = vmatmul.mubr.bf16.gmra.mrb[0].mxu0 %v1808
        %v3495 = vpop.f32.mrb[0].mxu0
        %v3496 = vadd.f32 %v1985, %v3495
        %v3497 = vpop.f32.mrb[0].mxu0
        %v3498 = vpop.f32.mrb[0].mxu0
        %v3499 = vadd.f32 %v1988, %v3498
        %v3500 = vpop.f32.mrb[0].mxu0
        %3501 = vmatprep.mubr.bf16.mxu0 0
        %3502 = vmatmul.mubr.bf16.gmra.mrb[0].mxu0 %v1809
        %v3503 = vpop.f32.mrb[0].mxu0
        %v3504 = vadd.f32 %v1993, %v3503
        %v3505 = vpop.f32.mrb[0].mxu0
        %v3506 = vpop.f32.mrb[0].mxu0
        %v3507 = vadd.f32 %v1996, %v3506
        %v3508 = vpop.f32.mrb[0].mxu0
        %3509 = vmatprep.mubr.bf16.mxu0 0
        %3510 = vmatmul.mubr.bf16.gmra.mrb[0].mxu0 %v1810
        %v3511 = vpop.f32.mrb[0].mxu0
        %v3512 = vadd.f32 %v2001, %v3511
        %v3513 = vpop.f32.mrb[0].mxu0
        %v3514 = vpop.f32.mrb[0].mxu0
        %v3515 = vadd.f32 %v2004, %v3514
        %v3516 = vpop.f32.mrb[0].mxu0
        %3517 = vmatprep.mubr.bf16.mxu0 0
        %3518 = vmatmul.mubr.bf16.gmra.mrb[0].mxu0 %v1811
        %v3519 = vpop.f32.mrb[0].mxu0
        %v3520 = vadd.f32 %v2009, %v3519
        %v3521 = vpop.f32.mrb[0].mxu0
        %v3522 = vpop.f32.mrb[0].mxu0
        %v3523 = vadd.f32 %v2012, %v3522
        %v3524 = vpop.f32.mrb[0].mxu0
        %3525 = vmatprep.mubr.bf16.mxu0 0
        %3526 = vmatmul.mubr.bf16.gmra.mrb[0].mxu0 %v1812
        %v3527 = vpop.f32.mrb[0].mxu0
        %v3528 = vadd.f32 %v2017, %v3527
        %v3529 = vpop.f32.mrb[0].mxu0
        %v3530 = vpop.f32.mrb[0].mxu0
        %v3531 = vadd.f32 %v2020, %v3530
        %v3532 = vpop.f32.mrb[0].mxu0
        %3533 = vdwg.mxu0
        %v3534 = vadd.f32 %v3408, %v2540
        %v3535 = vadd.f32 %v3411, %v2543
        %v3536 = vadd.f32 %v3416, %v2548
        %v3537 = vadd.f32 %v3419, %v2551
        %v3538 = vadd.f32 %v3424, %v2556
        %v3539 = vadd.f32 %v3427, %v2559
        %v3540 = vadd.f32 %v3432, %v2564
        %v3541 = vadd.f32 %v3435, %v2567
        %v3542 = vadd.f32 %v3440, %v2572
        %v3543 = vadd.f32 %v3443, %v2575
        %v3544 = vadd.f32 %v3448, %v2580
        %v3545 = vadd.f32 %v3451, %v2583
        %v3546 = vadd.f32 %v3456, %v2588
        %v3547 = vadd.f32 %v3459, %v2591
        %v3548 = vadd.f32 %v3464, %v2596
        %v3549 = vadd.f32 %v3467, %v2599
        %v3550 = vadd.f32 %v3472, %v2604
        %v3551 = vadd.f32 %v3475, %v2607
        %v3552 = vadd.f32 %v3480, %v2612
        %v3553 = vadd.f32 %v3483, %v2615
        %v3554 = vadd.f32 %v3488, %v2620
        %v3555 = vadd.f32 %v3491, %v2623
        %v3556 = vadd.f32 %v3496, %v2628
        %v3557 = vadd.f32 %v3499, %v2631
        %v3558 = vadd.f32 %v3504, %v2636
        %v3559 = vadd.f32 %v3507, %v2639
        %v3560 = vadd.f32 %v3512, %v2644
        %v3561 = vadd.f32 %v3515, %v2647
        %v3562 = vadd.f32 %v3520, %v2652
        %v3563 = vadd.f32 %v3523, %v2655
        %v3564 = vadd.f32 %v3528, %v2660
        %v3565 = vadd.f32 %v3531, %v2663
        %v3582 = vunpack.c.l.b16 %v1677
        %v3583 = vunpack.c.l.b16 %v1678
        %v3584 = vunpack.c.l.b16 %v1679
        %v3585 = vunpack.c.l.b16 %v1680
        %v3586 = vunpack.c.l.b16 %v1681
        %v3587 = vunpack.c.l.b16 %v1682
        %v3588 = vunpack.c.l.b16 %v1683
        %v3589 = vunpack.c.l.b16 %v1684
        %v3590 = vunpack.c.l.b16 %v1685
        %v3591 = vunpack.c.l.b16 %v1686
        %v3592 = vunpack.c.l.b16 %v1687
        %v3593 = vunpack.c.l.b16 %v1688
        %v3594 = vunpack.c.l.b16 %v1689
        %v3595 = vunpack.c.l.b16 %v1690
        %v3596 = vunpack.c.l.b16 %v1691
        %v3597 = vunpack.c.l.b16 %v1692
        %v3598 = vpack.c.b16 %v3583, %v3582
        %v3599 = vpack.c.b16 %v3585, %v3584
        %v3600 = vpack.c.b16 %v3587, %v3586
        %v3601 = vpack.c.b16 %v3589, %v3588
        %v3602 = vpack.c.b16 %v3591, %v3590
        %v3603 = vpack.c.b16 %v3593, %v3592
        %v3604 = vpack.c.b16 %v3595, %v3594
        %v3605 = vpack.c.b16 %v3597, %v3596
        %3614 = vmatprep.subr.bf16.mxu0 0
        %3615 = vmatpush1.bf16.msra.mxu0 %v3598
        %3616 = vmatprep.subr.bf16.mxu0 0
        %3617 = vmatpush1.bf16.msra.mxu0 %v3599
        %3618 = vmatprep.subr.bf16.mxu0 0
        %3619 = vmatpush1.bf16.msra.mxu0 %v3600
        %3620 = vmatprep.subr.bf16.mxu0 0
        %3621 = vmatpush1.bf16.msra.mxu0 %v3601
        %3622 = vmatprep.subr.bf16.mxu0 0
        %3623 = vmatpush1.bf16.msra.mxu0 %v3602
        %3624 = vmatprep.subr.bf16.mxu0 0
        %3625 = vmatpush1.bf16.msra.mxu0 %v3603
        %3626 = vmatprep.subr.bf16.mxu0 0
        %3627 = vmatpush1.bf16.msra.mxu0 %v3604
        %3628 = vmatprep.subr.bf16.mxu0 0
        %3629 = vmatpush1.bf16.msra.mxu0 %v3605
        %3630 = vmatprep.subr.bf16.mxu0 0
        %3631 = vmatpush1.bf16.msra.mxu0 0
        %3632 = vmatprep.subr.bf16.mxu0 0
        %3633 = vmatpush1.bf16.msra.mxu0 0
        %3634 = vmatprep.subr.bf16.mxu0 0
        %3635 = vmatpush1.bf16.msra.mxu0 0
        %3636 = vmatprep.subr.bf16.mxu0 0
        %3637 = vmatpush1.bf16.msra.mxu0 0
        %3638 = vmatprep.subr.bf16.mxu0 0
        %3639 = vmatpush1.bf16.msra.mxu0 0
        %3640 = vmatprep.subr.bf16.mxu0 0
        %3641 = vmatpush1.bf16.msra.mxu0 0
        %3642 = vmatprep.subr.bf16.mxu0 0
        %3643 = vmatpush1.bf16.msra.mxu0 0
        %3644 = vmatprep.subr.bf16.mxu0 0
        %3645 = vmatpush1.bf16.msra.mxu0 0
        %3646 = vmatprep.mubr.bf16.mxu0 0
        %3647 = vmatmul.mubr.bf16.gmra.mrb[0].mxu0 %v1797
        %v3648 = vpop.f32.mrb[0].mxu0
        %v3649 = vadd.f32 %v2315, %v3648
        %v3650 = vpop.f32.mrb[0].mxu0
        %v3651 = vpop.f32.mrb[0].mxu0
        %v3652 = vadd.f32 %v2318, %v3651
        %v3653 = vpop.f32.mrb[0].mxu0
        %3654 = vmatprep.mubr.bf16.mxu0 0
        %3655 = vmatmul.mubr.bf16.gmra.mrb[0].mxu0 %v1798
        %v3656 = vpop.f32.mrb[0].mxu0
        %v3657 = vadd.f32 %v2323, %v3656
        %v3658 = vpop.f32.mrb[0].mxu0
        %v3659 = vpop.f32.mrb[0].mxu0
        %v3660 = vadd.f32 %v2326, %v3659
        %v3661 = vpop.f32.mrb[0].mxu0
        %3662 = vmatprep.mubr.bf16.mxu0 0
        %3663 = vmatmul.mubr.bf16.gmra.mrb[0].mxu0 %v1799
        %v3664 = vpop.f32.mrb[0].mxu0
        %v3665 = vadd.f32 %v2331, %v3664
        %v3666 = vpop.f32.mrb[0].mxu0
        %v3667 = vpop.f32.mrb[0].mxu0
        %v3668 = vadd.f32 %v2334, %v3667
        %v3669 = vpop.f32.mrb[0].mxu0
        %3670 = vmatprep.mubr.bf16.mxu0 0
        %3671 = vmatmul.mubr.bf16.gmra.mrb[0].mxu0 %v1800
        %v3672 = vpop.f32.mrb[0].mxu0
        %v3673 = vadd.f32 %v2339, %v3672
        %v3674 = vpop.f32.mrb[0].mxu0
        %v3675 = vpop.f32.mrb[0].mxu0
        %v3676 = vadd.f32 %v2342, %v3675
        %v3677 = vpop.f32.mrb[0].mxu0
        %3678 = vmatprep.mubr.bf16.mxu0 0
        %3679 = vmatmul.mubr.bf16.gmra.mrb[0].mxu0 %v1801
        %v3680 = vpop.f32.mrb[0].mxu0
        %v3681 = vadd.f32 %v2347, %v3680
        %v3682 = vpop.f32.mrb[0].mxu0
        %v3683 = vpop.f32.mrb[0].mxu0
        %v3684 = vadd.f32 %v2350, %v3683
        %v3685 = vpop.f32.mrb[0].mxu0
        %3686 = vmatprep.mubr.bf16.mxu0 0
        %3687 = vmatmul.mubr.bf16.gmra.mrb[0].mxu0 %v1802
        %v3688 = vpop.f32.mrb[0].mxu0
        %v3689 = vadd.f32 %v2355, %v3688
        %v3690 = vpop.f32.mrb[0].mxu0
        %v3691 = vpop.f32.mrb[0].mxu0
        %v3692 = vadd.f32 %v2358, %v3691
        %v3693 = vpop.f32.mrb[0].mxu0
        %3694 = vmatprep.mubr.bf16.mxu0 0
        %3695 = vmatmul.mubr.bf16.gmra.mrb[0].mxu0 %v1803
        %v3696 = vpop.f32.mrb[0].mxu0
        %v3697 = vadd.f32 %v2363, %v3696
        %v3698 = vpop.f32.mrb[0].mxu0
        %v3699 = vpop.f32.mrb[0].mxu0
        %v3700 = vadd.f32 %v2366, %v3699
        %v3701 = vpop.f32.mrb[0].mxu0
        %3702 = vmatprep.mubr.bf16.mxu0 0
        %3703 = vmatmul.mubr.bf16.gmra.mrb[0].mxu0 %v1804
        %v3704 = vpop.f32.mrb[0].mxu0
        %v3705 = vadd.f32 %v2371, %v3704
        %v3706 = vpop.f32.mrb[0].mxu0
        %v3707 = vpop.f32.mrb[0].mxu0
        %v3708 = vadd.f32 %v2374, %v3707
        %v3709 = vpop.f32.mrb[0].mxu0
        %3710 = vmatprep.mubr.bf16.mxu0 0
        %3711 = vmatmul.mubr.bf16.gmra.mrb[0].mxu0 %v1805
        %v3712 = vpop.f32.mrb[0].mxu0
        %v3713 = vadd.f32 %v2379, %v3712
        %v3714 = vpop.f32.mrb[0].mxu0
        %v3715 = vpop.f32.mrb[0].mxu0
        %v3716 = vadd.f32 %v2382, %v3715
        %v3717 = vpop.f32.mrb[0].mxu0
        %3718 = vmatprep.mubr.bf16.mxu0 0
        %3719 = vmatmul.mubr.bf16.gmra.mrb[0].mxu0 %v1806
        %v3720 = vpop.f32.mrb[0].mxu0
        %v3721 = vadd.f32 %v2387, %v3720
        %v3722 = vpop.f32.mrb[0].mxu0
        %v3723 = vpop.f32.mrb[0].mxu0
        %v3724 = vadd.f32 %v2390, %v3723
        %v3725 = vpop.f32.mrb[0].mxu0
        %3726 = vmatprep.mubr.bf16.mxu0 0
        %3727 = vmatmul.mubr.bf16.gmra.mrb[0].mxu0 %v1807
        %v3728 = vpop.f32.mrb[0].mxu0
        %v3729 = vadd.f32 %v2395, %v3728
        %v3730 = vpop.f32.mrb[0].mxu0
        %v3731 = vpop.f32.mrb[0].mxu0
        %v3732 = vadd.f32 %v2398, %v3731
        %v3733 = vpop.f32.mrb[0].mxu0
        %3734 = vmatprep.mubr.bf16.mxu0 0
        %3735 = vmatmul.mubr.bf16.gmra.mrb[0].mxu0 %v1808
        %v3736 = vpop.f32.mrb[0].mxu0
        %v3737 = vadd.f32 %v2403, %v3736
        %v3738 = vpop.f32.mrb[0].mxu0
        %v3739 = vpop.f32.mrb[0].mxu0
        %v3740 = vadd.f32 %v2406, %v3739
        %v3741 = vpop.f32.mrb[0].mxu0
        %3742 = vmatprep.mubr.bf16.mxu0 0
        %3743 = vmatmul.mubr.bf16.gmra.mrb[0].mxu0 %v1809
        %v3744 = vpop.f32.mrb[0].mxu0
        %v3745 = vadd.f32 %v2411, %v3744
        %v3746 = vpop.f32.mrb[0].mxu0
        %v3747 = vpop.f32.mrb[0].mxu0
        %v3748 = vadd.f32 %v2414, %v3747
        %v3749 = vpop.f32.mrb[0].mxu0
        %3750 = vmatprep.mubr.bf16.mxu0 0
        %3751 = vmatmul.mubr.bf16.gmra.mrb[0].mxu0 %v1810
        %v3752 = vpop.f32.mrb[0].mxu0
        %v3753 = vadd.f32 %v2419, %v3752
        %v3754 = vpop.f32.mrb[0].mxu0
        %v3755 = vpop.f32.mrb[0].mxu0
        %v3756 = vadd.f32 %v2422, %v3755
        %v3757 = vpop.f32.mrb[0].mxu0
        %3758 = vmatprep.mubr.bf16.mxu0 0
        %3759 = vmatmul.mubr.bf16.gmra.mrb[0].mxu0 %v1811
        %v3760 = vpop.f32.mrb[0].mxu0
        %v3761 = vadd.f32 %v2427, %v3760
        %v3762 = vpop.f32.mrb[0].mxu0
        %v3763 = vpop.f32.mrb[0].mxu0
        %v3764 = vadd.f32 %v2430, %v3763
        %v3765 = vpop.f32.mrb[0].mxu0
        %3766 = vmatprep.mubr.bf16.mxu0 0
        %3767 = vmatmul.mubr.bf16.gmra.mrb[0].mxu0 %v1812
        %v3768 = vpop.f32.mrb[0].mxu0
        %v3769 = vadd.f32 %v2435, %v3768
        %v3770 = vpop.f32.mrb[0].mxu0
        %v3771 = vpop.f32.mrb[0].mxu0
        %v3772 = vadd.f32 %v2438, %v3771
        %v3773 = vpop.f32.mrb[0].mxu0
        %3774 = vdwg.mxu0
        %v3775 = vadd.f32 %v3649, %v2958
        %v3776 = vadd.f32 %v3652, %v2961
        %v3777 = vadd.f32 %v3657, %v2966
        %v3778 = vadd.f32 %v3660, %v2969
        %v3779 = vadd.f32 %v3665, %v2974
        %v3780 = vadd.f32 %v3668, %v2977
        %v3781 = vadd.f32 %v3673, %v2982
        %v3782 = vadd.f32 %v3676, %v2985
        %v3783 = vadd.f32 %v3681, %v2990
        %v3784 = vadd.f32 %v3684, %v2993
        %v3785 = vadd.f32 %v3689, %v2998
        %v3786 = vadd.f32 %v3692, %v3001
        %v3787 = vadd.f32 %v3697, %v3006
        %v3788 = vadd.f32 %v3700, %v3009
        %v3789 = vadd.f32 %v3705, %v3014
        %v3790 = vadd.f32 %v3708, %v3017
        %v3791 = vadd.f32 %v3713, %v3022
        %v3792 = vadd.f32 %v3716, %v3025
        %v3793 = vadd.f32 %v3721, %v3030
        %v3794 = vadd.f32 %v3724, %v3033
        %v3795 = vadd.f32 %v3729, %v3038
        %v3796 = vadd.f32 %v3732, %v3041
        %v3797 = vadd.f32 %v3737, %v3046
        %v3798 = vadd.f32 %v3740, %v3049
        %v3799 = vadd.f32 %v3745, %v3054
        %v3800 = vadd.f32 %v3748, %v3057
        %v3801 = vadd.f32 %v3753, %v3062
        %v3802 = vadd.f32 %v3756, %v3065
        %v3803 = vadd.f32 %v3761, %v3070
        %v3804 = vadd.f32 %v3764, %v3073
        %v3805 = vadd.f32 %v3769, %v3078
        %v3806 = vadd.f32 %v3772, %v3081
        %v3807 = vrot.slane %v3534, 7
        %v3808 = vrot.slane %v3535, 7
        %v3809 = vrot.slane %v3536, 7
        %v3810 = vrot.slane %v3537, 7
        %v3811 = vrot.slane %v3538, 7
        %v3812 = vrot.slane %v3539, 7
        %v3813 = vrot.slane %v3540, 7
        %v3814 = vrot.slane %v3541, 7
        %v3815 = vrot.slane %v3542, 7
        %v3816 = vrot.slane %v3543, 7
        %v3817 = vrot.slane %v3544, 7
        %v3818 = vrot.slane %v3545, 7
        %v3819 = vrot.slane %v3546, 7
        %v3820 = vrot.slane %v3547, 7
        %v3821 = vrot.slane %v3548, 7
        %v3822 = vrot.slane %v3549, 7
        %v3823 = vrot.slane %v3550, 7
        %v3824 = vrot.slane %v3551, 7
        %v3825 = vrot.slane %v3552, 7
        %v3826 = vrot.slane %v3553, 7
        %v3827 = vrot.slane %v3554, 7
        %v3828 = vrot.slane %v3555, 7
        %v3829 = vrot.slane %v3556, 7
        %v3830 = vrot.slane %v3557, 7
        %v3831 = vrot.slane %v3558, 7
        %v3832 = vrot.slane %v3559, 7
        %v3833 = vrot.slane %v3560, 7
        %v3834 = vrot.slane %v3561, 7
        %v3835 = vrot.slane %v3562, 7
        %v3836 = vrot.slane %v3563, 7
        %v3837 = vrot.slane %v3564, 7
        %v3838 = vrot.slane %v3565, 7
        %vm3839 = vcmp.lt.s32.totalorder %v1099, 1
        %v3840 = vsel %vm3839, %v3837, %v3838
        %v3841 = vsel %vm3839, %v3836, %v3837
        %v3842 = vsel %vm3839, %v3835, %v3836
        %v3843 = vsel %vm3839, %v3834, %v3835
        %v3844 = vsel %vm3839, %v3833, %v3834
        %v3845 = vsel %vm3839, %v3832, %v3833
        %v3846 = vsel %vm3839, %v3831, %v3832
        %v3847 = vsel %vm3839, %v3830, %v3831
        %v3848 = vsel %vm3839, %v3829, %v3830
        %v3849 = vsel %vm3839, %v3828, %v3829
        %v3850 = vsel %vm3839, %v3827, %v3828
        %v3851 = vsel %vm3839, %v3826, %v3827
        %v3852 = vsel %vm3839, %v3825, %v3826
        %v3853 = vsel %vm3839, %v3824, %v3825
        %v3854 = vsel %vm3839, %v3823, %v3824
        %v3855 = vsel %vm3839, %v3822, %v3823
        %v3856 = vsel %vm3839, %v3821, %v3822
        %v3857 = vsel %vm3839, %v3820, %v3821
        %v3858 = vsel %vm3839, %v3819, %v3820
        %v3859 = vsel %vm3839, %v3818, %v3819
        %v3860 = vsel %vm3839, %v3817, %v3818
        %v3861 = vsel %vm3839, %v3816, %v3817
        %v3862 = vsel %vm3839, %v3815, %v3816
        %v3863 = vsel %vm3839, %v3814, %v3815
        %v3864 = vsel %vm3839, %v3813, %v3814
        %v3865 = vsel %vm3839, %v3812, %v3813
        %v3866 = vsel %vm3839, %v3811, %v3812
        %v3867 = vsel %vm3839, %v3810, %v3811
        %v3868 = vsel %vm3839, %v3809, %v3810
        %v3869 = vsel %vm3839, %v3808, %v3809
        %v3870 = vsel %vm3839, %v3807, %v3808
        %v3871 = vsel %vm3839, %v3838, %v3807
        %v3872 = vmul.f32 %v1547, %v3871
        %v3873 = vmul.f32 %v1548, %v3870
        %v3874 = vmul.f32 %v1549, %v3869
        %v3875 = vmul.f32 %v1550, %v3868
        %v3876 = vmul.f32 %v1551, %v3867
        %v3877 = vmul.f32 %v1552, %v3866
        %v3878 = vmul.f32 %v1553, %v3865
        %v3879 = vmul.f32 %v1554, %v3864
        %v3880 = vmul.f32 %v1555, %v3863
        %v3881 = vmul.f32 %v1556, %v3862
        %v3882 = vmul.f32 %v1557, %v3861
        %v3883 = vmul.f32 %v1558, %v3860
        %v3884 = vmul.f32 %v1559, %v3859
        %v3885 = vmul.f32 %v1560, %v3858
        %v3886 = vmul.f32 %v1561, %v3857
        %v3887 = vmul.f32 %v1562, %v3856
        %v3888 = vmul.f32 %v1563, %v3855
        %v3889 = vmul.f32 %v1564, %v3854
        %v3890 = vmul.f32 %v1565, %v3853
        %v3891 = vmul.f32 %v1566, %v3852
        %v3892 = vmul.f32 %v1567, %v3851
        %v3893 = vmul.f32 %v1568, %v3850
        %v3894 = vmul.f32 %v1569, %v3849
        %v3895 = vmul.f32 %v1570, %v3848
        %v3896 = vmul.f32 %v1571, %v3847
        %v3897 = vmul.f32 %v1572, %v3846
        %v3898 = vmul.f32 %v1573, %v3845
        %v3899 = vmul.f32 %v1574, %v3844
        %v3900 = vmul.f32 %v1575, %v3843
        %v3901 = vmul.f32 %v1576, %v3842
        %v3902 = vmul.f32 %v1577, %v3841
        %v3903 = vmul.f32 %v1578, %v3840
        %v3904 = vadd.f32 %v3293, %v3872
        %v3905 = vadd.f32 %v3294, %v3873
        %v3906 = vadd.f32 %v3295, %v3874
        %v3907 = vadd.f32 %v3296, %v3875
        %v3908 = vadd.f32 %v3297, %v3876
        %v3909 = vadd.f32 %v3298, %v3877
        %v3910 = vadd.f32 %v3299, %v3878
        %v3911 = vadd.f32 %v3300, %v3879
        %v3912 = vadd.f32 %v3301, %v3880
        %v3913 = vadd.f32 %v3302, %v3881
        %v3914 = vadd.f32 %v3303, %v3882
        %v3915 = vadd.f32 %v3304, %v3883
        %v3916 = vadd.f32 %v3305, %v3884
        %v3917 = vadd.f32 %v3306, %v3885
        %v3918 = vadd.f32 %v3307, %v3886
        %v3919 = vadd.f32 %v3308, %v3887
        %v3920 = vadd.f32 %v3309, %v3888
        %v3921 = vadd.f32 %v3310, %v3889
        %v3922 = vadd.f32 %v3311, %v3890
        %v3923 = vadd.f32 %v3312, %v3891
        %v3924 = vadd.f32 %v3313, %v3892
        %v3925 = vadd.f32 %v3314, %v3893
        %v3926 = vadd.f32 %v3315, %v3894
        %v3927 = vadd.f32 %v3316, %v3895
        %v3928 = vadd.f32 %v3317, %v3896
        %v3929 = vadd.f32 %v3318, %v3897
        %v3930 = vadd.f32 %v3319, %v3898
        %v3931 = vadd.f32 %v3320, %v3899
        %v3932 = vadd.f32 %v3321, %v3900
        %v3933 = vadd.f32 %v3322, %v3901
        %v3934 = vadd.f32 %v3323, %v3902
        %v3935 = vadd.f32 %v3324, %v3903
        %v3936 = vrot.slane %v3775, 1
        %v3937 = vrot.slane %v3776, 1
        %v3938 = vrot.slane %v3777, 1
        %v3939 = vrot.slane %v3778, 1
        %v3940 = vrot.slane %v3779, 1
        %v3941 = vrot.slane %v3780, 1
        %v3942 = vrot.slane %v3781, 1
        %v3943 = vrot.slane %v3782, 1
        %v3944 = vrot.slane %v3783, 1
        %v3945 = vrot.slane %v3784, 1
        %v3946 = vrot.slane %v3785, 1
        %v3947 = vrot.slane %v3786, 1
        %v3948 = vrot.slane %v3787, 1
        %v3949 = vrot.slane %v3788, 1
        %v3950 = vrot.slane %v3789, 1
        %v3951 = vrot.slane %v3790, 1
        %v3952 = vrot.slane %v3791, 1
        %v3953 = vrot.slane %v3792, 1
        %v3954 = vrot.slane %v3793, 1
        %v3955 = vrot.slane %v3794, 1
        %v3956 = vrot.slane %v3795, 1
        %v3957 = vrot.slane %v3796, 1
        %v3958 = vrot.slane %v3797, 1
        %v3959 = vrot.slane %v3798, 1
        %v3960 = vrot.slane %v3799, 1
        %v3961 = vrot.slane %v3800, 1
        %v3962 = vrot.slane %v3801, 1
        %v3963 = vrot.slane %v3802, 1
        %v3964 = vrot.slane %v3803, 1
        %v3965 = vrot.slane %v3804, 1
        %v3966 = vrot.slane %v3805, 1
        %v3967 = vrot.slane %v3806, 1
        %vm3968 = vcmp.lt.s32.totalorder %v1099, 7
        %v3969 = vsel %vm3968, %v3966, %v3967
        %v3970 = vsel %vm3968, %v3965, %v3966
        %v3971 = vsel %vm3968, %v3964, %v3965
        %v3972 = vsel %vm3968, %v3963, %v3964
        %v3973 = vsel %vm3968, %v3962, %v3963
        %v3974 = vsel %vm3968, %v3961, %v3962
        %v3975 = vsel %vm3968, %v3960, %v3961
        %v3976 = vsel %vm3968, %v3959, %v3960
        %v3977 = vsel %vm3968, %v3958, %v3959
        %v3978 = vsel %vm3968, %v3957, %v3958
        %v3979 = vsel %vm3968, %v3956, %v3957
        %v3980 = vsel %vm3968, %v3955, %v3956
        %v3981 = vsel %vm3968, %v3954, %v3955
        %v3982 = vsel %vm3968, %v3953, %v3954
        %v3983 = vsel %vm3968, %v3952, %v3953
        %v3984 = vsel %vm3968, %v3951, %v3952
        %v3985 = vsel %vm3968, %v3950, %v3951
        %v3986 = vsel %vm3968, %v3949, %v3950
        %v3987 = vsel %vm3968, %v3948, %v3949
        %v3988 = vsel %vm3968, %v3947, %v3948
        %v3989 = vsel %vm3968, %v3946, %v3947
        %v3990 = vsel %vm3968, %v3945, %v3946
        %v3991 = vsel %vm3968, %v3944, %v3945
        %v3992 = vsel %vm3968, %v3943, %v3944
        %v3993 = vsel %vm3968, %v3942, %v3943
        %v3994 = vsel %vm3968, %v3941, %v3942
        %v3995 = vsel %vm3968, %v3940, %v3941
        %v3996 = vsel %vm3968, %v3939, %v3940
        %v3997 = vsel %vm3968, %v3938, %v3939
        %v3998 = vsel %vm3968, %v3937, %v3938
        %v3999 = vsel %vm3968, %v3936, %v3937
        %v4000 = vsel %vm3968, %v3967, %v3936
        %v4001 = vmul.f32 %v1611, %v3999
        %v4002 = vmul.f32 %v1612, %v3998
        %v4003 = vmul.f32 %v1613, %v3997
        %v4004 = vmul.f32 %v1614, %v3996
        %v4005 = vmul.f32 %v1615, %v3995
        %v4006 = vmul.f32 %v1616, %v3994
        %v4007 = vmul.f32 %v1617, %v3993
        %v4008 = vmul.f32 %v1618, %v3992
        %v4009 = vmul.f32 %v1619, %v3991
        %v4010 = vmul.f32 %v1620, %v3990
        %v4011 = vmul.f32 %v1621, %v3989
        %v4012 = vmul.f32 %v1622, %v3988
        %v4013 = vmul.f32 %v1623, %v3987
        %v4014 = vmul.f32 %v1624, %v3986
        %v4015 = vmul.f32 %v1625, %v3985
        %v4016 = vmul.f32 %v1626, %v3984
        %v4017 = vmul.f32 %v1627, %v3983
        %v4018 = vmul.f32 %v1628, %v3982
        %v4019 = vmul.f32 %v1629, %v3981
        %v4020 = vmul.f32 %v1630, %v3980
        %v4021 = vmul.f32 %v1631, %v3979
        %v4022 = vmul.f32 %v1632, %v3978
        %v4023 = vmul.f32 %v1633, %v3977
        %v4024 = vmul.f32 %v1634, %v3976
        %v4025 = vmul.f32 %v1635, %v3975
        %v4026 = vmul.f32 %v1636, %v3974
        %v4027 = vmul.f32 %v1637, %v3973
        %v4028 = vmul.f32 %v1638, %v3972
        %v4029 = vmul.f32 %v1639, %v3971
        %v4030 = vmul.f32 %v1640, %v3970
        %v4031 = vmul.f32 %v1641, %v3969
        %v4032 = vmul.f32 %v1642, %v4000
        %v4033 = vadd.f32 %v3904, %v4001
        %v4034 = vadd.f32 %v3905, %v4002
        %v4035 = vadd.f32 %v3906, %v4003
        %v4036 = vadd.f32 %v3907, %v4004
        %v4037 = vadd.f32 %v3908, %v4005
        %v4038 = vadd.f32 %v3909, %v4006
        %v4039 = vadd.f32 %v3910, %v4007
        %v4040 = vadd.f32 %v3911, %v4008
        %v4041 = vadd.f32 %v3912, %v4009
        %v4042 = vadd.f32 %v3913, %v4010
        %v4043 = vadd.f32 %v3914, %v4011
        %v4044 = vadd.f32 %v3915, %v4012
        %v4045 = vadd.f32 %v3916, %v4013
        %v4046 = vadd.f32 %v3917, %v4014
        %v4047 = vadd.f32 %v3918, %v4015
        %v4048 = vadd.f32 %v3919, %v4016
        %v4049 = vadd.f32 %v3920, %v4017
        %v4050 = vadd.f32 %v3921, %v4018
        %v4051 = vadd.f32 %v3922, %v4019
        %v4052 = vadd.f32 %v3923, %v4020
        %v4053 = vadd.f32 %v3924, %v4021
        %v4054 = vadd.f32 %v3925, %v4022
        %v4055 = vadd.f32 %v3926, %v4023
        %v4056 = vadd.f32 %v3927, %v4024
        %v4057 = vadd.f32 %v3928, %v4025
        %v4058 = vadd.f32 %v3929, %v4026
        %v4059 = vadd.f32 %v3930, %v4027
        %v4060 = vadd.f32 %v3931, %v4028
        %v4061 = vadd.f32 %v3932, %v4029
        %v4062 = vadd.f32 %v3933, %v4030
        %v4063 = vadd.f32 %v3934, %v4031
        %v4064 = vadd.f32 %v3935, %v4032
        %4065 = vadd.xlane.f32.xlu0 %v4033
        %v4066 = vpop.xlane.xlu0 %4065
        %4067 = vadd.xlane.f32.xlu0 %v4034
        %v4068 = vpop.xlane.xlu0 %4067
        %4069 = vadd.xlane.f32.xlu0 %v4035
        %v4070 = vpop.xlane.xlu0 %4069
        %4071 = vadd.xlane.f32.xlu0 %v4036
        %v4072 = vpop.xlane.xlu0 %4071
        %4073 = vadd.xlane.f32.xlu0 %v4037
        %v4074 = vpop.xlane.xlu0 %4073
        %4075 = vadd.xlane.f32.xlu0 %v4038
        %v4076 = vpop.xlane.xlu0 %4075
        %4077 = vadd.xlane.f32.xlu0 %v4039
        %v4078 = vpop.xlane.xlu0 %4077
        %4079 = vadd.xlane.f32.xlu0 %v4040
        %v4080 = vpop.xlane.xlu0 %4079
        %4081 = vadd.xlane.f32.xlu0 %v4041
        %v4082 = vpop.xlane.xlu0 %4081
        %4083 = vadd.xlane.f32.xlu0 %v4042
        %v4084 = vpop.xlane.xlu0 %4083
        %4085 = vadd.xlane.f32.xlu0 %v4043
        %v4086 = vpop.xlane.xlu0 %4085
        %4087 = vadd.xlane.f32.xlu0 %v4044
        %v4088 = vpop.xlane.xlu0 %4087
        %4089 = vadd.xlane.f32.xlu0 %v4045
        %v4090 = vpop.xlane.xlu0 %4089
        %4091 = vadd.xlane.f32.xlu0 %v4046
        %v4092 = vpop.xlane.xlu0 %4091
        %4093 = vadd.xlane.f32.xlu0 %v4047
        %v4094 = vpop.xlane.xlu0 %4093
        %4095 = vadd.xlane.f32.xlu0 %v4048
        %v4096 = vpop.xlane.xlu0 %4095
        %4097 = vadd.xlane.f32.xlu0 %v4049
        %v4098 = vpop.xlane.xlu0 %4097
        %4099 = vadd.xlane.f32.xlu0 %v4050
        %v4100 = vpop.xlane.xlu0 %4099
        %4101 = vadd.xlane.f32.xlu0 %v4051
        %v4102 = vpop.xlane.xlu0 %4101
        %4103 = vadd.xlane.f32.xlu0 %v4052
        %v4104 = vpop.xlane.xlu0 %4103
        %4105 = vadd.xlane.f32.xlu0 %v4053
        %v4106 = vpop.xlane.xlu0 %4105
        %4107 = vadd.xlane.f32.xlu0 %v4054
        %v4108 = vpop.xlane.xlu0 %4107
        %4109 = vadd.xlane.f32.xlu0 %v4055
        %v4110 = vpop.xlane.xlu0 %4109
        %4111 = vadd.xlane.f32.xlu0 %v4056
        %v4112 = vpop.xlane.xlu0 %4111
        %4113 = vadd.xlane.f32.xlu0 %v4057
        %v4114 = vpop.xlane.xlu0 %4113
        %4115 = vadd.xlane.f32.xlu0 %v4058
        %v4116 = vpop.xlane.xlu0 %4115
        %4117 = vadd.xlane.f32.xlu0 %v4059
        %v4118 = vpop.xlane.xlu0 %4117
        %4119 = vadd.xlane.f32.xlu0 %v4060
        %v4120 = vpop.xlane.xlu0 %4119
        %4121 = vadd.xlane.f32.xlu0 %v4061
        %v4122 = vpop.xlane.xlu0 %4121
        %4123 = vadd.xlane.f32.xlu0 %v4062
        %v4124 = vpop.xlane.xlu0 %4123
        %4125 = vadd.xlane.f32.xlu0 %v4063
        %v4126 = vpop.xlane.xlu0 %4125
        %4127 = vadd.xlane.f32.xlu0 %v4064
        %v4128 = vpop.xlane.xlu0 %4127
        %v4129 = vmul.f32 %v4066, %v701
        %v4130 = vmul.f32 %v4068, %v701
        %v4131 = vmul.f32 %v4070, %v701
        %v4132 = vmul.f32 %v4072, %v701
        %v4133 = vmul.f32 %v4074, %v701
        %v4134 = vmul.f32 %v4076, %v701
        %v4135 = vmul.f32 %v4078, %v701
        %v4136 = vmul.f32 %v4080, %v701
        %v4137 = vmul.f32 %v4082, %v701
        %v4138 = vmul.f32 %v4084, %v701
        %v4139 = vmul.f32 %v4086, %v701
        %v4140 = vmul.f32 %v4088, %v701
        %v4141 = vmul.f32 %v4090, %v701
        %v4142 = vmul.f32 %v4092, %v701
        %v4143 = vmul.f32 %v4094, %v701
        %v4144 = vmul.f32 %v4096, %v701
        %v4145 = vmul.f32 %v4098, %v701
        %v4146 = vmul.f32 %v4100, %v701
        %v4147 = vmul.f32 %v4102, %v701
        %v4148 = vmul.f32 %v4104, %v701
        %v4149 = vmul.f32 %v4106, %v701
        %v4150 = vmul.f32 %v4108, %v701
        %v4151 = vmul.f32 %v4110, %v701
        %v4152 = vmul.f32 %v4112, %v701
        %v4153 = vmul.f32 %v4114, %v701
        %v4154 = vmul.f32 %v4116, %v701
        %v4155 = vmul.f32 %v4118, %v701
        %v4156 = vmul.f32 %v4120, %v701
        %v4157 = vmul.f32 %v4122, %v701
        %v4158 = vmul.f32 %v4124, %v701
        %v4159 = vmul.f32 %v4126, %v701
        %v4160 = vmul.f32 %v4128, %v701
        %v4161 = vsub.f32 %v4033, %v4129
        %v4162 = vsub.f32 %v4034, %v4130
        %v4163 = vsub.f32 %v4035, %v4131
        %v4164 = vsub.f32 %v4036, %v4132
        %v4165 = vsub.f32 %v4037, %v4133
        %v4166 = vsub.f32 %v4038, %v4134
        %v4167 = vsub.f32 %v4039, %v4135
        %v4168 = vsub.f32 %v4040, %v4136
        %v4169 = vsub.f32 %v4041, %v4137
        %v4170 = vsub.f32 %v4042, %v4138
        %v4171 = vsub.f32 %v4043, %v4139
        %v4172 = vsub.f32 %v4044, %v4140
        %v4173 = vsub.f32 %v4045, %v4141
        %v4174 = vsub.f32 %v4046, %v4142
        %v4175 = vsub.f32 %v4047, %v4143
        %v4176 = vsub.f32 %v4048, %v4144
        %v4177 = vsub.f32 %v4049, %v4145
        %v4178 = vsub.f32 %v4050, %v4146
        %v4179 = vsub.f32 %v4051, %v4147
        %v4180 = vsub.f32 %v4052, %v4148
        %v4181 = vsub.f32 %v4053, %v4149
        %v4182 = vsub.f32 %v4054, %v4150
        %v4183 = vsub.f32 %v4055, %v4151
        %v4184 = vsub.f32 %v4056, %v4152
        %v4185 = vsub.f32 %v4057, %v4153
        %v4186 = vsub.f32 %v4058, %v4154
        %v4187 = vsub.f32 %v4059, %v4155
        %v4188 = vsub.f32 %v4060, %v4156
        %v4189 = vsub.f32 %v4061, %v4157
        %v4190 = vsub.f32 %v4062, %v4158
        %v4191 = vsub.f32 %v4063, %v4159
        %v4192 = vsub.f32 %v4064, %v4160
        %v4193 = vmul.f32 %v4161, %v4161
        %v4194 = vmul.f32 %v4162, %v4162
        %v4195 = vmul.f32 %v4163, %v4163
        %v4196 = vmul.f32 %v4164, %v4164
        %v4197 = vmul.f32 %v4165, %v4165
        %v4198 = vmul.f32 %v4166, %v4166
        %v4199 = vmul.f32 %v4167, %v4167
        %v4200 = vmul.f32 %v4168, %v4168
        %v4201 = vmul.f32 %v4169, %v4169
        %v4202 = vmul.f32 %v4170, %v4170
        %v4203 = vmul.f32 %v4171, %v4171
        %v4204 = vmul.f32 %v4172, %v4172
        %v4205 = vmul.f32 %v4173, %v4173
        %v4206 = vmul.f32 %v4174, %v4174
        %v4207 = vmul.f32 %v4175, %v4175
        %v4208 = vmul.f32 %v4176, %v4176
        %v4209 = vmul.f32 %v4177, %v4177
        %v4210 = vmul.f32 %v4178, %v4178
        %v4211 = vmul.f32 %v4179, %v4179
        %v4212 = vmul.f32 %v4180, %v4180
        %v4213 = vmul.f32 %v4181, %v4181
        %v4214 = vmul.f32 %v4182, %v4182
        %v4215 = vmul.f32 %v4183, %v4183
        %v4216 = vmul.f32 %v4184, %v4184
        %v4217 = vmul.f32 %v4185, %v4185
        %v4218 = vmul.f32 %v4186, %v4186
        %v4219 = vmul.f32 %v4187, %v4187
        %v4220 = vmul.f32 %v4188, %v4188
        %v4221 = vmul.f32 %v4189, %v4189
        %v4222 = vmul.f32 %v4190, %v4190
        %v4223 = vmul.f32 %v4191, %v4191
        %v4224 = vmul.f32 %v4192, %v4192
        %4225 = vadd.xlane.f32.xlu0 %v4193
        %v4226 = vpop.xlane.xlu0 %4225
        %4227 = vadd.xlane.f32.xlu0 %v4194
        %v4228 = vpop.xlane.xlu0 %4227
        %4229 = vadd.xlane.f32.xlu0 %v4195
        %v4230 = vpop.xlane.xlu0 %4229
        %4231 = vadd.xlane.f32.xlu0 %v4196
        %v4232 = vpop.xlane.xlu0 %4231
        %4233 = vadd.xlane.f32.xlu0 %v4197
        %v4234 = vpop.xlane.xlu0 %4233
        %4235 = vadd.xlane.f32.xlu0 %v4198
        %v4236 = vpop.xlane.xlu0 %4235
        %4237 = vadd.xlane.f32.xlu0 %v4199
        %v4238 = vpop.xlane.xlu0 %4237
        %4239 = vadd.xlane.f32.xlu0 %v4200
        %v4240 = vpop.xlane.xlu0 %4239
        %4241 = vadd.xlane.f32.xlu0 %v4201
        %v4242 = vpop.xlane.xlu0 %4241
        %4243 = vadd.xlane.f32.xlu0 %v4202
        %v4244 = vpop.xlane.xlu0 %4243
        %4245 = vadd.xlane.f32.xlu0 %v4203
        %v4246 = vpop.xlane.xlu0 %4245
        %4247 = vadd.xlane.f32.xlu0 %v4204
        %v4248 = vpop.xlane.xlu0 %4247
        %4249 = vadd.xlane.f32.xlu0 %v4205
        %v4250 = vpop.xlane.xlu0 %4249
        %4251 = vadd.xlane.f32.xlu0 %v4206
        %v4252 = vpop.xlane.xlu0 %4251
        %4253 = vadd.xlane.f32.xlu0 %v4207
        %v4254 = vpop.xlane.xlu0 %4253
        %4255 = vadd.xlane.f32.xlu0 %v4208
        %v4256 = vpop.xlane.xlu0 %4255
        %4257 = vadd.xlane.f32.xlu0 %v4209
        %v4258 = vpop.xlane.xlu0 %4257
        %4259 = vadd.xlane.f32.xlu0 %v4210
        %v4260 = vpop.xlane.xlu0 %4259
        %4261 = vadd.xlane.f32.xlu0 %v4211
        %v4262 = vpop.xlane.xlu0 %4261
        %4263 = vadd.xlane.f32.xlu0 %v4212
        %v4264 = vpop.xlane.xlu0 %4263
        %4265 = vadd.xlane.f32.xlu0 %v4213
        %v4266 = vpop.xlane.xlu0 %4265
        %4267 = vadd.xlane.f32.xlu0 %v4214
        %v4268 = vpop.xlane.xlu0 %4267
        %4269 = vadd.xlane.f32.xlu0 %v4215
        %v4270 = vpop.xlane.xlu0 %4269
        %4271 = vadd.xlane.f32.xlu0 %v4216
        %v4272 = vpop.xlane.xlu0 %4271
        %4273 = vadd.xlane.f32.xlu0 %v4217
        %v4274 = vpop.xlane.xlu0 %4273
        %4275 = vadd.xlane.f32.xlu0 %v4218
        %v4276 = vpop.xlane.xlu0 %4275
        %4277 = vadd.xlane.f32.xlu0 %v4219
        %v4278 = vpop.xlane.xlu0 %4277
        %4279 = vadd.xlane.f32.xlu0 %v4220
        %v4280 = vpop.xlane.xlu0 %4279
        %4281 = vadd.xlane.f32.xlu0 %v4221
        %v4282 = vpop.xlane.xlu0 %4281
        %4283 = vadd.xlane.f32.xlu0 %v4222
        %v4284 = vpop.xlane.xlu0 %4283
        %4285 = vadd.xlane.f32.xlu0 %v4223
        %v4286 = vpop.xlane.xlu0 %4285
        %4287 = vadd.xlane.f32.xlu0 %v4224
        %v4288 = vpop.xlane.xlu0 %4287
        %v4289 = vmul.f32 %v4226, %v701
        %v4290 = vmul.f32 %v4228, %v701
        %v4291 = vmul.f32 %v4230, %v701
        %v4292 = vmul.f32 %v4232, %v701
        %v4293 = vmul.f32 %v4234, %v701
        %v4294 = vmul.f32 %v4236, %v701
        %v4295 = vmul.f32 %v4238, %v701
        %v4296 = vmul.f32 %v4240, %v701
        %v4297 = vmul.f32 %v4242, %v701
        %v4298 = vmul.f32 %v4244, %v701
        %v4299 = vmul.f32 %v4246, %v701
        %v4300 = vmul.f32 %v4248, %v701
        %v4301 = vmul.f32 %v4250, %v701
        %v4302 = vmul.f32 %v4252, %v701
        %v4303 = vmul.f32 %v4254, %v701
        %v4304 = vmul.f32 %v4256, %v701
        %v4305 = vmul.f32 %v4258, %v701
        %v4306 = vmul.f32 %v4260, %v701
        %v4307 = vmul.f32 %v4262, %v701
        %v4308 = vmul.f32 %v4264, %v701
        %v4309 = vmul.f32 %v4266, %v701
        %v4310 = vmul.f32 %v4268, %v701
        %v4311 = vmul.f32 %v4270, %v701
        %v4312 = vmul.f32 %v4272, %v701
        %v4313 = vmul.f32 %v4274, %v701
        %v4314 = vmul.f32 %v4276, %v701
        %v4315 = vmul.f32 %v4278, %v701
        %v4316 = vmul.f32 %v4280, %v701
        %v4317 = vmul.f32 %v4282, %v701
        %v4318 = vmul.f32 %v4284, %v701
        %v4319 = vmul.f32 %v4286, %v701
        %v4320 = vmul.f32 %v4288, %v701
        %v4321 = vadd.f32 %v4289, 1e-06
        %v4322 = vadd.f32 %v4290, 1e-06
        %v4323 = vadd.f32 %v4291, 1e-06
        %v4324 = vadd.f32 %v4292, 1e-06
        %v4325 = vadd.f32 %v4293, 1e-06
        %v4326 = vadd.f32 %v4294, 1e-06
        %v4327 = vadd.f32 %v4295, 1e-06
        %v4328 = vadd.f32 %v4296, 1e-06
        %v4329 = vadd.f32 %v4297, 1e-06
        %v4330 = vadd.f32 %v4298, 1e-06
        %v4331 = vadd.f32 %v4299, 1e-06
        %v4332 = vadd.f32 %v4300, 1e-06
        %v4333 = vadd.f32 %v4301, 1e-06
        %v4334 = vadd.f32 %v4302, 1e-06
        %v4335 = vadd.f32 %v4303, 1e-06
        %v4336 = vadd.f32 %v4304, 1e-06
        %v4337 = vadd.f32 %v4305, 1e-06
        %v4338 = vadd.f32 %v4306, 1e-06
        %v4339 = vadd.f32 %v4307, 1e-06
        %v4340 = vadd.f32 %v4308, 1e-06
        %v4341 = vadd.f32 %v4309, 1e-06
        %v4342 = vadd.f32 %v4310, 1e-06
        %v4343 = vadd.f32 %v4311, 1e-06
        %v4344 = vadd.f32 %v4312, 1e-06
        %v4345 = vadd.f32 %v4313, 1e-06
        %v4346 = vadd.f32 %v4314, 1e-06
        %v4347 = vadd.f32 %v4315, 1e-06
        %v4348 = vadd.f32 %v4316, 1e-06
        %v4349 = vadd.f32 %v4317, 1e-06
        %v4350 = vadd.f32 %v4318, 1e-06
        %v4351 = vadd.f32 %v4319, 1e-06
        %v4352 = vadd.f32 %v4320, 1e-06
        %v4353 = vrsqrt.pop %v4321
        %v4354 = vrsqrt.pop %v4322
        %v4355 = vrsqrt.pop %v4323
        %v4356 = vrsqrt.pop %v4324
        %v4357 = vrsqrt.pop %v4325
        %v4358 = vrsqrt.pop %v4326
        %v4359 = vrsqrt.pop %v4327
        %v4360 = vrsqrt.pop %v4328
        %v4361 = vrsqrt.pop %v4329
        %v4362 = vrsqrt.pop %v4330
        %v4363 = vrsqrt.pop %v4331
        %v4364 = vrsqrt.pop %v4332
        %v4365 = vrsqrt.pop %v4333
        %v4366 = vrsqrt.pop %v4334
        %v4367 = vrsqrt.pop %v4335
        %v4368 = vrsqrt.pop %v4336
        %v4369 = vrsqrt.pop %v4337
        %v4370 = vrsqrt.pop %v4338
        %v4371 = vrsqrt.pop %v4339
        %v4372 = vrsqrt.pop %v4340
        %v4373 = vrsqrt.pop %v4341
        %v4374 = vrsqrt.pop %v4342
        %v4375 = vrsqrt.pop %v4343
        %v4376 = vrsqrt.pop %v4344
        %v4377 = vrsqrt.pop %v4345
        %v4378 = vrsqrt.pop %v4346
        %v4379 = vrsqrt.pop %v4347
        %v4380 = vrsqrt.pop %v4348
        %v4381 = vrsqrt.pop %v4349
        %v4382 = vrsqrt.pop %v4350
        %v4383 = vrsqrt.pop %v4351
        %v4384 = vrsqrt.pop %v4352
        %v4385 = vmul.f32 %v4161, %v4353
        %v4386 = vmul.f32 %v4162, %v4354
        %v4387 = vmul.f32 %v4163, %v4355
        %v4388 = vmul.f32 %v4164, %v4356
        %v4389 = vmul.f32 %v4165, %v4357
        %v4390 = vmul.f32 %v4166, %v4358
        %v4391 = vmul.f32 %v4167, %v4359
        %v4392 = vmul.f32 %v4168, %v4360
        %v4393 = vmul.f32 %v4169, %v4361
        %v4394 = vmul.f32 %v4170, %v4362
        %v4395 = vmul.f32 %v4171, %v4363
        %v4396 = vmul.f32 %v4172, %v4364
        %v4397 = vmul.f32 %v4173, %v4365
        %v4398 = vmul.f32 %v4174, %v4366
        %v4399 = vmul.f32 %v4175, %v4367
        %v4400 = vmul.f32 %v4176, %v4368
        %v4401 = vmul.f32 %v4177, %v4369
        %v4402 = vmul.f32 %v4178, %v4370
        %v4403 = vmul.f32 %v4179, %v4371
        %v4404 = vmul.f32 %v4180, %v4372
        %v4405 = vmul.f32 %v4181, %v4373
        %v4406 = vmul.f32 %v4182, %v4374
        %v4407 = vmul.f32 %v4183, %v4375
        %v4408 = vmul.f32 %v4184, %v4376
        %v4409 = vmul.f32 %v4185, %v4377
        %v4410 = vmul.f32 %v4186, %v4378
        %v4411 = vmul.f32 %v4187, %v4379
        %v4412 = vmul.f32 %v4188, %v4380
        %v4413 = vmul.f32 %v4189, %v4381
        %v4414 = vmul.f32 %v4190, %v4382
        %v4415 = vmul.f32 %v4191, %v4383
        %v4416 = vmul.f32 %v4192, %v4384
        %v4418 = vlaneseq
        %v4419 = vshrl.u32 %v4418, 7
        %v4420 = vsub.s32 0, %v4419
        %v4421 = vrot.slane %v1795, %v4420
        %v4423 = vmul.f32 %v4385, %v4421
        %v4424 = vmul.f32 %v4386, %v4421
        %v4425 = vmul.f32 %v4387, %v4421
        %v4426 = vmul.f32 %v4388, %v4421
        %v4427 = vmul.f32 %v4389, %v4421
        %v4428 = vmul.f32 %v4390, %v4421
        %v4429 = vmul.f32 %v4391, %v4421
        %v4430 = vmul.f32 %v4392, %v4421
        %v4431 = vmul.f32 %v4393, %v4421
        %v4432 = vmul.f32 %v4394, %v4421
        %v4433 = vmul.f32 %v4395, %v4421
        %v4434 = vmul.f32 %v4396, %v4421
        %v4435 = vmul.f32 %v4397, %v4421
        %v4436 = vmul.f32 %v4398, %v4421
        %v4437 = vmul.f32 %v4399, %v4421
        %v4438 = vmul.f32 %v4400, %v4421
        %v4439 = vmul.f32 %v4401, %v4421
        %v4440 = vmul.f32 %v4402, %v4421
        %v4441 = vmul.f32 %v4403, %v4421
        %v4442 = vmul.f32 %v4404, %v4421
        %v4443 = vmul.f32 %v4405, %v4421
        %v4444 = vmul.f32 %v4406, %v4421
        %v4445 = vmul.f32 %v4407, %v4421
        %v4446 = vmul.f32 %v4408, %v4421
        %v4447 = vmul.f32 %v4409, %v4421
        %v4448 = vmul.f32 %v4410, %v4421
        %v4449 = vmul.f32 %v4411, %v4421
        %v4450 = vmul.f32 %v4412, %v4421
        %v4451 = vmul.f32 %v4413, %v4421
        %v4452 = vmul.f32 %v4414, %v4421
        %v4453 = vmul.f32 %v4415, %v4421
        %v4454 = vmul.f32 %v4416, %v4421
        %v4456 = vlaneseq
        %v4457 = vshrl.u32 %v4456, 7
        %v4458 = vsub.s32 0, %v4457
        %v4459 = vrot.slane %v1796, %v4458
        %v4461 = vadd.f32 %v4423, %v4459
        %v4462 = vadd.f32 %v4424, %v4459
        %v4463 = vadd.f32 %v4425, %v4459
        %v4464 = vadd.f32 %v4426, %v4459
        %v4465 = vadd.f32 %v4427, %v4459
        %v4466 = vadd.f32 %v4428, %v4459
        %v4467 = vadd.f32 %v4429, %v4459
        %v4468 = vadd.f32 %v4430, %v4459
        %v4469 = vadd.f32 %v4431, %v4459
        %v4470 = vadd.f32 %v4432, %v4459
        %v4471 = vadd.f32 %v4433, %v4459
        %v4472 = vadd.f32 %v4434, %v4459
        %v4473 = vadd.f32 %v4435, %v4459
        %v4474 = vadd.f32 %v4436, %v4459
        %v4475 = vadd.f32 %v4437, %v4459
        %v4476 = vadd.f32 %v4438, %v4459
        %v4477 = vadd.f32 %v4439, %v4459
        %v4478 = vadd.f32 %v4440, %v4459
        %v4479 = vadd.f32 %v4441, %v4459
        %v4480 = vadd.f32 %v4442, %v4459
        %v4481 = vadd.f32 %v4443, %v4459
        %v4482 = vadd.f32 %v4444, %v4459
        %v4483 = vadd.f32 %v4445, %v4459
        %v4484 = vadd.f32 %v4446, %v4459
        %v4485 = vadd.f32 %v4447, %v4459
        %v4486 = vadd.f32 %v4448, %v4459
        %v4487 = vadd.f32 %v4449, %v4459
        %v4488 = vadd.f32 %v4450, %v4459
        %v4489 = vadd.f32 %v4451, %v4459
        %v4490 = vadd.f32 %v4452, %v4459
        %v4491 = vadd.f32 %v4453, %v4459
        %v4492 = vadd.f32 %v4454, %v4459
        %4493 = vxpose.xlu0.b32.start [1/16] %v4461, 128
        %4494 = vxpose.xlu0.b32.cont [2/16] %v4462, 128
        %4495 = vxpose.xlu0.b32.cont [3/16] %v4463, 128
        %4496 = vxpose.xlu0.b32.cont [4/16] %v4464, 128
        %4497 = vxpose.xlu0.b32.cont [5/16] %v4465, 128
        %4498 = vxpose.xlu0.b32.cont [6/16] %v4466, 128
        %4499 = vxpose.xlu0.b32.cont [7/16] %v4467, 128
        %4500 = vxpose.xlu0.b32.cont [8/16] %v4468, 128
        %4501 = vxpose.xlu0.b32.cont [9/16] %v4469, 128
        %4502 = vxpose.xlu0.b32.cont [10/16] %v4470, 128
        %4503 = vxpose.xlu0.b32.cont [11/16] %v4471, 128
        %4504 = vxpose.xlu0.b32.cont [12/16] %v4472, 128
        %4505 = vxpose.xlu0.b32.cont [13/16] %v4473, 128
        %4506 = vxpose.xlu0.b32.cont [14/16] %v4474, 128
        %4507 = vxpose.xlu0.b32.cont [15/16] %v4475, 128
        %4508 = vxpose.xlu0.b32.end [16/16] %v4476, 128
        %v4509 = vpop.trf.xlu0
        %v4510 = vpop.trf.xlu0
        %v4511 = vpop.trf.xlu0
        %v4512 = vpop.trf.xlu0
        %v4513 = vpop.trf.xlu0
        %v4514 = vpop.trf.xlu0
        %v4515 = vpop.trf.xlu0
        %v4516 = vpop.trf.xlu0
        %v4517 = vpop.trf.xlu0
        %v4518 = vpop.trf.xlu0
        %v4519 = vpop.trf.xlu0
        %v4520 = vpop.trf.xlu0
        %v4521 = vpop.trf.xlu0
        %v4522 = vpop.trf.xlu0
        %v4523 = vpop.trf.xlu0
        %v4524 = vpop.trf.xlu0
        %4525 = vxpose.xlu0.b32.start [1/16] %v4477, 128
        %4526 = vxpose.xlu0.b32.cont [2/16] %v4478, 128
        %4527 = vxpose.xlu0.b32.cont [3/16] %v4479, 128
        %4528 = vxpose.xlu0.b32.cont [4/16] %v4480, 128
        %4529 = vxpose.xlu0.b32.cont [5/16] %v4481, 128
        %4530 = vxpose.xlu0.b32.cont [6/16] %v4482, 128
        %4531 = vxpose.xlu0.b32.cont [7/16] %v4483, 128
        %4532 = vxpose.xlu0.b32.cont [8/16] %v4484, 128
        %4533 = vxpose.xlu0.b32.cont [9/16] %v4485, 128
        %4534 = vxpose.xlu0.b32.cont [10/16] %v4486, 128
        %4535 = vxpose.xlu0.b32.cont [11/16] %v4487, 128
        %4536 = vxpose.xlu0.b32.cont [12/16] %v4488, 128
        %4537 = vxpose.xlu0.b32.cont [13/16] %v4489, 128
        %4538 = vxpose.xlu0.b32.cont [14/16] %v4490, 128
        %4539 = vxpose.xlu0.b32.cont [15/16] %v4491, 128
        %4540 = vxpose.xlu0.b32.end [16/16] %v4492, 128
        %v4541 = vpop.trf.xlu0
        %v4542 = vpop.trf.xlu0
        %v4543 = vpop.trf.xlu0
        %v4544 = vpop.trf.xlu0
        %v4545 = vpop.trf.xlu0
        %v4546 = vpop.trf.xlu0
        %v4547 = vpop.trf.xlu0
        %v4548 = vpop.trf.xlu0
        %v4549 = vpop.trf.xlu0
        %v4550 = vpop.trf.xlu0
        %v4551 = vpop.trf.xlu0
        %v4552 = vpop.trf.xlu0
        %v4553 = vpop.trf.xlu0
        %v4554 = vpop.trf.xlu0
        %v4555 = vpop.trf.xlu0
        %v4556 = vpop.trf.xlu0
        %4557 = vst [vmem:[%s286] sm:$0xff] %v4509
        %4558 = vst [vmem:[%s286 + $0x8] sm:$0xff] %v4541
        %4559 = vst [vmem:[%s286 + $0x10] sm:$0xff] %v4510
        %4560 = vst [vmem:[%s286 + $0x18] sm:$0xff] %v4542
        %4561 = vst [vmem:[%s286 + $0x20] sm:$0xff] %v4511
        %4562 = vst [vmem:[%s286 + $0x28] sm:$0xff] %v4543
        %4563 = vst [vmem:[%s286 + $0x30] sm:$0xff] %v4512
        %4564 = vst [vmem:[%s286 + $0x38] sm:$0xff] %v4544
        %4565 = vst [vmem:[%s286 + $0x40] sm:$0xff] %v4513
        %4566 = vst [vmem:[%s286 + $0x48] sm:$0xff] %v4545
        %4567 = vst [vmem:[%s286 + $0x50] sm:$0xff] %v4514
        %4568 = vst [vmem:[%s286 + $0x58] sm:$0xff] %v4546
        %4569 = vst [vmem:[%s286 + $0x60] sm:$0xff] %v4515
        %4570 = vst [vmem:[%s286 + $0x68] sm:$0xff] %v4547
        %4571 = vst [vmem:[%s286 + $0x70] sm:$0xff] %v4516
        %4572 = vst [vmem:[%s286 + $0x78] sm:$0xff] %v4548
        %4573 = vst [vmem:[%s286 + $0x80] sm:$0xff] %v4517
        %4574 = vst [vmem:[%s286 + $0x88] sm:$0xff] %v4549
        %4575 = vst [vmem:[%s286 + $0x90] sm:$0xff] %v4518
        %4576 = vst [vmem:[%s286 + $0x98] sm:$0xff] %v4550
        %4577 = vst [vmem:[%s286 + $0xa0] sm:$0xff] %v4519
        %4578 = vst [vmem:[%s286 + $0xa8] sm:$0xff] %v4551
        %4579 = vst [vmem:[%s286 + $0xb0] sm:$0xff] %v4520
        %4580 = vst [vmem:[%s286 + $0xb8] sm:$0xff] %v4552
        %4581 = vst [vmem:[%s286 + $0xc0] sm:$0xff] %v4521
        %4582 = vst [vmem:[%s286 + $0xc8] sm:$0xff] %v4553
        %4583 = vst [vmem:[%s286 + $0xd0] sm:$0xff] %v4522
        %4584 = vst [vmem:[%s286 + $0xd8] sm:$0xff] %v4554
        %4585 = vst [vmem:[%s286 + $0xe0] sm:$0xff] %v4523
        %4586 = vst [vmem:[%s286 + $0xe8] sm:$0xff] %v4555
        %4587 = vst [vmem:[%s286 + $0xf0] sm:$0xff] %v4524
        %4588 = vst [vmem:[%s286 + $0xf8] sm:$0xff] %v4556
        %s4589 = sand.u32 %s182, 1
        %s4590 = scalar_lea.sflag [#allocation5], %s4589
        %s4591 = sand.u32 %s182, 1
        %s4592 = smul.addr %s4591, 256
        %s4593 = scalar_lea.vmem [#allocation6], %s4592
        // Predicated region
        $region53: #{tpu_custom_call.1} parent=47 // pred_check
          %p4594 = pneg %p192
        $region54: #{tpu_custom_call.1} parent=47 // pred_check_branch
          %4596 = sbr.rel (%p4594) target = $region56
        $region55: #{tpu_custom_call.1} parent=47 // pred_region
          %s4598 = ssub.s32 4096, 4096
          %4599 = vsyncadd %s4590, %s4598
          %s4600 = smul.addr %s22, 32
          %s4601 = smul.addr %s4600, 128
          %s4602 = scalar_lea.hbm %s7, %s4601
          %s4603 = sshll.u32 %s4593, 4
          %s4604 = int_to_ptr.vmem [resolvable:$true] %s4603
          %4609 = dma.vmem_to_hbm [thread:$0]  %s4604, 4096, %s4602, %s4590, 256, 256, 16
        $region56: #{tpu_custom_call.1} parent=47 // pred_fallthru
          _
      $region48: #{tpu_custom_call.1} parent=5 // pred_fallthru
        _
      %p4610 = scmp.le.s32.totalorder 2, %s17
      // Predicated region
      $region57: #{tpu_custom_call.1} parent=5 // pred_check
        %p4611 = pneg %p4610
      $region58: #{tpu_custom_call.1} parent=5 // pred_check_branch
        %4613 = sbr.rel (%p4611) target = $region60
      $region59: #{tpu_custom_call.1} parent=5 // pred_region
        %s4614 = ssub.s32 %s17, 2
        // Predicated region
        $region61: #{tpu_custom_call.1} parent=59 // pred_check
          %p4615 = pneg %p198
        $region62: #{tpu_custom_call.1} parent=59 // pred_check_branch
          %4617 = sbr.rel (%p4615) target = $region64
        $region63: #{tpu_custom_call.1} parent=59 // pred_region
          %s4618 = sand.u32 %s183, 1
          %s4619 = scalar_lea.sflag [#allocation5], %s4618
          %s4620 = sand.u32 %s183, 1
          %s4621 = smul.addr %s4620, 256
          %s4622 = scalar_lea.vmem [#allocation6], %s4621
          %4623 = dma.done %s4619, 4096
        $region64: #{tpu_custom_call.1} parent=59 // pred_fallthru
          _
      $region60: #{tpu_custom_call.1} parent=5 // pred_fallthru
        _
    $region6: #{tpu_custom_call.1} parent=1 // loop_footer
      %s21 = sadd.s32 1, %s17
    $region7: #{tpu_custom_call.1} parent=1 // loop_footer_branch
      %16 = sbr.rel target = $region3
    $region8: #{tpu_custom_call.1} parent=1 // loop_exit
      _
    %4624 = vsyncpa [#allocation4], 1
    %s4625 = scalar_lea.sflag [#allocation4], 1
    %4626 = vsyncpa %s4625, 1
    %4627 = vsyncpa [#allocation5], 1
    %s4628 = scalar_lea.sflag [#allocation5], 1
    %4629 = vsyncpa %s4628, 1

</llo_original>
